<compile_context>
chip_gen: v5e
topology: v5e:2x2
jax: 0.10.0
libtpu: 0.0.40
codegen_flags: <defaults>
</compile_context>

<pallas_src>
import math

import jax
import jax.numpy as jnp
from jax.experimental import pallas as pl
from jax.experimental.pallas import tpu as pltpu

EPS = 1e-6
MASK_SCALE = 1e9
VMEM_LIMIT_BYTES = 48 * 1024 * 1024


def _cparams(n_parallel_axes=1):
    return pltpu.CompilerParams(
        dimension_semantics=("parallel",) * n_parallel_axes,
        vmem_limit_bytes=VMEM_LIMIT_BYTES,
    )


def _row_tile(m, max_rows=512):
    # Full extent if small, otherwise a multiple-of-8 row tile (padded tail rows
    # are computed independently and their writes are masked by Pallas).
    return m if m <= max_rows else max_rows


# ----------------------------- kernel bodies ------------------------------- #

def _layernorm_math(x_f32, a, b):
    # torch.Tensor.std is unbiased (divide by D-1) and the reference LayerNorm
    # divides by (std + eps), not sqrt(var + eps). Do NOT "fix" this.
    d = x_f32.shape[-1]
    mean = jnp.mean(x_f32, axis=-1, keepdims=True)
    xc = x_f32 - mean
    var = jnp.sum(xc * xc, axis=-1, keepdims=True) * (1.0 / (d - 1))
    inv = pl.reciprocal(jnp.sqrt(var) + EPS, approx=True)   # EUP slot, frees VALU
    return a.astype(jnp.float32) * xc * inv + b.astype(jnp.float32)


def _ln_kernel(x_ref, a_ref, b_ref, o_ref):
    # x_ref: (tm, D); a/b: (1, D)
    y = _layernorm_math(x_ref[...].astype(jnp.float32), a_ref[...], b_ref[...])
    o_ref[...] = y.astype(o_ref.dtype)


def _make_ln_proj_kernel(n_out):
    # Fused LayerNorm + n_out independent projections of the same normalized x.
    # refs = (x, a, b, w_0..w_{n-1}, bias_0..bias_{n-1}, out_0..out_{n-1})
    def kernel(*refs):
        x_ref, a_ref, b_ref = refs[0], refs[1], refs[2]
        w_refs = refs[3:3 + n_out]
        bias_refs = refs[3 + n_out:3 + 2 * n_out]
        out_refs = refs[3 + 2 * n_out:]
        y = _layernorm_math(x_ref[...].astype(jnp.float32), a_ref[...], b_ref[...])
        y_lo = y.astype(w_refs[0].dtype)            # one bf16 cast shared by all dots
        for w_ref, bias_ref, o_ref in zip(w_refs, bias_refs, out_refs):
            o = jnp.dot(y_lo, w_ref[...], preferred_element_type=jnp.float32)
            o_ref[...] = (o + bias_ref[...].astype(jnp.float32)).astype(o_ref.dtype)
    return kernel


def _make_proj_kernel(n_out):
    # n_out projections of the same (un-normalized) input -> x read from HBM once.
    # refs = (x, w_0..w_{n-1}, bias_0..bias_{n-1}, out_0..out_{n-1})
    def kernel(*refs):
        x_ref = refs[0]
        w_refs = refs[1:1 + n_out]
        bias_refs = refs[1 + n_out:1 + 2 * n_out]
        out_refs = refs[1 + 2 * n_out:]
        x_lo = x_ref[...].astype(w_refs[0].dtype)
        for w_ref, bias_ref, o_ref in zip(w_refs, bias_refs, out_refs):
            o = jnp.dot(x_lo, w_ref[...], preferred_element_type=jnp.float32)
            o_ref[...] = (o + bias_ref[...].astype(jnp.float32)).astype(o_ref.dtype)
    return kernel


def _ffn_math(x_f32, a_ref, b_ref, w1_ref, b1_ref, w2_ref, b2_ref):
    # x + relu(LN(x) @ W1 + b1) @ W2 + b2, all accumulation in f32, operands bf16.
    y = _layernorm_math(x_f32, a_ref[...], b_ref[...])
    h = jnp.dot(y.astype(w1_ref.dtype), w1_ref[...],
                preferred_element_type=jnp.float32) + b1_ref[...].astype(jnp.float32)
    h = jnp.maximum(h, 0.0)
    o = jnp.dot(h.astype(w2_ref.dtype), w2_ref[...],
                preferred_element_type=jnp.float32) + b2_ref[...].astype(jnp.float32)
    return x_f32 + o


def _make_ffn_kernel(fuse_final_ln):
    if fuse_final_ln:
        # out = FinalLN( x + FFN(LN(x)) )  -- last decoder layer
        def kernel(x_ref, a_ref, b_ref, w1_ref, b1_ref, w2_ref, b2_ref,
                   fa_ref, fb_ref, o_ref):
            out = _ffn_math(x_ref[...].astype(jnp.float32), a_ref, b_ref,
                            w1_ref, b1_ref, w2_ref, b2_ref)
            out = _layernorm_math(out, fa_ref[...], fb_ref[...])
            o_ref[...] = out.astype(o_ref.dtype)
    else:
        def kernel(x_ref, a_ref, b_ref, w1_ref, b1_ref, w2_ref, b2_ref, o_ref):
            out = _ffn_math(x_ref[...].astype(jnp.float32), a_ref, b_ref,
                            w1_ref, b1_ref, w2_ref, b2_ref)
            o_ref[...] = out.astype(o_ref.dtype)
    return kernel


def _make_attn_kernel(nheads, dk):
    # One (batch, query-tile) per grid step; all heads processed in-kernel.
    # Per head: scaled-dot-product attention, context written into a (tq, D)
    # VMEM scratch at lane offset h*dk. Then ONE K=D matmul with Wo (full MXU
    # depth) fused with bias + residual add; output is a lane-dense (tq, D) block.
    scale = 1.0 / math.sqrt(dk)

    def kernel(q_ref, k_ref, v_ref, m_ref, res_ref, wo_ref, bo_ref, o_ref, ctx_ref):
        q = q_ref[0]                                   # (tq, D)   bf16
        k = k_ref[0]                                   # (Tk, D)   bf16
        v = v_ref[0]                                   # (Tk, D)   bf16
        # Additive mask: 0 where mask==1, -1e9 where mask==0 (matches
        # masked_fill(-1e9) up to negligible softmax difference).
        bias = (m_ref[0].astype(jnp.float32) - 1.0) * MASK_SCALE     # (tq, Tk)
        # TODO(synk): for many heads (>=8) switch to lax.fori_loop + pl.ds to
        # bound vreg live ranges; static unroll is fine for small H.
        for hh in range(nheads):
            lo = hh * dk
            qh = q[:, lo:lo + dk]
            kh = k[:, lo:lo + dk]
            vh = v[:, lo:lo + dk]
            # scores = qh @ kh^T / sqrt(dk) (contraction on last dims, no transpose op)
            s = jax.lax.dot_general(
                qh, kh, dimension_numbers=(((1,), (1,)), ((), ())),
                preferred_element_type=jnp.float32) * scale + bias
            s = s - jnp.max(s, axis=-1, keepdims=True)
            p = jnp.exp(s)                                            # f32 (v5e VPU)
            p = p * pl.reciprocal(jnp.sum(p, axis=-1, keepdims=True), approx=True)
            ctx_ref[:, lo:lo + dk] = jnp.dot(
                p.astype(vh.dtype), vh, preferred_element_type=jnp.float32)
        acc = (res_ref[0].astype(jnp.float32) + bo_ref[...].astype(jnp.float32)
               + jnp.dot(ctx_ref[...].astype(wo_ref.dtype), wo_ref[...],
                         preferred_element_type=jnp.float32))
        o_ref[0] = acc.astype(o_ref.dtype)

    return kernel


# ------------------------------- wrappers ---------------------------------- #

def layernorm_2d(x2d, a, b):
    M, D = x2d.shape
    tm = _row_tile(M)
    return pl.pallas_call(
        _ln_kernel,
        out_shape=jax.ShapeDtypeStruct((M, D), x2d.dtype),
        grid=(pl.cdiv(M, tm),),
        in_specs=[
            pl.BlockSpec((tm, D), lambda i: (i, 0)),
            pl.BlockSpec((1, D), lambda i: (0, 0)),
            pl.BlockSpec((1, D), lambda i: (0, 0)),
        ],
        out_specs=pl.BlockSpec((tm, D), lambda i: (i, 0)),
        compiler_params=_cparams(1),
    )(x2d, a.reshape(1, D), b.reshape(1, D))


def ln_proj(x2d, a, b, weights, biases, out_dtype=None):
    """Fused LayerNorm(x2d) followed by len(weights) projections."""
    M, D = x2d.shape
    n = len(weights)
    tm = _row_tile(M)
    out_dtype = out_dtype or x2d.dtype
    in_specs = [
        pl.BlockSpec((tm, D), lambda i: (i, 0)),
        pl.BlockSpec((1, D), lambda i: (0, 0)),
        pl.BlockSpec((1, D), lambda i: (0, 0)),
    ]
    args = [x2d, a.reshape(1, D), b.reshape(1, D)]
    for w in weights:
        in_specs.append(pl.BlockSpec(w.shape, lambda i: (0, 0)))
        args.append(w)
    for bb in biases:
        in_specs.append(pl.BlockSpec((1, bb.shape[0]), lambda i: (0, 0)))
        args.append(bb.reshape(1, -1))
    out_shape = tuple(jax.ShapeDtypeStruct((M, w.shape[1]), out_dtype) for w in weights)
    out_specs = tuple(pl.BlockSpec((tm, w.shape[1]), lambda i: (i, 0)) for w in weights)
    outs = pl.pallas_call(
        _make_ln_proj_kernel(n),
        out_shape=out_shape,
        grid=(pl.cdiv(M, tm),),
        in_specs=in_specs,
        out_specs=out_specs,
        compiler_params=_cparams(1),
    )(*args)
    if not isinstance(outs, (list, tuple)):
        outs = (outs,)
    return tuple(outs)


def proj(x2d, weights, biases, out_dtype=None):
    """len(weights) projections of x2d sharing a single read of x2d."""
    M, D = x2d.shape
    n = len(weights)
    tm = _row_tile(M)
    out_dtype = out_dtype or x2d.dtype
    in_specs = [pl.BlockSpec((tm, D), lambda i: (i, 0))]
    args = [x2d]
    for w in weights:
        in_specs.append(pl.BlockSpec(w.shape, lambda i: (0, 0)))
        args.append(w)
    for bb in biases:
        in_specs.append(pl.BlockSpec((1, bb.shape[0]), lambda i: (0, 0)))
        args.append(bb.reshape(1, -1))
    out_shape = tuple(jax.ShapeDtypeStruct((M, w.shape[1]), out_dtype) for w in weights)
    out_specs = tuple(pl.BlockSpec((tm, w.shape[1]), lambda i: (i, 0)) for w in weights)
    outs = pl.pallas_call(
        _make_proj_kernel(n),
        out_shape=out_shape,
        grid=(pl.cdiv(M, tm),),
        in_specs=in_specs,
        out_specs=out_specs,
        compiler_params=_cparams(1),
    )(*args)
    if not isinstance(outs, (list, tuple)):
        outs = (outs,)
    return tuple(outs)


def ffn_block(x2d, a, b, w1, b1, w2, b2, final_ln=None):
    M, D = x2d.shape
    Dff = w1.shape[1]
    tm = _row_tile(M)
    in_specs = [
        pl.BlockSpec((tm, D), lambda i: (i, 0)),
        pl.BlockSpec((1, D), lambda i: (0, 0)),
        pl.BlockSpec((1, D), lambda i: (0, 0)),
        pl.BlockSpec((D, Dff), lambda i: (0, 0)),
        pl.BlockSpec((1, Dff), lambda i: (0, 0)),
        pl.BlockSpec((Dff, D), lambda i: (0, 0)),
        pl.BlockSpec((1, D), lambda i: (0, 0)),
    ]
    args = [x2d, a.reshape(1, D), b.reshape(1, D),
            w1, b1.reshape(1, Dff), w2, b2.reshape(1, D)]
    if final_ln is not None:
        fa, fb = final_ln
        in_specs += [pl.BlockSpec((1, D), lambda i: (0, 0)),
                     pl.BlockSpec((1, D), lambda i: (0, 0))]
        args += [fa.reshape(1, D), fb.reshape(1, D)]
    return pl.pallas_call(
        _make_ffn_kernel(final_ln is not None),
        out_shape=jax.ShapeDtypeStruct((M, D), x2d.dtype),
        grid=(pl.cdiv(M, tm),),
        in_specs=in_specs,
        out_specs=pl.BlockSpec((tm, D), lambda i: (i, 0)),
        compiler_params=_cparams(1),
    )(*args)


def attention_block(q, k, v, mask, residual, wo, bo, nheads):
    """All-head attention + output projection + residual, (batch, q-tile) grid."""
    B, Tq, D = q.shape
    Tk = k.shape[1]
    dk = D // nheads
    tq = _row_tile(Tq, 256)
    return pl.pallas_call(
        _make_attn_kernel(nheads, dk),
        out_shape=jax.ShapeDtypeStruct((B, Tq, D), residual.dtype),
        grid=(B, pl.cdiv(Tq, tq)),
        in_specs=[
            pl.BlockSpec((1, tq, D), lambda b, qi: (b, qi, 0)),
            pl.BlockSpec((1, Tk, D), lambda b, qi: (b, 0, 0)),
            pl.BlockSpec((1, Tk, D), lambda b, qi: (b, 0, 0)),
            pl.BlockSpec((1, tq, Tk), lambda b, qi: (b, qi, 0)),  # bf16, no per-head copy
            pl.BlockSpec((1, tq, D), lambda b, qi: (b, qi, 0)),
            pl.BlockSpec((D, D), lambda b, qi: (0, 0)),
            pl.BlockSpec((1, D), lambda b, qi: (0, 0)),
        ],
        out_specs=pl.BlockSpec((1, tq, D), lambda b, qi: (b, qi, 0)),
        scratch_shapes=[pltpu.VMEM((tq, D), jnp.float32)],
        compiler_params=_cparams(2),
    )(q, k, v, mask, residual, wo, bo.reshape(1, D))


# ------------------------------ decoder model ------------------------------ #

def decoder_layer(x, memory, src_mask, tgt_mask, p, nheads, final_ln=None):
    B, T, D = x.shape
    S = memory.shape[1]

    # sublayer 0: self-attention (pre-norm residual, dropout = identity)
    sa = p["self_attn"]
    q, k, v = ln_proj(x.reshape(B * T, D), p["ln0_a"], p["ln0_b"],
                      [sa["wq"], sa["wk"], sa["wv"]],
                      [sa["bq"], sa["bk"], sa["bv"]],
                      out_dtype=jnp.bfloat16)
    x = attention_block(q.reshape(B, T, D), k.reshape(B, T, D), v.reshape(B, T, D),
                        tgt_mask, x, sa["wo"], sa["bo"], nheads)

    # sublayer 1: source attention over encoder memory
    ca = p["src_attn"]
    (q,) = ln_proj(x.reshape(B * T, D), p["ln1_a"], p["ln1_b"],
                   [ca["wq"]], [ca["bq"]], out_dtype=jnp.bfloat16)
    k, v = proj(memory.reshape(B * S, D),
                [ca["wk"], ca["wv"]], [ca["bk"], ca["bv"]],
                out_dtype=jnp.bfloat16)
    x = attention_block(q.reshape(B, T, D), k.reshape(B, S, D), v.reshape(B, S, D),
                        src_mask, x, ca["wo"], ca["bo"], nheads)

    # sublayer 2: position-wise feed-forward (LN + FFN + residual fused;
    # the Decoder's final LayerNorm is fused here on the last layer).
    out = ffn_block(x.reshape(B * T, D), p["ln2_a"], p["ln2_b"],
                    p["ff_w1"], p["ff_b1"], p["ff_w2"], p["ff_b2"],
                    final_ln=final_ln)
    return out.reshape(B, T, D)


def decoder_forward(x, memory, src_mask, tgt_mask, params, nheads):
    # Masks are 1.0/0.0 (exact in bf16); cast once so every attention kernel
    # (2 per layer x N layers) moves half the mask bytes from HBM.
    src_mask = src_mask.astype(jnp.bfloat16)
    tgt_mask = tgt_mask.astype(jnp.bfloat16)
    layers = params["layers"]
    n = len(layers)
    if n == 0:
        B, T, D = x.shape
        out = layernorm_2d(x.reshape(B * T, D), params["norm_a"], params["norm_b"])
        return out.reshape(B, T, D)
    for i, layer_p in enumerate(layers):
        final_ln = (params["norm_a"], params["norm_b"]) if i == n - 1 else None
        x = decoder_layer(x, memory, src_mask, tgt_mask, layer_p, nheads,
                          final_ln=final_ln)
    return x


# ------------------------------ parameters --------------------------------- #

def init_params(key, d_model, d_ff, h, n_layers):
    keys = iter(jax.random.split(key, 128))

    def dense(din, dout):
        # Weights stored in bf16 (MXU-native, half the DMA / VMEM); biases and
        # LayerNorm params stay f32 (added / applied after f32 accumulation).
        w = (jax.random.normal(next(keys), (din, dout), jnp.float32) * 0.05
             ).astype(jnp.bfloat16)
        b = jnp.zeros((dout,), jnp.float32)
        return w, b

    def attn_params():
        wq, bq = dense(d_model, d_model)
        wk, bk = dense(d_model, d_model)
        wv, bv = dense(d_model, d_model)
        wo, bo = dense(d_model, d_model)
        return dict(wq=wq, bq=bq, wk=wk, bk=bk, wv=wv, bv=bv, wo=wo, bo=bo)

    layers = []
    for _ in range(n_layers):
        w1, b1 = dense(d_model, d_ff)
        w2, b2 = dense(d_ff, d_model)
        layers.append(dict(
            self_attn=attn_params(),
            src_attn=attn_params(),
            ff_w1=w1, ff_b1=b1, ff_w2=w2, ff_b2=b2,
            ln0_a=jnp.ones((d_model,), jnp.float32), ln0_b=jnp.zeros((d_model,), jnp.float32),
            ln1_a=jnp.ones((d_model,), jnp.float32), ln1_b=jnp.zeros((d_model,), jnp.float32),
            ln2_a=jnp.ones((d_model,), jnp.float32), ln2_b=jnp.zeros((d_model,), jnp.float32),
        ))
    return dict(layers=layers,
                norm_a=jnp.ones((d_model,), jnp.float32),
                norm_b=jnp.zeros((d_model,), jnp.float32))


# --------------------------------- main ------------------------------------ #

if __name__ == "__main__":
    B, T, S, D, D_FF, H, N = 2, 8, 8, 32, 64, 2, 2

    key = jax.random.PRNGKey(0)
    kx, km, kp = jax.random.split(key, 3)

    x = jax.random.normal(kx, (B, T, D), jnp.float32)
    memory = jax.random.normal(km, (B, S, D), jnp.float32)

    # tgt_mask: causal (subsequent) mask; src_mask: all-ones. 1.0 = attend.
    tgt_mask = jnp.broadcast_to(jnp.tril(jnp.ones((T, T), jnp.float32))[None], (B, T, T))
    src_mask = jnp.ones((B, T, S), jnp.float32)

    params = init_params(kp, D, D_FF, H, N)

    fwd = jax.jit(lambda x, m, sm, tm: decoder_forward(x, m, sm, tm, params, H))
    out = fwd(x, memory, src_mask, tgt_mask)
    jax.block_until_ready(out)

    assert out.shape == (B, T, D)
    print("KERNEL_OK")
</pallas_src>

<mosaic_0001>
module attributes {stable_mosaic.version = 11 : i64} {
  func.func @kernel(%arg0: i32, %arg1: i32, %arg2: memref<1x8x32xbf16, #tpu.memory_space<vmem>>, %arg3: memref<1x8x32xbf16, #tpu.memory_space<vmem>>, %arg4: memref<1x8x32xbf16, #tpu.memory_space<vmem>>, %arg5: memref<1x8x8xbf16, #tpu.memory_space<vmem>>, %arg6: memref<1x8x32xf32, #tpu.memory_space<vmem>>, %arg7: memref<32x32xbf16, #tpu.memory_space<vmem>>, %arg8: memref<1x32xf32, #tpu.memory_space<vmem>>, %arg9: memref<1x8x32xf32, #tpu.memory_space<vmem>>, %arg10: memref<8x32xf32, #tpu.memory_space<vmem>>) attributes {dimension_semantics = [#tpu.dimension_semantics<parallel>, #tpu.dimension_semantics<parallel>], iteration_bounds = array<i64: 2, 1>, scalar_prefetch = 0 : i64, scratch_operands = 1 : i64, tpu.core_type = #tpu.core_type<tc>, window_params = [{transform_indices = @transform_0, window_bounds = array<i64: 1, 8, 32>}, {transform_indices = @transform_1, window_bounds = array<i64: 1, 8, 32>}, {transform_indices = @transform_2, window_bounds = array<i64: 1, 8, 32>}, {transform_indices = @transform_3, window_bounds = array<i64: 1, 8, 8>}, {transform_indices = @transform_4, window_bounds = array<i64: 1, 8, 32>}, {pipeline_mode = #tpu.pipeline_mode<synchronous>, transform_indices = @transform_5, window_bounds = array<i64: 32, 32>}, {pipeline_mode = #tpu.pipeline_mode<synchronous>, transform_indices = @transform_6, window_bounds = array<i64: 1, 32>}, {transform_indices = @transform_7, window_bounds = array<i64: 1, 8, 32>}]} {
    %c0 = arith.constant 0 : index
    %c0_0 = arith.constant 0 : index
    %c0_1 = arith.constant 0 : index
    %0 = vector.load %arg2[%c0, %c0_0, %c0_1] : memref<1x8x32xbf16, #tpu.memory_space<vmem>>, vector<1x8x32xbf16>
    %1 = vector.shape_cast %0 : vector<1x8x32xbf16> to vector<8x32xbf16>
    %c0_2 = arith.constant 0 : index
    %c0_3 = arith.constant 0 : index
    %c0_4 = arith.constant 0 : index
    %2 = vector.load %arg3[%c0_2, %c0_3, %c0_4] : memref<1x8x32xbf16, #tpu.memory_space<vmem>>, vector<1x8x32xbf16>
    %3 = vector.shape_cast %2 : vector<1x8x32xbf16> to vector<8x32xbf16>
    %c0_5 = arith.constant 0 : index
    %c0_6 = arith.constant 0 : index
    %c0_7 = arith.constant 0 : index
    %4 = vector.load %arg4[%c0_5, %c0_6, %c0_7] : memref<1x8x32xbf16, #tpu.memory_space<vmem>>, vector<1x8x32xbf16>
    %5 = vector.shape_cast %4 : vector<1x8x32xbf16> to vector<8x32xbf16>
    %c0_8 = arith.constant 0 : index
    %c0_9 = arith.constant 0 : index
    %c0_10 = arith.constant 0 : index
    %6 = vector.load %arg5[%c0_8, %c0_9, %c0_10] : memref<1x8x8xbf16, #tpu.memory_space<vmem>>, vector<1x8x8xbf16>
    %7 = vector.shape_cast %6 : vector<1x8x8xbf16> to vector<8x8xbf16>
    %8 = arith.extf %7 : vector<8x8xbf16> to vector<8x8xf32>
    %cst = arith.constant 1.000000e+00 : f32
    %9 = vector.broadcast %cst : f32 to vector<8x8xf32>
    %10 = arith.subf %8, %9 : vector<8x8xf32>
    %cst_11 = arith.constant 1.000000e+09 : f32
    %11 = vector.broadcast %cst_11 : f32 to vector<8x8xf32>
    %12 = arith.mulf %10, %11 : vector<8x8xf32>
    %13 = vector.extract_strided_slice %1 {offsets = [0, 0], sizes = [8, 16], strides = [1, 1]} : vector<8x32xbf16> to vector<8x16xbf16>
    %14 = vector.extract_strided_slice %3 {offsets = [0, 0], sizes = [8, 16], strides = [1, 1]} : vector<8x32xbf16> to vector<8x16xbf16>
    %15 = vector.extract_strided_slice %5 {offsets = [0, 0], sizes = [8, 16], strides = [1, 1]} : vector<8x32xbf16> to vector<8x16xbf16>
    %cst_12 = arith.constant dense<0.000000e+00> : vector<8x8xf32>
    %16 = tpu.matmul %13, %14, %cst_12 {dimension_numbers = #tpu.dot_dimension_numbers<[1], [1], [0], [0], [0, 0, 1, 0], [], []>} : vector<8x16xbf16>, vector<8x16xbf16>, vector<8x8xf32> -> vector<8x8xf32>
    %cst_13 = arith.constant 2.500000e-01 : f32
    %17 = vector.broadcast %cst_13 : f32 to vector<8x8xf32>
    %18 = arith.mulf %16, %17 : vector<8x8xf32>
    %19 = arith.addf %18, %12 : vector<8x8xf32>
    %cst_14 = arith.constant dense<0xFF800000> : vector<8xf32>
    %20 = vector.multi_reduction <maximumf>, %19, %cst_14 [1] : vector<8x8xf32> to vector<8xf32>
    %21 = vector.shape_cast %20 : vector<8xf32> to vector<8x1xf32>
    %22 = vector.broadcast %21 : vector<8x1xf32> to vector<8x8xf32>
    %23 = arith.subf %19, %22 : vector<8x8xf32>
    %24 = math.exp %23 : vector<8x8xf32>
    %cst_15 = arith.constant dense<0.000000e+00> : vector<8xf32>
    %25 = vector.multi_reduction <add>, %24, %cst_15 [1] : vector<8x8xf32> to vector<8xf32>
    %26 = vector.shape_cast %25 : vector<8xf32> to vector<8x1xf32>
    %27 = tpu.reciprocal %26 {approx = true} : vector<8x1xf32> -> vector<8x1xf32>
    %28 = vector.broadcast %27 : vector<8x1xf32> to vector<8x8xf32>
    %29 = arith.mulf %24, %28 : vector<8x8xf32>
    %30 = arith.truncf %29 : vector<8x8xf32> to vector<8x8xbf16>
    %cst_16 = arith.constant dense<0.000000e+00> : vector<8x16xf32>
    %31 = tpu.matmul %30, %15, %cst_16 {dimension_numbers = #tpu.dot_dimension_numbers<[1], [0], [0], [1], [0, 0, 1, 1], [], []>} : vector<8x8xbf16>, vector<8x16xbf16>, vector<8x16xf32> -> vector<8x16xf32>
    %c0_17 = arith.constant 0 : index
    %c0_18 = arith.constant 0 : index
    %32 = vector.load %arg10[%c0_17, %c0_18] : memref<8x32xf32, #tpu.memory_space<vmem>>, vector<8x16xf32>
    tpu.vector_store %arg10[%c0_17, %c0_18], %31 {strides = array<i32>} : memref<8x32xf32, #tpu.memory_space<vmem>>, vector<8x16xf32>,
    %33 = vector.extract_strided_slice %1 {offsets = [0, 16], sizes = [8, 16], strides = [1, 1]} : vector<8x32xbf16> to vector<8x16xbf16>
    %34 = vector.extract_strided_slice %3 {offsets = [0, 16], sizes = [8, 16], strides = [1, 1]} : vector<8x32xbf16> to vector<8x16xbf16>
    %35 = vector.extract_strided_slice %5 {offsets = [0, 16], sizes = [8, 16], strides = [1, 1]} : vector<8x32xbf16> to vector<8x16xbf16>
    %cst_19 = arith.constant dense<0.000000e+00> : vector<8x8xf32>
    %36 = tpu.matmul %33, %34, %cst_19 {dimension_numbers = #tpu.dot_dimension_numbers<[1], [1], [0], [0], [0, 0, 1, 0], [], []>} : vector<8x16xbf16>, vector<8x16xbf16>, vector<8x8xf32> -> vector<8x8xf32>
    %cst_20 = arith.constant 2.500000e-01 : f32
    %37 = vector.broadcast %cst_20 : f32 to vector<8x8xf32>
    %38 = arith.mulf %36, %37 : vector<8x8xf32>
    %39 = arith.addf %38, %12 : vector<8x8xf32>
    %cst_21 = arith.constant dense<0xFF800000> : vector<8xf32>
    %40 = vector.multi_reduction <maximumf>, %39, %cst_21 [1] : vector<8x8xf32> to vector<8xf32>
    %41 = vector.shape_cast %40 : vector<8xf32> to vector<8x1xf32>
    %42 = vector.broadcast %41 : vector<8x1xf32> to vector<8x8xf32>
    %43 = arith.subf %39, %42 : vector<8x8xf32>
    %44 = math.exp %43 : vector<8x8xf32>
    %cst_22 = arith.constant dense<0.000000e+00> : vector<8xf32>
    %45 = vector.multi_reduction <add>, %44, %cst_22 [1] : vector<8x8xf32> to vector<8xf32>
    %46 = vector.shape_cast %45 : vector<8xf32> to vector<8x1xf32>
    %47 = tpu.reciprocal %46 {approx = true} : vector<8x1xf32> -> vector<8x1xf32>
    %48 = vector.broadcast %47 : vector<8x1xf32> to vector<8x8xf32>
    %49 = arith.mulf %44, %48 : vector<8x8xf32>
    %50 = arith.truncf %49 : vector<8x8xf32> to vector<8x8xbf16>
    %cst_23 = arith.constant dense<0.000000e+00> : vector<8x16xf32>
    %51 = tpu.matmul %50, %35, %cst_23 {dimension_numbers = #tpu.dot_dimension_numbers<[1], [0], [0], [1], [0, 0, 1, 1], [], []>} : vector<8x8xbf16>, vector<8x16xbf16>, vector<8x16xf32> -> vector<8x16xf32>
    %c0_24 = arith.constant 0 : index
    %c16 = arith.constant 16 : index
    %52 = vector.load %arg10[%c0_24, %c16] : memref<8x32xf32, #tpu.memory_space<vmem>>, vector<8x16xf32>
    tpu.vector_store %arg10[%c0_24, %c16], %51 {strides = array<i32>} : memref<8x32xf32, #tpu.memory_space<vmem>>, vector<8x16xf32>,
    %c0_25 = arith.constant 0 : index
    %c0_26 = arith.constant 0 : index
    %c0_27 = arith.constant 0 : index
    %53 = vector.load %arg6[%c0_25, %c0_26, %c0_27] : memref<1x8x32xf32, #tpu.memory_space<vmem>>, vector<1x8x32xf32>
    %54 = vector.shape_cast %53 : vector<1x8x32xf32> to vector<8x32xf32>
    %c0_28 = arith.constant 0 : index
    %c0_29 = arith.constant 0 : index
    %55 = vector.load %arg8[%c0_28, %c0_29] : memref<1x32xf32, #tpu.memory_space<vmem>>, vector<1x32xf32>
    %56 = vector.broadcast %55 : vector<1x32xf32> to vector<8x32xf32>
    %57 = arith.addf %54, %56 : vector<8x32xf32>
    %c0_30 = arith.constant 0 : index
    %c0_31 = arith.constant 0 : index
    %58 = vector.load %arg10[%c0_30, %c0_31] : memref<8x32xf32, #tpu.memory_space<vmem>>, vector<8x32xf32>
    %59 = arith.truncf %58 : vector<8x32xf32> to vector<8x32xbf16>
    %c0_32 = arith.constant 0 : index
    %c0_33 = arith.constant 0 : index
    %60 = vector.load %arg7[%c0_32, %c0_33] : memref<32x32xbf16, #tpu.memory_space<vmem>>, vector<32x32xbf16>
    %cst_34 = arith.constant dense<0.000000e+00> : vector<8x32xf32>
    %61 = tpu.matmul %59, %60, %cst_34 {dimension_numbers = #tpu.dot_dimension_numbers<[1], [0], [0], [1], [0, 0, 1, 1], [], []>} : vector<8x32xbf16>, vector<32x32xbf16>, vector<8x32xf32> -> vector<8x32xf32>
    %62 = arith.addf %57, %61 : vector<8x32xf32>
    %c0_35 = arith.constant 0 : index
    %c0_36 = arith.constant 0 : index
    %c0_37 = arith.constant 0 : index
    %63 = vector.load %arg9[%c0_35, %c0_36, %c0_37] : memref<1x8x32xf32, #tpu.memory_space<vmem>>, vector<1x8x32xf32>
    %64 = vector.shape_cast %63 : vector<1x8x32xf32> to vector<8x32xf32>
    %65 = vector.shape_cast %62 : vector<8x32xf32> to vector<1x8x32xf32>
    tpu.vector_store %arg9[%c0_35, %c0_36, %c0_37], %65 {strides = array<i32>} : memref<1x8x32xf32, #tpu.memory_space<vmem>>, vector<1x8x32xf32>,
    return
  }
  func.func @transform_0(%arg0: i32, %arg1: i32) -> (i32, i32, i32) {
    %c0_i32 = arith.constant 0 : i32
    %c0_i32_0 = arith.constant 0 : i32
    return %arg0, %arg1, %c0_i32 : i32, i32, i32
  }
  func.func @transform_1(%arg0: i32, %arg1: i32) -> (i32, i32, i32) {
    %c0_i32 = arith.constant 0 : i32
    %c0_i32_0 = arith.constant 0 : i32
    %c0_i32_1 = arith.constant 0 : i32
    return %arg0, %c0_i32, %c0_i32_0 : i32, i32, i32
  }
  func.func @transform_2(%arg0: i32, %arg1: i32) -> (i32, i32, i32) {
    %c0_i32 = arith.constant 0 : i32
    %c0_i32_0 = arith.constant 0 : i32
    %c0_i32_1 = arith.constant 0 : i32
    return %arg0, %c0_i32, %c0_i32_0 : i32, i32, i32
  }
  func.func @transform_3(%arg0: i32, %arg1: i32) -> (i32, i32, i32) {
    %c0_i32 = arith.constant 0 : i32
    %c0_i32_0 = arith.constant 0 : i32
    return %arg0, %arg1, %c0_i32 : i32, i32, i32
  }
  func.func @transform_4(%arg0: i32, %arg1: i32) -> (i32, i32, i32) {
    %c0_i32 = arith.constant 0 : i32
    %c0_i32_0 = arith.constant 0 : i32
    return %arg0, %arg1, %c0_i32 : i32, i32, i32
  }
  func.func @transform_5(%arg0: i32, %arg1: i32) -> (i32, i32) {
    %c0_i32 = arith.constant 0 : i32
    %c0_i32_0 = arith.constant 0 : i32
    %c0_i32_1 = arith.constant 0 : i32
    return %c0_i32, %c0_i32_0 : i32, i32
  }
  func.func @transform_6(%arg0: i32, %arg1: i32) -> (i32, i32) {
    %c0_i32 = arith.constant 0 : i32
    %c0_i32_0 = arith.constant 0 : i32
    %c0_i32_1 = arith.constant 0 : i32
    return %c0_i32, %c0_i32_0 : i32, i32
  }
  func.func @transform_7(%arg0: i32, %arg1: i32) -> (i32, i32, i32) {
    %c0_i32 = arith.constant 0 : i32
    %c0_i32_0 = arith.constant 0 : i32
    return %arg0, %arg1, %c0_i32 : i32, i32, i32
  }
}

module attributes {stable_mosaic.version = 11 : i64} {
  func.func @kernel(%arg0: i32, %arg1: memref<16x32xf32, #tpu.memory_space<vmem>>, %arg2: memref<1x32xf32, #tpu.memory_space<vmem>>, %arg3: memref<1x32xf32, #tpu.memory_space<vmem>>, %arg4: memref<32x32xbf16, #tpu.memory_space<vmem>>, %arg5: memref<32x32xbf16, #tpu.memory_space<vmem>>, %arg6: memref<32x32xbf16, #tpu.memory_space<vmem>>, %arg7: memref<1x32xf32, #tpu.memory_space<vmem>>, %arg8: memref<1x32xf32, #tpu.memory_space<vmem>>, %arg9: memref<1x32xf32, #tpu.memory_space<vmem>>, %arg10: memref<16x32xbf16, #tpu.memory_space<vmem>>, %arg11: memref<16x32xbf16, #tpu.memory_space<vmem>>, %arg12: memref<16x32xbf16, #tpu.memory_space<vmem>>) attributes {dimension_semantics = [#tpu.dimension_semantics<parallel>], iteration_bounds = array<i64: 1>, scalar_prefetch = 0 : i64, scratch_operands = 0 : i64, tpu.core_type = #tpu.core_type<tc>, window_params = [{transform_indices = @transform_0, window_bounds = array<i64: 16, 32>}, {pipeline_mode = #tpu.pipeline_mode<synchronous>, transform_indices = @transform_1, window_bounds = array<i64: 1, 32>}, {pipeline_mode = #tpu.pipeline_mode<synchronous>, transform_indices = @transform_2, window_bounds = array<i64: 1, 32>}, {pipeline_mode = #tpu.pipeline_mode<synchronous>, transform_indices = @transform_3, window_bounds = array<i64: 32, 32>}, {pipeline_mode = #tpu.pipeline_mode<synchronous>, transform_indices = @transform_4, window_bounds = array<i64: 32, 32>}, {pipeline_mode = #tpu.pipeline_mode<synchronous>, transform_indices = @transform_5, window_bounds = array<i64: 32, 32>}, {pipeline_mode = #tpu.pipeline_mode<synchronous>, transform_indices = @transform_6, window_bounds = array<i64: 1, 32>}, {pipeline_mode = #tpu.pipeline_mode<synchronous>, transform_indices = @transform_7, window_bounds = array<i64: 1, 32>}, {pipeline_mode = #tpu.pipeline_mode<synchronous>, transform_indices = @transform_8, window_bounds = array<i64: 1, 32>}, {transform_indices = @transform_9, window_bounds = array<i64: 16, 32>}, {transform_indices = @transform_10, window_bounds = array<i64: 16, 32>}, {transform_indices = @transform_11, window_bounds = array<i64: 16, 32>}]} {
    %c0 = arith.constant 0 : index
    %c0_0 = arith.constant 0 : index
    %0 = vector.load %arg1[%c0, %c0_0] : memref<16x32xf32, #tpu.memory_space<vmem>>, vector<16x32xf32>
    %c0_1 = arith.constant 0 : index
    %c0_2 = arith.constant 0 : index
    %1 = vector.load %arg2[%c0_1, %c0_2] : memref<1x32xf32, #tpu.memory_space<vmem>>, vector<1x32xf32>
    %c0_3 = arith.constant 0 : index
    %c0_4 = arith.constant 0 : index
    %2 = vector.load %arg3[%c0_3, %c0_4] : memref<1x32xf32, #tpu.memory_space<vmem>>, vector<1x32xf32>
    %cst = arith.constant dense<0.000000e+00> : vector<16xf32>
    %3 = vector.multi_reduction <add>, %0, %cst [1] : vector<16x32xf32> to vector<16xf32>
    %4 = vector.shape_cast %3 : vector<16xf32> to vector<16x1xf32>
    %cst_5 = arith.constant 3.200000e+01 : f32
    %5 = vector.broadcast %cst_5 : f32 to vector<16x1xf32>
    %6 = arith.divf %4, %5 : vector<16x1xf32>
    %7 = vector.broadcast %6 : vector<16x1xf32> to vector<16x32xf32>
    %8 = arith.subf %0, %7 : vector<16x32xf32>
    %9 = arith.mulf %8, %8 : vector<16x32xf32>
    %cst_6 = arith.constant dense<0.000000e+00> : vector<16xf32>
    %10 = vector.multi_reduction <add>, %9, %cst_6 [1] : vector<16x32xf32> to vector<16xf32>
    %11 = vector.shape_cast %10 : vector<16xf32> to vector<16x1xf32>
    %cst_7 = arith.constant 0.0322580636 : f32
    %12 = vector.broadcast %cst_7 : f32 to vector<16x1xf32>
    %13 = arith.mulf %11, %12 : vector<16x1xf32>
    %14 = math.sqrt %13 : vector<16x1xf32>
    %cst_8 = arith.constant 9.99999997E-7 : f32
    %15 = vector.broadcast %cst_8 : f32 to vector<16x1xf32>
    %16 = arith.addf %14, %15 : vector<16x1xf32>
    %17 = tpu.reciprocal %16 {approx = true} : vector<16x1xf32> -> vector<16x1xf32>
    %18 = vector.broadcast %1 : vector<1x32xf32> to vector<16x32xf32>
    %19 = arith.mulf %18, %8 : vector<16x32xf32>
    %20 = vector.broadcast %17 : vector<16x1xf32> to vector<16x32xf32>
    %21 = arith.mulf %19, %20 : vector<16x32xf32>
    %22 = vector.broadcast %2 : vector<1x32xf32> to vector<16x32xf32>
    %23 = arith.addf %21, %22 : vector<16x32xf32>
    %24 = arith.truncf %23 : vector<16x32xf32> to vector<16x32xbf16>
    %c0_9 = arith.constant 0 : index
    %c0_10 = arith.constant 0 : index
    %25 = vector.load %arg4[%c0_9, %c0_10] : memref<32x32xbf16, #tpu.memory_space<vmem>>, vector<32x32xbf16>
    %cst_11 = arith.constant dense<0.000000e+00> : vector<16x32xf32>
    %26 = tpu.matmul %24, %25, %cst_11 {dimension_numbers = #tpu.dot_dimension_numbers<[1], [0], [0], [1], [0, 0, 1, 1], [], []>} : vector<16x32xbf16>, vector<32x32xbf16>, vector<16x32xf32> -> vector<16x32xf32>
    %c0_12 = arith.constant 0 : index
    %c0_13 = arith.constant 0 : index
    %27 = vector.load %arg7[%c0_12, %c0_13] : memref<1x32xf32, #tpu.memory_space<vmem>>, vector<1x32xf32>
    %28 = vector.broadcast %27 : vector<1x32xf32> to vector<16x32xf32>
    %29 = arith.addf %26, %28 : vector<16x32xf32>
    %30 = arith.truncf %29 : vector<16x32xf32> to vector<16x32xbf16>
    %c0_14 = arith.constant 0 : index
    %c0_15 = arith.constant 0 : index
    %31 = vector.load %arg10[%c0_14, %c0_15] : memref<16x32xbf16, #tpu.memory_space<vmem>>, vector<16x32xbf16>
    tpu.vector_store %arg10[%c0_14, %c0_15], %30 {strides = array<i32>} : memref<16x32xbf16, #tpu.memory_space<vmem>>, vector<16x32xbf16>,
    %c0_16 = arith.constant 0 : index
    %c0_17 = arith.constant 0 : index
    %32 = vector.load %arg5[%c0_16, %c0_17] : memref<32x32xbf16, #tpu.memory_space<vmem>>, vector<32x32xbf16>
    %cst_18 = arith.constant dense<0.000000e+00> : vector<16x32xf32>
    %33 = tpu.matmul %24, %32, %cst_18 {dimension_numbers = #tpu.dot_dimension_numbers<[1], [0], [0], [1], [0, 0, 1, 1], [], []>} : vector<16x32xbf16>, vector<32x32xbf16>, vector<16x32xf32> -> vector<16x32xf32>
    %c0_19 = arith.constant 0 : index
    %c0_20 = arith.constant 0 : index
    %34 = vector.load %arg8[%c0_19, %c0_20] : memref<1x32xf32, #tpu.memory_space<vmem>>, vector<1x32xf32>
    %35 = vector.broadcast %34 : vector<1x32xf32> to vector<16x32xf32>
    %36 = arith.addf %33, %35 : vector<16x32xf32>
    %37 = arith.truncf %36 : vector<16x32xf32> to vector<16x32xbf16>
    %c0_21 = arith.constant 0 : index
    %c0_22 = arith.constant 0 : index
    %38 = vector.load %arg11[%c0_21, %c0_22] : memref<16x32xbf16, #tpu.memory_space<vmem>>, vector<16x32xbf16>
    tpu.vector_store %arg11[%c0_21, %c0_22], %37 {strides = array<i32>} : memref<16x32xbf16, #tpu.memory_space<vmem>>, vector<16x32xbf16>,
    %c0_23 = arith.constant 0 : index
    %c0_24 = arith.constant 0 : index
    %39 = vector.load %arg6[%c0_23, %c0_24] : memref<32x32xbf16, #tpu.memory_space<vmem>>, vector<32x32xbf16>
    %cst_25 = arith.constant dense<0.000000e+00> : vector<16x32xf32>
    %40 = tpu.matmul %24, %39, %cst_25 {dimension_numbers = #tpu.dot_dimension_numbers<[1], [0], [0], [1], [0, 0, 1, 1], [], []>} : vector<16x32xbf16>, vector<32x32xbf16>, vector<16x32xf32> -> vector<16x32xf32>
    %c0_26 = arith.constant 0 : index
    %c0_27 = arith.constant 0 : index
    %41 = vector.load %arg9[%c0_26, %c0_27] : memref<1x32xf32, #tpu.memory_space<vmem>>, vector<1x32xf32>
    %42 = vector.broadcast %41 : vector<1x32xf32> to vector<16x32xf32>
    %43 = arith.addf %40, %42 : vector<16x32xf32>
    %44 = arith.truncf %43 : vector<16x32xf32> to vector<16x32xbf16>
    %c0_28 = arith.constant 0 : index
    %c0_29 = arith.constant 0 : index
    %45 = vector.load %arg12[%c0_28, %c0_29] : memref<16x32xbf16, #tpu.memory_space<vmem>>, vector<16x32xbf16>
    tpu.vector_store %arg12[%c0_28, %c0_29], %44 {strides = array<i32>} : memref<16x32xbf16, #tpu.memory_space<vmem>>, vector<16x32xbf16>,
    return
  }
  func.func @transform_0(%arg0: i32) -> (i32, i32) {
    %c0_i32 = arith.constant 0 : i32
    %c0_i32_0 = arith.constant 0 : i32
    return %arg0, %c0_i32 : i32, i32
  }
  func.func @transform_1(%arg0: i32) -> (i32, i32) {
    %c0_i32 = arith.constant 0 : i32
    %c0_i32_0 = arith.constant 0 : i32
    %c0_i32_1 = arith.constant 0 : i32
    return %c0_i32, %c0_i32_0 : i32, i32
  }
  func.func @transform_2(%arg0: i32) -> (i32, i32) {
    %c0_i32 = arith.constant 0 : i32
    %c0_i32_0 = arith.constant 0 : i32
    %c0_i32_1 = arith.constant 0 : i32
    return %c0_i32, %c0_i32_0 : i32, i32
  }
  func.func @transform_3(%arg0: i32) -> (i32, i32) {
    %c0_i32 = arith.constant 0 : i32
    %c0_i32_0 = arith.constant 0 : i32
    %c0_i32_1 = arith.constant 0 : i32
    return %c0_i32, %c0_i32_0 : i32, i32
  }
  func.func @transform_4(%arg0: i32) -> (i32, i32) {
    %c0_i32 = arith.constant 0 : i32
    %c0_i32_0 = arith.constant 0 : i32
    %c0_i32_1 = arith.constant 0 : i32
    return %c0_i32, %c0_i32_0 : i32, i32
  }
  func.func @transform_5(%arg0: i32) -> (i32, i32) {
    %c0_i32 = arith.constant 0 : i32
    %c0_i32_0 = arith.constant 0 : i32
    %c0_i32_1 = arith.constant 0 : i32
    return %c0_i32, %c0_i32_0 : i32, i32
  }
  func.func @transform_6(%arg0: i32) -> (i32, i32) {
    %c0_i32 = arith.constant 0 : i32
    %c0_i32_0 = arith.constant 0 : i32
    %c0_i32_1 = arith.constant 0 : i32
    return %c0_i32, %c0_i32_0 : i32, i32
  }
  func.func @transform_7(%arg0: i32) -> (i32, i32) {
    %c0_i32 = arith.constant 0 : i32
    %c0_i32_0 = arith.constant 0 : i32
    %c0_i32_1 = arith.constant 0 : i32
    return %c0_i32, %c0_i32_0 : i32, i32
  }
  func.func @transform_8(%arg0: i32) -> (i32, i32) {
    %c0_i32 = arith.constant 0 : i32
    %c0_i32_0 = arith.constant 0 : i32
    %c0_i32_1 = arith.constant 0 : i32
    return %c0_i32, %c0_i32_0 : i32, i32
  }
  func.func @transform_9(%arg0: i32) -> (i32, i32) {
    %c0_i32 = arith.constant 0 : i32
    %c0_i32_0 = arith.constant 0 : i32
    return %arg0, %c0_i32 : i32, i32
  }
  func.func @transform_10(%arg0: i32) -> (i32, i32) {
    %c0_i32 = arith.constant 0 : i32
    %c0_i32_0 = arith.constant 0 : i32
    return %arg0, %c0_i32 : i32, i32
  }
  func.func @transform_11(%arg0: i32) -> (i32, i32) {
    %c0_i32 = arith.constant 0 : i32
    %c0_i32_0 = arith.constant 0 : i32
    return %arg0, %c0_i32 : i32, i32
  }
}

module attributes {stable_mosaic.version = 11 : i64} {
  func.func @kernel(%arg0: i32, %arg1: memref<16x32xf32, #tpu.memory_space<vmem>>, %arg2: memref<32x32xbf16, #tpu.memory_space<vmem>>, %arg3: memref<32x32xbf16, #tpu.memory_space<vmem>>, %arg4: memref<1x32xf32, #tpu.memory_space<vmem>>, %arg5: memref<1x32xf32, #tpu.memory_space<vmem>>, %arg6: memref<16x32xbf16, #tpu.memory_space<vmem>>, %arg7: memref<16x32xbf16, #tpu.memory_space<vmem>>) attributes {dimension_semantics = [#tpu.dimension_semantics<parallel>], iteration_bounds = array<i64: 1>, scalar_prefetch = 0 : i64, scratch_operands = 0 : i64, tpu.core_type = #tpu.core_type<tc>, window_params = [{transform_indices = @transform_0, window_bounds = array<i64: 16, 32>}, {pipeline_mode = #tpu.pipeline_mode<synchronous>, transform_indices = @transform_1, window_bounds = array<i64: 32, 32>}, {pipeline_mode = #tpu.pipeline_mode<synchronous>, transform_indices = @transform_2, window_bounds = array<i64: 32, 32>}, {pipeline_mode = #tpu.pipeline_mode<synchronous>, transform_indices = @transform_3, window_bounds = array<i64: 1, 32>}, {pipeline_mode = #tpu.pipeline_mode<synchronous>, transform_indices = @transform_4, window_bounds = array<i64: 1, 32>}, {transform_indices = @transform_5, window_bounds = array<i64: 16, 32>}, {transform_indices = @transform_6, window_bounds = array<i64: 16, 32>}]} {
    %c0 = arith.constant 0 : index
    %c0_0 = arith.constant 0 : index
    %0 = vector.load %arg1[%c0, %c0_0] : memref<16x32xf32, #tpu.memory_space<vmem>>, vector<16x32xf32>
    %1 = arith.truncf %0 : vector<16x32xf32> to vector<16x32xbf16>
    %c0_1 = arith.constant 0 : index
    %c0_2 = arith.constant 0 : index
    %2 = vector.load %arg2[%c0_1, %c0_2] : memref<32x32xbf16, #tpu.memory_space<vmem>>, vector<32x32xbf16>
    %cst = arith.constant dense<0.000000e+00> : vector<16x32xf32>
    %3 = tpu.matmul %1, %2, %cst {dimension_numbers = #tpu.dot_dimension_numbers<[1], [0], [0], [1], [0, 0, 1, 1], [], []>} : vector<16x32xbf16>, vector<32x32xbf16>, vector<16x32xf32> -> vector<16x32xf32>
    %c0_3 = arith.constant 0 : index
    %c0_4 = arith.constant 0 : index
    %4 = vector.load %arg4[%c0_3, %c0_4] : memref<1x32xf32, #tpu.memory_space<vmem>>, vector<1x32xf32>
    %5 = vector.broadcast %4 : vector<1x32xf32> to vector<16x32xf32>
    %6 = arith.addf %3, %5 : vector<16x32xf32>
    %7 = arith.truncf %6 : vector<16x32xf32> to vector<16x32xbf16>
    %c0_5 = arith.constant 0 : index
    %c0_6 = arith.constant 0 : index
    %8 = vector.load %arg6[%c0_5, %c0_6] : memref<16x32xbf16, #tpu.memory_space<vmem>>, vector<16x32xbf16>
    tpu.vector_store %arg6[%c0_5, %c0_6], %7 {strides = array<i32>} : memref<16x32xbf16, #tpu.memory_space<vmem>>, vector<16x32xbf16>,
    %c0_7 = arith.constant 0 : index
    %c0_8 = arith.constant 0 : index
    %9 = vector.load %arg3[%c0_7, %c0_8] : memref<32x32xbf16, #tpu.memory_space<vmem>>, vector<32x32xbf16>
    %cst_9 = arith.constant dense<0.000000e+00> : vector<16x32xf32>
    %10 = tpu.matmul %1, %9, %cst_9 {dimension_numbers = #tpu.dot_dimension_numbers<[1], [0], [0], [1], [0, 0, 1, 1], [], []>} : vector<16x32xbf16>, vector<32x32xbf16>, vector<16x32xf32> -> vector<16x32xf32>
    %c0_10 = arith.constant 0 : index
    %c0_11 = arith.constant 0 : index
    %11 = vector.load %arg5[%c0_10, %c0_11] : memref<1x32xf32, #tpu.memory_space<vmem>>, vector<1x32xf32>
    %12 = vector.broadcast %11 : vector<1x32xf32> to vector<16x32xf32>
    %13 = arith.addf %10, %12 : vector<16x32xf32>
    %14 = arith.truncf %13 : vector<16x32xf32> to vector<16x32xbf16>
    %c0_12 = arith.constant 0 : index
    %c0_13 = arith.constant 0 : index
    %15 = vector.load %arg7[%c0_12, %c0_13] : memref<16x32xbf16, #tpu.memory_space<vmem>>, vector<16x32xbf16>
    tpu.vector_store %arg7[%c0_12, %c0_13], %14 {strides = array<i32>} : memref<16x32xbf16, #tpu.memory_space<vmem>>, vector<16x32xbf16>,
    return
  }
  func.func @transform_0(%arg0: i32) -> (i32, i32) {
    %c0_i32 = arith.constant 0 : i32
    %c0_i32_0 = arith.constant 0 : i32
    return %arg0, %c0_i32 : i32, i32
  }
  func.func @transform_1(%arg0: i32) -> (i32, i32) {
    %c0_i32 = arith.constant 0 : i32
    %c0_i32_0 = arith.constant 0 : i32
    %c0_i32_1 = arith.constant 0 : i32
    return %c0_i32, %c0_i32_0 : i32, i32
  }
  func.func @transform_2(%arg0: i32) -> (i32, i32) {
    %c0_i32 = arith.constant 0 : i32
    %c0_i32_0 = arith.constant 0 : i32
    %c0_i32_1 = arith.constant 0 : i32
    return %c0_i32, %c0_i32_0 : i32, i32
  }
  func.func @transform_3(%arg0: i32) -> (i32, i32) {
    %c0_i32 = arith.constant 0 : i32
    %c0_i32_0 = arith.constant 0 : i32
    %c0_i32_1 = arith.constant 0 : i32
    return %c0_i32, %c0_i32_0 : i32, i32
  }
  func.func @transform_4(%arg0: i32) -> (i32, i32) {
    %c0_i32 = arith.constant 0 : i32
    %c0_i32_0 = arith.constant 0 : i32
    %c0_i32_1 = arith.constant 0 : i32
    return %c0_i32, %c0_i32_0 : i32, i32
  }
  func.func @transform_5(%arg0: i32) -> (i32, i32) {
    %c0_i32 = arith.constant 0 : i32
    %c0_i32_0 = arith.constant 0 : i32
    return %arg0, %c0_i32 : i32, i32
  }
  func.func @transform_6(%arg0: i32) -> (i32, i32) {
    %c0_i32 = arith.constant 0 : i32
    %c0_i32_0 = arith.constant 0 : i32
    return %arg0, %c0_i32 : i32, i32
  }
}

module attributes {stable_mosaic.version = 11 : i64} {
  func.func @kernel(%arg0: i32, %arg1: memref<16x32xf32, #tpu.memory_space<vmem>>, %arg2: memref<1x32xf32, #tpu.memory_space<vmem>>, %arg3: memref<1x32xf32, #tpu.memory_space<vmem>>, %arg4: memref<32x32xbf16, #tpu.memory_space<vmem>>, %arg5: memref<1x32xf32, #tpu.memory_space<vmem>>, %arg6: memref<16x32xbf16, #tpu.memory_space<vmem>>) attributes {dimension_semantics = [#tpu.dimension_semantics<parallel>], iteration_bounds = array<i64: 1>, scalar_prefetch = 0 : i64, scratch_operands = 0 : i64, tpu.core_type = #tpu.core_type<tc>, window_params = [{transform_indices = @transform_0, window_bounds = array<i64: 16, 32>}, {pipeline_mode = #tpu.pipeline_mode<synchronous>, transform_indices = @transform_1, window_bounds = array<i64: 1, 32>}, {pipeline_mode = #tpu.pipeline_mode<synchronous>, transform_indices = @transform_2, window_bounds = array<i64: 1, 32>}, {pipeline_mode = #tpu.pipeline_mode<synchronous>, transform_indices = @transform_3, window_bounds = array<i64: 32, 32>}, {pipeline_mode = #tpu.pipeline_mode<synchronous>, transform_indices = @transform_4, window_bounds = array<i64: 1, 32>}, {transform_indices = @transform_5, window_bounds = array<i64: 16, 32>}]} {
    %c0 = arith.constant 0 : index
    %c0_0 = arith.constant 0 : index
    %0 = vector.load %arg1[%c0, %c0_0] : memref<16x32xf32, #tpu.memory_space<vmem>>, vector<16x32xf32>
    %c0_1 = arith.constant 0 : index
    %c0_2 = arith.constant 0 : index
    %1 = vector.load %arg2[%c0_1, %c0_2] : memref<1x32xf32, #tpu.memory_space<vmem>>, vector<1x32xf32>
    %c0_3 = arith.constant 0 : index
    %c0_4 = arith.constant 0 : index
    %2 = vector.load %arg3[%c0_3, %c0_4] : memref<1x32xf32, #tpu.memory_space<vmem>>, vector<1x32xf32>
    %cst = arith.constant dense<0.000000e+00> : vector<16xf32>
    %3 = vector.multi_reduction <add>, %0, %cst [1] : vector<16x32xf32> to vector<16xf32>
    %4 = vector.shape_cast %3 : vector<16xf32> to vector<16x1xf32>
    %cst_5 = arith.constant 3.200000e+01 : f32
    %5 = vector.broadcast %cst_5 : f32 to vector<16x1xf32>
    %6 = arith.divf %4, %5 : vector<16x1xf32>
    %7 = vector.broadcast %6 : vector<16x1xf32> to vector<16x32xf32>
    %8 = arith.subf %0, %7 : vector<16x32xf32>
    %9 = arith.mulf %8, %8 : vector<16x32xf32>
    %cst_6 = arith.constant dense<0.000000e+00> : vector<16xf32>
    %10 = vector.multi_reduction <add>, %9, %cst_6 [1] : vector<16x32xf32> to vector<16xf32>
    %11 = vector.shape_cast %10 : vector<16xf32> to vector<16x1xf32>
    %cst_7 = arith.constant 0.0322580636 : f32
    %12 = vector.broadcast %cst_7 : f32 to vector<16x1xf32>
    %13 = arith.mulf %11, %12 : vector<16x1xf32>
    %14 = math.sqrt %13 : vector<16x1xf32>
    %cst_8 = arith.constant 9.99999997E-7 : f32
    %15 = vector.broadcast %cst_8 : f32 to vector<16x1xf32>
    %16 = arith.addf %14, %15 : vector<16x1xf32>
    %17 = tpu.reciprocal %16 {approx = true} : vector<16x1xf32> -> vector<16x1xf32>
    %18 = vector.broadcast %1 : vector<1x32xf32> to vector<16x32xf32>
    %19 = arith.mulf %18, %8 : vector<16x32xf32>
    %20 = vector.broadcast %17 : vector<16x1xf32> to vector<16x32xf32>
    %21 = arith.mulf %19, %20 : vector<16x32xf32>
    %22 = vector.broadcast %2 : vector<1x32xf32> to vector<16x32xf32>
    %23 = arith.addf %21, %22 : vector<16x32xf32>
    %24 = arith.truncf %23 : vector<16x32xf32> to vector<16x32xbf16>
    %c0_9 = arith.constant 0 : index
    %c0_10 = arith.constant 0 : index
    %25 = vector.load %arg4[%c0_9, %c0_10] : memref<32x32xbf16, #tpu.memory_space<vmem>>, vector<32x32xbf16>
    %cst_11 = arith.constant dense<0.000000e+00> : vector<16x32xf32>
    %26 = tpu.matmul %24, %25, %cst_11 {dimension_numbers = #tpu.dot_dimension_numbers<[1], [0], [0], [1], [0, 0, 1, 1], [], []>} : vector<16x32xbf16>, vector<32x32xbf16>, vector<16x32xf32> -> vector<16x32xf32>
    %c0_12 = arith.constant 0 : index
    %c0_13 = arith.constant 0 : index
    %27 = vector.load %arg5[%c0_12, %c0_13] : memref<1x32xf32, #tpu.memory_space<vmem>>, vector<1x32xf32>
    %28 = vector.broadcast %27 : vector<1x32xf32> to vector<16x32xf32>
    %29 = arith.addf %26, %28 : vector<16x32xf32>
    %30 = arith.truncf %29 : vector<16x32xf32> to vector<16x32xbf16>
    %c0_14 = arith.constant 0 : index
    %c0_15 = arith.constant 0 : index
    %31 = vector.load %arg6[%c0_14, %c0_15] : memref<16x32xbf16, #tpu.memory_space<vmem>>, vector<16x32xbf16>
    tpu.vector_store %arg6[%c0_14, %c0_15], %30 {strides = array<i32>} : memref<16x32xbf16, #tpu.memory_space<vmem>>, vector<16x32xbf16>,
    return
  }
  func.func @transform_0(%arg0: i32) -> (i32, i32) {
    %c0_i32 = arith.constant 0 : i32
    %c0_i32_0 = arith.constant 0 : i32
    return %arg0, %c0_i32 : i32, i32
  }
  func.func @transform_1(%arg0: i32) -> (i32, i32) {
    %c0_i32 = arith.constant 0 : i32
    %c0_i32_0 = arith.constant 0 : i32
    %c0_i32_1 = arith.constant 0 : i32
    return %c0_i32, %c0_i32_0 : i32, i32
  }
  func.func @transform_2(%arg0: i32) -> (i32, i32) {
    %c0_i32 = arith.constant 0 : i32
    %c0_i32_0 = arith.constant 0 : i32
    %c0_i32_1 = arith.constant 0 : i32
    return %c0_i32, %c0_i32_0 : i32, i32
  }
  func.func @transform_3(%arg0: i32) -> (i32, i32) {
    %c0_i32 = arith.constant 0 : i32
    %c0_i32_0 = arith.constant 0 : i32
    %c0_i32_1 = arith.constant 0 : i32
    return %c0_i32, %c0_i32_0 : i32, i32
  }
  func.func @transform_4(%arg0: i32) -> (i32, i32) {
    %c0_i32 = arith.constant 0 : i32
    %c0_i32_0 = arith.constant 0 : i32
    %c0_i32_1 = arith.constant 0 : i32
    return %c0_i32, %c0_i32_0 : i32, i32
  }
  func.func @transform_5(%arg0: i32) -> (i32, i32) {
    %c0_i32 = arith.constant 0 : i32
    %c0_i32_0 = arith.constant 0 : i32
    return %arg0, %c0_i32 : i32, i32
  }
}

module attributes {stable_mosaic.version = 11 : i64} {
  func.func @kernel(%arg0: i32, %arg1: i32, %arg2: memref<1x8x32xbf16, #tpu.memory_space<vmem>>, %arg3: memref<1x8x32xbf16, #tpu.memory_space<vmem>>, %arg4: memref<1x8x32xbf16, #tpu.memory_space<vmem>>, %arg5: memref<1x8x8xbf16, #tpu.memory_space<vmem>>, %arg6: memref<1x8x32xf32, #tpu.memory_space<vmem>>, %arg7: memref<32x32xbf16, #tpu.memory_space<vmem>>, %arg8: memref<1x32xf32, #tpu.memory_space<vmem>>, %arg9: memref<1x8x32xf32, #tpu.memory_space<vmem>>, %arg10: memref<8x32xf32, #tpu.memory_space<vmem>>) attributes {dimension_semantics = [#tpu.dimension_semantics<parallel>, #tpu.dimension_semantics<parallel>], iteration_bounds = array<i64: 2, 1>, scalar_prefetch = 0 : i64, scratch_operands = 1 : i64, tpu.core_type = #tpu.core_type<tc>, window_params = [{transform_indices = @transform_0, window_bounds = array<i64: 1, 8, 32>}, {transform_indices = @transform_1, window_bounds = array<i64: 1, 8, 32>}, {transform_indices = @transform_2, window_bounds = array<i64: 1, 8, 32>}, {transform_indices = @transform_3, window_bounds = array<i64: 1, 8, 8>}, {transform_indices = @transform_4, window_bounds = array<i64: 1, 8, 32>}, {pipeline_mode = #tpu.pipeline_mode<synchronous>, transform_indices = @transform_5, window_bounds = array<i64: 32, 32>}, {pipeline_mode = #tpu.pipeline_mode<synchronous>, transform_indices = @transform_6, window_bounds = array<i64: 1, 32>}, {transform_indices = @transform_7, window_bounds = array<i64: 1, 8, 32>}]} {
    %c0 = arith.constant 0 : index
    %c0_0 = arith.constant 0 : index
    %c0_1 = arith.constant 0 : index
    %0 = vector.load %arg2[%c0, %c0_0, %c0_1] : memref<1x8x32xbf16, #tpu.memory_space<vmem>>, vector<1x8x32xbf16>
    %1 = vector.shape_cast %0 : vector<1x8x32xbf16> to vector<8x32xbf16>
    %c0_2 = arith.constant 0 : index
    %c0_3 = arith.constant 0 : index
    %c0_4 = arith.constant 0 : index
    %2 = vector.load %arg3[%c0_2, %c0_3, %c0_4] : memref<1x8x32xbf16, #tpu.memory_space<vmem>>, vector<1x8x32xbf16>
    %3 = vector.shape_cast %2 : vector<1x8x32xbf16> to vector<8x32xbf16>
    %c0_5 = arith.constant 0 : index
    %c0_6 = arith.constant 0 : index
    %c0_7 = arith.constant 0 : index
    %4 = vector.load %arg4[%c0_5, %c0_6, %c0_7] : memref<1x8x32xbf16, #tpu.memory_space<vmem>>, vector<1x8x32xbf16>
    %5 = vector.shape_cast %4 : vector<1x8x32xbf16> to vector<8x32xbf16>
    %c0_8 = arith.constant 0 : index
    %c0_9 = arith.constant 0 : index
    %c0_10 = arith.constant 0 : index
    %6 = vector.load %arg5[%c0_8, %c0_9, %c0_10] : memref<1x8x8xbf16, #tpu.memory_space<vmem>>, vector<1x8x8xbf16>
    %7 = vector.shape_cast %6 : vector<1x8x8xbf16> to vector<8x8xbf16>
    %8 = arith.extf %7 : vector<8x8xbf16> to vector<8x8xf32>
    %cst = arith.constant 1.000000e+00 : f32
    %9 = vector.broadcast %cst : f32 to vector<8x8xf32>
    %10 = arith.subf %8, %9 : vector<8x8xf32>
    %cst_11 = arith.constant 1.000000e+09 : f32
    %11 = vector.broadcast %cst_11 : f32 to vector<8x8xf32>
    %12 = arith.mulf %10, %11 : vector<8x8xf32>
    %13 = vector.extract_strided_slice %1 {offsets = [0, 0], sizes = [8, 16], strides = [1, 1]} : vector<8x32xbf16> to vector<8x16xbf16>
    %14 = vector.extract_strided_slice %3 {offsets = [0, 0], sizes = [8, 16], strides = [1, 1]} : vector<8x32xbf16> to vector<8x16xbf16>
    %15 = vector.extract_strided_slice %5 {offsets = [0, 0], sizes = [8, 16], strides = [1, 1]} : vector<8x32xbf16> to vector<8x16xbf16>
    %cst_12 = arith.constant dense<0.000000e+00> : vector<8x8xf32>
    %16 = tpu.matmul %13, %14, %cst_12 {dimension_numbers = #tpu.dot_dimension_numbers<[1], [1], [0], [0], [0, 0, 1, 0], [], []>} : vector<8x16xbf16>, vector<8x16xbf16>, vector<8x8xf32> -> vector<8x8xf32>
    %cst_13 = arith.constant 2.500000e-01 : f32
    %17 = vector.broadcast %cst_13 : f32 to vector<8x8xf32>
    %18 = arith.mulf %16, %17 : vector<8x8xf32>
    %19 = arith.addf %18, %12 : vector<8x8xf32>
    %cst_14 = arith.constant dense<0xFF800000> : vector<8xf32>
    %20 = vector.multi_reduction <maximumf>, %19, %cst_14 [1] : vector<8x8xf32> to vector<8xf32>
    %21 = vector.shape_cast %20 : vector<8xf32> to vector<8x1xf32>
    %22 = vector.broadcast %21 : vector<8x1xf32> to vector<8x8xf32>
    %23 = arith.subf %19, %22 : vector<8x8xf32>
    %24 = math.exp %23 : vector<8x8xf32>
    %cst_15 = arith.constant dense<0.000000e+00> : vector<8xf32>
    %25 = vector.multi_reduction <add>, %24, %cst_15 [1] : vector<8x8xf32> to vector<8xf32>
    %26 = vector.shape_cast %25 : vector<8xf32> to vector<8x1xf32>
    %27 = tpu.reciprocal %26 {approx = true} : vector<8x1xf32> -> vector<8x1xf32>
    %28 = vector.broadcast %27 : vector<8x1xf32> to vector<8x8xf32>
    %29 = arith.mulf %24, %28 : vector<8x8xf32>
    %30 = arith.truncf %29 : vector<8x8xf32> to vector<8x8xbf16>
    %cst_16 = arith.constant dense<0.000000e+00> : vector<8x16xf32>
    %31 = tpu.matmul %30, %15, %cst_16 {dimension_numbers = #tpu.dot_dimension_numbers<[1], [0], [0], [1], [0, 0, 1, 1], [], []>} : vector<8x8xbf16>, vector<8x16xbf16>, vector<8x16xf32> -> vector<8x16xf32>
    %c0_17 = arith.constant 0 : index
    %c0_18 = arith.constant 0 : index
    %32 = vector.load %arg10[%c0_17, %c0_18] : memref<8x32xf32, #tpu.memory_space<vmem>>, vector<8x16xf32>
    tpu.vector_store %arg10[%c0_17, %c0_18], %31 {strides = array<i32>} : memref<8x32xf32, #tpu.memory_space<vmem>>, vector<8x16xf32>,
    %33 = vector.extract_strided_slice %1 {offsets = [0, 16], sizes = [8, 16], strides = [1, 1]} : vector<8x32xbf16> to vector<8x16xbf16>
    %34 = vector.extract_strided_slice %3 {offsets = [0, 16], sizes = [8, 16], strides = [1, 1]} : vector<8x32xbf16> to vector<8x16xbf16>
    %35 = vector.extract_strided_slice %5 {offsets = [0, 16], sizes = [8, 16], strides = [1, 1]} : vector<8x32xbf16> to vector<8x16xbf16>
    %cst_19 = arith.constant dense<0.000000e+00> : vector<8x8xf32>
    %36 = tpu.matmul %33, %34, %cst_19 {dimension_numbers = #tpu.dot_dimension_numbers<[1], [1], [0], [0], [0, 0, 1, 0], [], []>} : vector<8x16xbf16>, vector<8x16xbf16>, vector<8x8xf32> -> vector<8x8xf32>
    %cst_20 = arith.constant 2.500000e-01 : f32
    %37 = vector.broadcast %cst_20 : f32 to vector<8x8xf32>
    %38 = arith.mulf %36, %37 : vector<8x8xf32>
    %39 = arith.addf %38, %12 : vector<8x8xf32>
    %cst_21 = arith.constant dense<0xFF800000> : vector<8xf32>
    %40 = vector.multi_reduction <maximumf>, %39, %cst_21 [1] : vector<8x8xf32> to vector<8xf32>
    %41 = vector.shape_cast %40 : vector<8xf32> to vector<8x1xf32>
    %42 = vector.broadcast %41 : vector<8x1xf32> to vector<8x8xf32>
    %43 = arith.subf %39, %42 : vector<8x8xf32>
    %44 = math.exp %43 : vector<8x8xf32>
    %cst_22 = arith.constant dense<0.000000e+00> : vector<8xf32>
    %45 = vector.multi_reduction <add>, %44, %cst_22 [1] : vector<8x8xf32> to vector<8xf32>
    %46 = vector.shape_cast %45 : vector<8xf32> to vector<8x1xf32>
    %47 = tpu.reciprocal %46 {approx = true} : vector<8x1xf32> -> vector<8x1xf32>
    %48 = vector.broadcast %47 : vector<8x1xf32> to vector<8x8xf32>
    %49 = arith.mulf %44, %48 : vector<8x8xf32>
    %50 = arith.truncf %49 : vector<8x8xf32> to vector<8x8xbf16>
    %cst_23 = arith.constant dense<0.000000e+00> : vector<8x16xf32>
    %51 = tpu.matmul %50, %35, %cst_23 {dimension_numbers = #tpu.dot_dimension_numbers<[1], [0], [0], [1], [0, 0, 1, 1], [], []>} : vector<8x8xbf16>, vector<8x16xbf16>, vector<8x16xf32> -> vector<8x16xf32>
    %c0_24 = arith.constant 0 : index
    %c16 = arith.constant 16 : index
    %52 = vector.load %arg10[%c0_24, %c16] : memref<8x32xf32, #tpu.memory_space<vmem>>, vector<8x16xf32>
    tpu.vector_store %arg10[%c0_24, %c16], %51 {strides = array<i32>} : memref<8x32xf32, #tpu.memory_space<vmem>>, vector<8x16xf32>,
    %c0_25 = arith.constant 0 : index
    %c0_26 = arith.constant 0 : index
    %c0_27 = arith.constant 0 : index
    %53 = vector.load %arg6[%c0_25, %c0_26, %c0_27] : memref<1x8x32xf32, #tpu.memory_space<vmem>>, vector<1x8x32xf32>
    %54 = vector.shape_cast %53 : vector<1x8x32xf32> to vector<8x32xf32>
    %c0_28 = arith.constant 0 : index
    %c0_29 = arith.constant 0 : index
    %55 = vector.load %arg8[%c0_28, %c0_29] : memref<1x32xf32, #tpu.memory_space<vmem>>, vector<1x32xf32>
    %56 = vector.broadcast %55 : vector<1x32xf32> to vector<8x32xf32>
    %57 = arith.addf %54, %56 : vector<8x32xf32>
    %c0_30 = arith.constant 0 : index
    %c0_31 = arith.constant 0 : index
    %58 = vector.load %arg10[%c0_30, %c0_31] : memref<8x32xf32, #tpu.memory_space<vmem>>, vector<8x32xf32>
    %59 = arith.truncf %58 : vector<8x32xf32> to vector<8x32xbf16>
    %c0_32 = arith.constant 0 : index
    %c0_33 = arith.constant 0 : index
    %60 = vector.load %arg7[%c0_32, %c0_33] : memref<32x32xbf16, #tpu.memory_space<vmem>>, vector<32x32xbf16>
    %cst_34 = arith.constant dense<0.000000e+00> : vector<8x32xf32>
    %61 = tpu.matmul %59, %60, %cst_34 {dimension_numbers = #tpu.dot_dimension_numbers<[1], [0], [0], [1], [0, 0, 1, 1], [], []>} : vector<8x32xbf16>, vector<32x32xbf16>, vector<8x32xf32> -> vector<8x32xf32>
    %62 = arith.addf %57, %61 : vector<8x32xf32>
    %c0_35 = arith.constant 0 : index
    %c0_36 = arith.constant 0 : index
    %c0_37 = arith.constant 0 : index
    %63 = vector.load %arg9[%c0_35, %c0_36, %c0_37] : memref<1x8x32xf32, #tpu.memory_space<vmem>>, vector<1x8x32xf32>
    %64 = vector.shape_cast %63 : vector<1x8x32xf32> to vector<8x32xf32>
    %65 = vector.shape_cast %62 : vector<8x32xf32> to vector<1x8x32xf32>
    tpu.vector_store %arg9[%c0_35, %c0_36, %c0_37], %65 {strides = array<i32>} : memref<1x8x32xf32, #tpu.memory_space<vmem>>, vector<1x8x32xf32>,
    return
  }
  func.func @transform_0(%arg0: i32, %arg1: i32) -> (i32, i32, i32) {
    %c0_i32 = arith.constant 0 : i32
    %c0_i32_0 = arith.constant 0 : i32
    return %arg0, %arg1, %c0_i32 : i32, i32, i32
  }
  func.func @transform_1(%arg0: i32, %arg1: i32) -> (i32, i32, i32) {
    %c0_i32 = arith.constant 0 : i32
    %c0_i32_0 = arith.constant 0 : i32
    %c0_i32_1 = arith.constant 0 : i32
    return %arg0, %c0_i32, %c0_i32_0 : i32, i32, i32
  }
  func.func @transform_2(%arg0: i32, %arg1: i32) -> (i32, i32, i32) {
    %c0_i32 = arith.constant 0 : i32
    %c0_i32_0 = arith.constant 0 : i32
    %c0_i32_1 = arith.constant 0 : i32
    return %arg0, %c0_i32, %c0_i32_0 : i32, i32, i32
  }
  func.func @transform_3(%arg0: i32, %arg1: i32) -> (i32, i32, i32) {
    %c0_i32 = arith.constant 0 : i32
    %c0_i32_0 = arith.constant 0 : i32
    return %arg0, %arg1, %c0_i32 : i32, i32, i32
  }
  func.func @transform_4(%arg0: i32, %arg1: i32) -> (i32, i32, i32) {
    %c0_i32 = arith.constant 0 : i32
    %c0_i32_0 = arith.constant 0 : i32
    return %arg0, %arg1, %c0_i32 : i32, i32, i32
  }
  func.func @transform_5(%arg0: i32, %arg1: i32) -> (i32, i32) {
    %c0_i32 = arith.constant 0 : i32
    %c0_i32_0 = arith.constant 0 : i32
    %c0_i32_1 = arith.constant 0 : i32
    return %c0_i32, %c0_i32_0 : i32, i32
  }
  func.func @transform_6(%arg0: i32, %arg1: i32) -> (i32, i32) {
    %c0_i32 = arith.constant 0 : i32
    %c0_i32_0 = arith.constant 0 : i32
    %c0_i32_1 = arith.constant 0 : i32
    return %c0_i32, %c0_i32_0 : i32, i32
  }
  func.func @transform_7(%arg0: i32, %arg1: i32) -> (i32, i32, i32) {
    %c0_i32 = arith.constant 0 : i32
    %c0_i32_0 = arith.constant 0 : i32
    return %arg0, %arg1, %c0_i32 : i32, i32, i32
  }
}

module attributes {stable_mosaic.version = 11 : i64} {
  func.func @kernel(%arg0: i32, %arg1: memref<16x32xf32, #tpu.memory_space<vmem>>, %arg2: memref<1x32xf32, #tpu.memory_space<vmem>>, %arg3: memref<1x32xf32, #tpu.memory_space<vmem>>, %arg4: memref<32x64xbf16, #tpu.memory_space<vmem>>, %arg5: memref<1x64xf32, #tpu.memory_space<vmem>>, %arg6: memref<64x32xbf16, #tpu.memory_space<vmem>>, %arg7: memref<1x32xf32, #tpu.memory_space<vmem>>, %arg8: memref<16x32xf32, #tpu.memory_space<vmem>>) attributes {dimension_semantics = [#tpu.dimension_semantics<parallel>], iteration_bounds = array<i64: 1>, scalar_prefetch = 0 : i64, scratch_operands = 0 : i64, tpu.core_type = #tpu.core_type<tc>, window_params = [{transform_indices = @transform_0, window_bounds = array<i64: 16, 32>}, {pipeline_mode = #tpu.pipeline_mode<synchronous>, transform_indices = @transform_1, window_bounds = array<i64: 1, 32>}, {pipeline_mode = #tpu.pipeline_mode<synchronous>, transform_indices = @transform_2, window_bounds = array<i64: 1, 32>}, {pipeline_mode = #tpu.pipeline_mode<synchronous>, transform_indices = @transform_3, window_bounds = array<i64: 32, 64>}, {pipeline_mode = #tpu.pipeline_mode<synchronous>, transform_indices = @transform_4, window_bounds = array<i64: 1, 64>}, {pipeline_mode = #tpu.pipeline_mode<synchronous>, transform_indices = @transform_5, window_bounds = array<i64: 64, 32>}, {pipeline_mode = #tpu.pipeline_mode<synchronous>, transform_indices = @transform_6, window_bounds = array<i64: 1, 32>}, {transform_indices = @transform_7, window_bounds = array<i64: 16, 32>}]} {
    %c0 = arith.constant 0 : index
    %c0_0 = arith.constant 0 : index
    %0 = vector.load %arg1[%c0, %c0_0] : memref<16x32xf32, #tpu.memory_space<vmem>>, vector<16x32xf32>
    %c0_1 = arith.constant 0 : index
    %c0_2 = arith.constant 0 : index
    %1 = vector.load %arg2[%c0_1, %c0_2] : memref<1x32xf32, #tpu.memory_space<vmem>>, vector<1x32xf32>
    %c0_3 = arith.constant 0 : index
    %c0_4 = arith.constant 0 : index
    %2 = vector.load %arg3[%c0_3, %c0_4] : memref<1x32xf32, #tpu.memory_space<vmem>>, vector<1x32xf32>
    %cst = arith.constant dense<0.000000e+00> : vector<16xf32>
    %3 = vector.multi_reduction <add>, %0, %cst [1] : vector<16x32xf32> to vector<16xf32>
    %4 = vector.shape_cast %3 : vector<16xf32> to vector<16x1xf32>
    %cst_5 = arith.constant 3.200000e+01 : f32
    %5 = vector.broadcast %cst_5 : f32 to vector<16x1xf32>
    %6 = arith.divf %4, %5 : vector<16x1xf32>
    %7 = vector.broadcast %6 : vector<16x1xf32> to vector<16x32xf32>
    %8 = arith.subf %0, %7 : vector<16x32xf32>
    %9 = arith.mulf %8, %8 : vector<16x32xf32>
    %cst_6 = arith.constant dense<0.000000e+00> : vector<16xf32>
    %10 = vector.multi_reduction <add>, %9, %cst_6 [1] : vector<16x32xf32> to vector<16xf32>
    %11 = vector.shape_cast %10 : vector<16xf32> to vector<16x1xf32>
    %cst_7 = arith.constant 0.0322580636 : f32
    %12 = vector.broadcast %cst_7 : f32 to vector<16x1xf32>
    %13 = arith.mulf %11, %12 : vector<16x1xf32>
    %14 = math.sqrt %13 : vector<16x1xf32>
    %cst_8 = arith.constant 9.99999997E-7 : f32
    %15 = vector.broadcast %cst_8 : f32 to vector<16x1xf32>
    %16 = arith.addf %14, %15 : vector<16x1xf32>
    %17 = tpu.reciprocal %16 {approx = true} : vector<16x1xf32> -> vector<16x1xf32>
    %18 = vector.broadcast %1 : vector<1x32xf32> to vector<16x32xf32>
    %19 = arith.mulf %18, %8 : vector<16x32xf32>
    %20 = vector.broadcast %17 : vector<16x1xf32> to vector<16x32xf32>
    %21 = arith.mulf %19, %20 : vector<16x32xf32>
    %22 = vector.broadcast %2 : vector<1x32xf32> to vector<16x32xf32>
    %23 = arith.addf %21, %22 : vector<16x32xf32>
    %24 = arith.truncf %23 : vector<16x32xf32> to vector<16x32xbf16>
    %c0_9 = arith.constant 0 : index
    %c0_10 = arith.constant 0 : index
    %25 = vector.load %arg4[%c0_9, %c0_10] : memref<32x64xbf16, #tpu.memory_space<vmem>>, vector<32x64xbf16>
    %cst_11 = arith.constant dense<0.000000e+00> : vector<16x64xf32>
    %26 = tpu.matmul %24, %25, %cst_11 {dimension_numbers = #tpu.dot_dimension_numbers<[1], [0], [0], [1], [0, 0, 1, 1], [], []>} : vector<16x32xbf16>, vector<32x64xbf16>, vector<16x64xf32> -> vector<16x64xf32>
    %c0_12 = arith.constant 0 : index
    %c0_13 = arith.constant 0 : index
    %27 = vector.load %arg5[%c0_12, %c0_13] : memref<1x64xf32, #tpu.memory_space<vmem>>, vector<1x64xf32>
    %28 = vector.broadcast %27 : vector<1x64xf32> to vector<16x64xf32>
    %29 = arith.addf %26, %28 : vector<16x64xf32>
    %cst_14 = arith.constant 0.000000e+00 : f32
    %30 = vector.broadcast %cst_14 : f32 to vector<16x64xf32>
    %31 = arith.maximumf %29, %30 : vector<16x64xf32>
    %32 = arith.truncf %31 : vector<16x64xf32> to vector<16x64xbf16>
    %c0_15 = arith.constant 0 : index
    %c0_16 = arith.constant 0 : index
    %33 = vector.load %arg6[%c0_15, %c0_16] : memref<64x32xbf16, #tpu.memory_space<vmem>>, vector<64x32xbf16>
    %cst_17 = arith.constant dense<0.000000e+00> : vector<16x32xf32>
    %34 = tpu.matmul %32, %33, %cst_17 {dimension_numbers = #tpu.dot_dimension_numbers<[1], [0], [0], [1], [0, 0, 1, 1], [], []>} : vector<16x64xbf16>, vector<64x32xbf16>, vector<16x32xf32> -> vector<16x32xf32>
    %c0_18 = arith.constant 0 : index
    %c0_19 = arith.constant 0 : index
    %35 = vector.load %arg7[%c0_18, %c0_19] : memref<1x32xf32, #tpu.memory_space<vmem>>, vector<1x32xf32>
    %36 = vector.broadcast %35 : vector<1x32xf32> to vector<16x32xf32>
    %37 = arith.addf %34, %36 : vector<16x32xf32>
    %38 = arith.addf %0, %37 : vector<16x32xf32>
    %c0_20 = arith.constant 0 : index
    %c0_21 = arith.constant 0 : index
    %39 = vector.load %arg8[%c0_20, %c0_21] : memref<16x32xf32, #tpu.memory_space<vmem>>, vector<16x32xf32>
    tpu.vector_store %arg8[%c0_20, %c0_21], %38 {strides = array<i32>} : memref<16x32xf32, #tpu.memory_space<vmem>>, vector<16x32xf32>,
    return
  }
  func.func @transform_0(%arg0: i32) -> (i32, i32) {
    %c0_i32 = arith.constant 0 : i32
    %c0_i32_0 = arith.constant 0 : i32
    return %arg0, %c0_i32 : i32, i32
  }
  func.func @transform_1(%arg0: i32) -> (i32, i32) {
    %c0_i32 = arith.constant 0 : i32
    %c0_i32_0 = arith.constant 0 : i32
    %c0_i32_1 = arith.constant 0 : i32
    return %c0_i32, %c0_i32_0 : i32, i32
  }
  func.func @transform_2(%arg0: i32) -> (i32, i32) {
    %c0_i32 = arith.constant 0 : i32
    %c0_i32_0 = arith.constant 0 : i32
    %c0_i32_1 = arith.constant 0 : i32
    return %c0_i32, %c0_i32_0 : i32, i32
  }
  func.func @transform_3(%arg0: i32) -> (i32, i32) {
    %c0_i32 = arith.constant 0 : i32
    %c0_i32_0 = arith.constant 0 : i32
    %c0_i32_1 = arith.constant 0 : i32
    return %c0_i32, %c0_i32_0 : i32, i32
  }
  func.func @transform_4(%arg0: i32) -> (i32, i32) {
    %c0_i32 = arith.constant 0 : i32
    %c0_i32_0 = arith.constant 0 : i32
    %c0_i32_1 = arith.constant 0 : i32
    return %c0_i32, %c0_i32_0 : i32, i32
  }
  func.func @transform_5(%arg0: i32) -> (i32, i32) {
    %c0_i32 = arith.constant 0 : i32
    %c0_i32_0 = arith.constant 0 : i32
    %c0_i32_1 = arith.constant 0 : i32
    return %c0_i32, %c0_i32_0 : i32, i32
  }
  func.func @transform_6(%arg0: i32) -> (i32, i32) {
    %c0_i32 = arith.constant 0 : i32
    %c0_i32_0 = arith.constant 0 : i32
    %c0_i32_1 = arith.constant 0 : i32
    return %c0_i32, %c0_i32_0 : i32, i32
  }
  func.func @transform_7(%arg0: i32) -> (i32, i32) {
    %c0_i32 = arith.constant 0 : i32
    %c0_i32_0 = arith.constant 0 : i32
    return %arg0, %c0_i32 : i32, i32
  }
}

module attributes {stable_mosaic.version = 11 : i64} {
  func.func @kernel(%arg0: i32, %arg1: memref<16x32xf32, #tpu.memory_space<vmem>>, %arg2: memref<1x32xf32, #tpu.memory_space<vmem>>, %arg3: memref<1x32xf32, #tpu.memory_space<vmem>>, %arg4: memref<32x32xbf16, #tpu.memory_space<vmem>>, %arg5: memref<32x32xbf16, #tpu.memory_space<vmem>>, %arg6: memref<32x32xbf16, #tpu.memory_space<vmem>>, %arg7: memref<1x32xf32, #tpu.memory_space<vmem>>, %arg8: memref<1x32xf32, #tpu.memory_space<vmem>>, %arg9: memref<1x32xf32, #tpu.memory_space<vmem>>, %arg10: memref<16x32xbf16, #tpu.memory_space<vmem>>, %arg11: memref<16x32xbf16, #tpu.memory_space<vmem>>, %arg12: memref<16x32xbf16, #tpu.memory_space<vmem>>) attributes {dimension_semantics = [#tpu.dimension_semantics<parallel>], iteration_bounds = array<i64: 1>, scalar_prefetch = 0 : i64, scratch_operands = 0 : i64, tpu.core_type = #tpu.core_type<tc>, window_params = [{transform_indices = @transform_0, window_bounds = array<i64: 16, 32>}, {pipeline_mode = #tpu.pipeline_mode<synchronous>, transform_indices = @transform_1, window_bounds = array<i64: 1, 32>}, {pipeline_mode = #tpu.pipeline_mode<synchronous>, transform_indices = @transform_2, window_bounds = array<i64: 1, 32>}, {pipeline_mode = #tpu.pipeline_mode<synchronous>, transform_indices = @transform_3, window_bounds = array<i64: 32, 32>}, {pipeline_mode = #tpu.pipeline_mode<synchronous>, transform_indices = @transform_4, window_bounds = array<i64: 32, 32>}, {pipeline_mode = #tpu.pipeline_mode<synchronous>, transform_indices = @transform_5, window_bounds = array<i64: 32, 32>}, {pipeline_mode = #tpu.pipeline_mode<synchronous>, transform_indices = @transform_6, window_bounds = array<i64: 1, 32>}, {pipeline_mode = #tpu.pipeline_mode<synchronous>, transform_indices = @transform_7, window_bounds = array<i64: 1, 32>}, {pipeline_mode = #tpu.pipeline_mode<synchronous>, transform_indices = @transform_8, window_bounds = array<i64: 1, 32>}, {transform_indices = @transform_9, window_bounds = array<i64: 16, 32>}, {transform_indices = @transform_10, window_bounds = array<i64: 16, 32>}, {transform_indices = @transform_11, window_bounds = array<i64: 16, 32>}]} {
    %c0 = arith.constant 0 : index
    %c0_0 = arith.constant 0 : index
    %0 = vector.load %arg1[%c0, %c0_0] : memref<16x32xf32, #tpu.memory_space<vmem>>, vector<16x32xf32>
    %c0_1 = arith.constant 0 : index
    %c0_2 = arith.constant 0 : index
    %1 = vector.load %arg2[%c0_1, %c0_2] : memref<1x32xf32, #tpu.memory_space<vmem>>, vector<1x32xf32>
    %c0_3 = arith.constant 0 : index
    %c0_4 = arith.constant 0 : index
    %2 = vector.load %arg3[%c0_3, %c0_4] : memref<1x32xf32, #tpu.memory_space<vmem>>, vector<1x32xf32>
    %cst = arith.constant dense<0.000000e+00> : vector<16xf32>
    %3 = vector.multi_reduction <add>, %0, %cst [1] : vector<16x32xf32> to vector<16xf32>
    %4 = vector.shape_cast %3 : vector<16xf32> to vector<16x1xf32>
    %cst_5 = arith.constant 3.200000e+01 : f32
    %5 = vector.broadcast %cst_5 : f32 to vector<16x1xf32>
    %6 = arith.divf %4, %5 : vector<16x1xf32>
    %7 = vector.broadcast %6 : vector<16x1xf32> to vector<16x32xf32>
    %8 = arith.subf %0, %7 : vector<16x32xf32>
    %9 = arith.mulf %8, %8 : vector<16x32xf32>
    %cst_6 = arith.constant dense<0.000000e+00> : vector<16xf32>
    %10 = vector.multi_reduction <add>, %9, %cst_6 [1] : vector<16x32xf32> to vector<16xf32>
    %11 = vector.shape_cast %10 : vector<16xf32> to vector<16x1xf32>
    %cst_7 = arith.constant 0.0322580636 : f32
    %12 = vector.broadcast %cst_7 : f32 to vector<16x1xf32>
    %13 = arith.mulf %11, %12 : vector<16x1xf32>
    %14 = math.sqrt %13 : vector<16x1xf32>
    %cst_8 = arith.constant 9.99999997E-7 : f32
    %15 = vector.broadcast %cst_8 : f32 to vector<16x1xf32>
    %16 = arith.addf %14, %15 : vector<16x1xf32>
    %17 = tpu.reciprocal %16 {approx = true} : vector<16x1xf32> -> vector<16x1xf32>
    %18 = vector.broadcast %1 : vector<1x32xf32> to vector<16x32xf32>
    %19 = arith.mulf %18, %8 : vector<16x32xf32>
    %20 = vector.broadcast %17 : vector<16x1xf32> to vector<16x32xf32>
    %21 = arith.mulf %19, %20 : vector<16x32xf32>
    %22 = vector.broadcast %2 : vector<1x32xf32> to vector<16x32xf32>
    %23 = arith.addf %21, %22 : vector<16x32xf32>
    %24 = arith.truncf %23 : vector<16x32xf32> to vector<16x32xbf16>
    %c0_9 = arith.constant 0 : index
    %c0_10 = arith.constant 0 : index
    %25 = vector.load %arg4[%c0_9, %c0_10] : memref<32x32xbf16, #tpu.memory_space<vmem>>, vector<32x32xbf16>
    %cst_11 = arith.constant dense<0.000000e+00> : vector<16x32xf32>
    %26 = tpu.matmul %24, %25, %cst_11 {dimension_numbers = #tpu.dot_dimension_numbers<[1], [0], [0], [1], [0, 0, 1, 1], [], []>} : vector<16x32xbf16>, vector<32x32xbf16>, vector<16x32xf32> -> vector<16x32xf32>
    %c0_12 = arith.constant 0 : index
    %c0_13 = arith.constant 0 : index
    %27 = vector.load %arg7[%c0_12, %c0_13] : memref<1x32xf32, #tpu.memory_space<vmem>>, vector<1x32xf32>
    %28 = vector.broadcast %27 : vector<1x32xf32> to vector<16x32xf32>
    %29 = arith.addf %26, %28 : vector<16x32xf32>
    %30 = arith.truncf %29 : vector<16x32xf32> to vector<16x32xbf16>
    %c0_14 = arith.constant 0 : index
    %c0_15 = arith.constant 0 : index
    %31 = vector.load %arg10[%c0_14, %c0_15] : memref<16x32xbf16, #tpu.memory_space<vmem>>, vector<16x32xbf16>
    tpu.vector_store %arg10[%c0_14, %c0_15], %30 {strides = array<i32>} : memref<16x32xbf16, #tpu.memory_space<vmem>>, vector<16x32xbf16>,
    %c0_16 = arith.constant 0 : index
    %c0_17 = arith.constant 0 : index
    %32 = vector.load %arg5[%c0_16, %c0_17] : memref<32x32xbf16, #tpu.memory_space<vmem>>, vector<32x32xbf16>
    %cst_18 = arith.constant dense<0.000000e+00> : vector<16x32xf32>
    %33 = tpu.matmul %24, %32, %cst_18 {dimension_numbers = #tpu.dot_dimension_numbers<[1], [0], [0], [1], [0, 0, 1, 1], [], []>} : vector<16x32xbf16>, vector<32x32xbf16>, vector<16x32xf32> -> vector<16x32xf32>
    %c0_19 = arith.constant 0 : index
    %c0_20 = arith.constant 0 : index
    %34 = vector.load %arg8[%c0_19, %c0_20] : memref<1x32xf32, #tpu.memory_space<vmem>>, vector<1x32xf32>
    %35 = vector.broadcast %34 : vector<1x32xf32> to vector<16x32xf32>
    %36 = arith.addf %33, %35 : vector<16x32xf32>
    %37 = arith.truncf %36 : vector<16x32xf32> to vector<16x32xbf16>
    %c0_21 = arith.constant 0 : index
    %c0_22 = arith.constant 0 : index
    %38 = vector.load %arg11[%c0_21, %c0_22] : memref<16x32xbf16, #tpu.memory_space<vmem>>, vector<16x32xbf16>
    tpu.vector_store %arg11[%c0_21, %c0_22], %37 {strides = array<i32>} : memref<16x32xbf16, #tpu.memory_space<vmem>>, vector<16x32xbf16>,
    %c0_23 = arith.constant 0 : index
    %c0_24 = arith.constant 0 : index
    %39 = vector.load %arg6[%c0_23, %c0_24] : memref<32x32xbf16, #tpu.memory_space<vmem>>, vector<32x32xbf16>
    %cst_25 = arith.constant dense<0.000000e+00> : vector<16x32xf32>
    %40 = tpu.matmul %24, %39, %cst_25 {dimension_numbers = #tpu.dot_dimension_numbers<[1], [0], [0], [1], [0, 0, 1, 1], [], []>} : vector<16x32xbf16>, vector<32x32xbf16>, vector<16x32xf32> -> vector<16x32xf32>
    %c0_26 = arith.constant 0 : index
    %c0_27 = arith.constant 0 : index
    %41 = vector.load %arg9[%c0_26, %c0_27] : memref<1x32xf32, #tpu.memory_space<vmem>>, vector<1x32xf32>
    %42 = vector.broadcast %41 : vector<1x32xf32> to vector<16x32xf32>
    %43 = arith.addf %40, %42 : vector<16x32xf32>
    %44 = arith.truncf %43 : vector<16x32xf32> to vector<16x32xbf16>
    %c0_28 = arith.constant 0 : index
    %c0_29 = arith.constant 0 : index
    %45 = vector.load %arg12[%c0_28, %c0_29] : memref<16x32xbf16, #tpu.memory_space<vmem>>, vector<16x32xbf16>
    tpu.vector_store %arg12[%c0_28, %c0_29], %44 {strides = array<i32>} : memref<16x32xbf16, #tpu.memory_space<vmem>>, vector<16x32xbf16>,
    return
  }
  func.func @transform_0(%arg0: i32) -> (i32, i32) {
    %c0_i32 = arith.constant 0 : i32
    %c0_i32_0 = arith.constant 0 : i32
    return %arg0, %c0_i32 : i32, i32
  }
  func.func @transform_1(%arg0: i32) -> (i32, i32) {
    %c0_i32 = arith.constant 0 : i32
    %c0_i32_0 = arith.constant 0 : i32
    %c0_i32_1 = arith.constant 0 : i32
    return %c0_i32, %c0_i32_0 : i32, i32
  }
  func.func @transform_2(%arg0: i32) -> (i32, i32) {
    %c0_i32 = arith.constant 0 : i32
    %c0_i32_0 = arith.constant 0 : i32
    %c0_i32_1 = arith.constant 0 : i32
    return %c0_i32, %c0_i32_0 : i32, i32
  }
  func.func @transform_3(%arg0: i32) -> (i32, i32) {
    %c0_i32 = arith.constant 0 : i32
    %c0_i32_0 = arith.constant 0 : i32
    %c0_i32_1 = arith.constant 0 : i32
    return %c0_i32, %c0_i32_0 : i32, i32
  }
  func.func @transform_4(%arg0: i32) -> (i32, i32) {
    %c0_i32 = arith.constant 0 : i32
    %c0_i32_0 = arith.constant 0 : i32
    %c0_i32_1 = arith.constant 0 : i32
    return %c0_i32, %c0_i32_0 : i32, i32
  }
  func.func @transform_5(%arg0: i32) -> (i32, i32) {
    %c0_i32 = arith.constant 0 : i32
    %c0_i32_0 = arith.constant 0 : i32
    %c0_i32_1 = arith.constant 0 : i32
    return %c0_i32, %c0_i32_0 : i32, i32
  }
  func.func @transform_6(%arg0: i32) -> (i32, i32) {
    %c0_i32 = arith.constant 0 : i32
    %c0_i32_0 = arith.constant 0 : i32
    %c0_i32_1 = arith.constant 0 : i32
    return %c0_i32, %c0_i32_0 : i32, i32
  }
  func.func @transform_7(%arg0: i32) -> (i32, i32) {
    %c0_i32 = arith.constant 0 : i32
    %c0_i32_0 = arith.constant 0 : i32
    %c0_i32_1 = arith.constant 0 : i32
    return %c0_i32, %c0_i32_0 : i32, i32
  }
  func.func @transform_8(%arg0: i32) -> (i32, i32) {
    %c0_i32 = arith.constant 0 : i32
    %c0_i32_0 = arith.constant 0 : i32
    %c0_i32_1 = arith.constant 0 : i32
    return %c0_i32, %c0_i32_0 : i32, i32
  }
  func.func @transform_9(%arg0: i32) -> (i32, i32) {
    %c0_i32 = arith.constant 0 : i32
    %c0_i32_0 = arith.constant 0 : i32
    return %arg0, %c0_i32 : i32, i32
  }
  func.func @transform_10(%arg0: i32) -> (i32, i32) {
    %c0_i32 = arith.constant 0 : i32
    %c0_i32_0 = arith.constant 0 : i32
    return %arg0, %c0_i32 : i32, i32
  }
  func.func @transform_11(%arg0: i32) -> (i32, i32) {
    %c0_i32 = arith.constant 0 : i32
    %c0_i32_0 = arith.constant 0 : i32
    return %arg0, %c0_i32 : i32, i32
  }
}

module attributes {stable_mosaic.version = 11 : i64} {
  func.func @kernel(%arg0: i32, %arg1: memref<16x32xf32, #tpu.memory_space<vmem>>, %arg2: memref<1x32xf32, #tpu.memory_space<vmem>>, %arg3: memref<1x32xf32, #tpu.memory_space<vmem>>, %arg4: memref<32x64xbf16, #tpu.memory_space<vmem>>, %arg5: memref<1x64xf32, #tpu.memory_space<vmem>>, %arg6: memref<64x32xbf16, #tpu.memory_space<vmem>>, %arg7: memref<1x32xf32, #tpu.memory_space<vmem>>, %arg8: memref<1x32xf32, #tpu.memory_space<vmem>>, %arg9: memref<1x32xf32, #tpu.memory_space<vmem>>, %arg10: memref<16x32xf32, #tpu.memory_space<vmem>>) attributes {dimension_semantics = [#tpu.dimension_semantics<parallel>], iteration_bounds = array<i64: 1>, scalar_prefetch = 0 : i64, scratch_operands = 0 : i64, tpu.core_type = #tpu.core_type<tc>, window_params = [{transform_indices = @transform_0, window_bounds = array<i64: 16, 32>}, {pipeline_mode = #tpu.pipeline_mode<synchronous>, transform_indices = @transform_1, window_bounds = array<i64: 1, 32>}, {pipeline_mode = #tpu.pipeline_mode<synchronous>, transform_indices = @transform_2, window_bounds = array<i64: 1, 32>}, {pipeline_mode = #tpu.pipeline_mode<synchronous>, transform_indices = @transform_3, window_bounds = array<i64: 32, 64>}, {pipeline_mode = #tpu.pipeline_mode<synchronous>, transform_indices = @transform_4, window_bounds = array<i64: 1, 64>}, {pipeline_mode = #tpu.pipeline_mode<synchronous>, transform_indices = @transform_5, window_bounds = array<i64: 64, 32>}, {pipeline_mode = #tpu.pipeline_mode<synchronous>, transform_indices = @transform_6, window_bounds = array<i64: 1, 32>}, {pipeline_mode = #tpu.pipeline_mode<synchronous>, transform_indices = @transform_7, window_bounds = array<i64: 1, 32>}, {pipeline_mode = #tpu.pipeline_mode<synchronous>, transform_indices = @transform_8, window_bounds = array<i64: 1, 32>}, {transform_indices = @transform_9, window_bounds = array<i64: 16, 32>}]} {
    %c0 = arith.constant 0 : index
    %c0_0 = arith.constant 0 : index
    %0 = vector.load %arg1[%c0, %c0_0] : memref<16x32xf32, #tpu.memory_space<vmem>>, vector<16x32xf32>
    %c0_1 = arith.constant 0 : index
    %c0_2 = arith.constant 0 : index
    %1 = vector.load %arg2[%c0_1, %c0_2] : memref<1x32xf32, #tpu.memory_space<vmem>>, vector<1x32xf32>
    %c0_3 = arith.constant 0 : index
    %c0_4 = arith.constant 0 : index
    %2 = vector.load %arg3[%c0_3, %c0_4] : memref<1x32xf32, #tpu.memory_space<vmem>>, vector<1x32xf32>
    %cst = arith.constant dense<0.000000e+00> : vector<16xf32>
    %3 = vector.multi_reduction <add>, %0, %cst [1] : vector<16x32xf32> to vector<16xf32>
    %4 = vector.shape_cast %3 : vector<16xf32> to vector<16x1xf32>
    %cst_5 = arith.constant 3.200000e+01 : f32
    %5 = vector.broadcast %cst_5 : f32 to vector<16x1xf32>
    %6 = arith.divf %4, %5 : vector<16x1xf32>
    %7 = vector.broadcast %6 : vector<16x1xf32> to vector<16x32xf32>
    %8 = arith.subf %0, %7 : vector<16x32xf32>
    %9 = arith.mulf %8, %8 : vector<16x32xf32>
    %cst_6 = arith.constant dense<0.000000e+00> : vector<16xf32>
    %10 = vector.multi_reduction <add>, %9, %cst_6 [1] : vector<16x32xf32> to vector<16xf32>
    %11 = vector.shape_cast %10 : vector<16xf32> to vector<16x1xf32>
    %cst_7 = arith.constant 0.0322580636 : f32
    %12 = vector.broadcast %cst_7 : f32 to vector<16x1xf32>
    %13 = arith.mulf %11, %12 : vector<16x1xf32>
    %14 = math.sqrt %13 : vector<16x1xf32>
    %cst_8 = arith.constant 9.99999997E-7 : f32
    %15 = vector.broadcast %cst_8 : f32 to vector<16x1xf32>
    %16 = arith.addf %14, %15 : vector<16x1xf32>
    %17 = tpu.reciprocal %16 {approx = true} : vector<16x1xf32> -> vector<16x1xf32>
    %18 = vector.broadcast %1 : vector<1x32xf32> to vector<16x32xf32>
    %19 = arith.mulf %18, %8 : vector<16x32xf32>
    %20 = vector.broadcast %17 : vector<16x1xf32> to vector<16x32xf32>
    %21 = arith.mulf %19, %20 : vector<16x32xf32>
    %22 = vector.broadcast %2 : vector<1x32xf32> to vector<16x32xf32>
    %23 = arith.addf %21, %22 : vector<16x32xf32>
    %24 = arith.truncf %23 : vector<16x32xf32> to vector<16x32xbf16>
    %c0_9 = arith.constant 0 : index
    %c0_10 = arith.constant 0 : index
    %25 = vector.load %arg4[%c0_9, %c0_10] : memref<32x64xbf16, #tpu.memory_space<vmem>>, vector<32x64xbf16>
    %cst_11 = arith.constant dense<0.000000e+00> : vector<16x64xf32>
    %26 = tpu.matmul %24, %25, %cst_11 {dimension_numbers = #tpu.dot_dimension_numbers<[1], [0], [0], [1], [0, 0, 1, 1], [], []>} : vector<16x32xbf16>, vector<32x64xbf16>, vector<16x64xf32> -> vector<16x64xf32>
    %c0_12 = arith.constant 0 : index
    %c0_13 = arith.constant 0 : index
    %27 = vector.load %arg5[%c0_12, %c0_13] : memref<1x64xf32, #tpu.memory_space<vmem>>, vector<1x64xf32>
    %28 = vector.broadcast %27 : vector<1x64xf32> to vector<16x64xf32>
    %29 = arith.addf %26, %28 : vector<16x64xf32>
    %cst_14 = arith.constant 0.000000e+00 : f32
    %30 = vector.broadcast %cst_14 : f32 to vector<16x64xf32>
    %31 = arith.maximumf %29, %30 : vector<16x64xf32>
    %32 = arith.truncf %31 : vector<16x64xf32> to vector<16x64xbf16>
    %c0_15 = arith.constant 0 : index
    %c0_16 = arith.constant 0 : index
    %33 = vector.load %arg6[%c0_15, %c0_16] : memref<64x32xbf16, #tpu.memory_space<vmem>>, vector<64x32xbf16>
    %cst_17 = arith.constant dense<0.000000e+00> : vector<16x32xf32>
    %34 = tpu.matmul %32, %33, %cst_17 {dimension_numbers = #tpu.dot_dimension_numbers<[1], [0], [0], [1], [0, 0, 1, 1], [], []>} : vector<16x64xbf16>, vector<64x32xbf16>, vector<16x32xf32> -> vector<16x32xf32>
    %c0_18 = arith.constant 0 : index
    %c0_19 = arith.constant 0 : index
    %35 = vector.load %arg7[%c0_18, %c0_19] : memref<1x32xf32, #tpu.memory_space<vmem>>, vector<1x32xf32>
    %36 = vector.broadcast %35 : vector<1x32xf32> to vector<16x32xf32>
    %37 = arith.addf %34, %36 : vector<16x32xf32>
    %38 = arith.addf %0, %37 : vector<16x32xf32>
    %c0_20 = arith.constant 0 : index
    %c0_21 = arith.constant 0 : index
    %39 = vector.load %arg8[%c0_20, %c0_21] : memref<1x32xf32, #tpu.memory_space<vmem>>, vector<1x32xf32>
    %c0_22 = arith.constant 0 : index
    %c0_23 = arith.constant 0 : index
    %40 = vector.load %arg9[%c0_22, %c0_23] : memref<1x32xf32, #tpu.memory_space<vmem>>, vector<1x32xf32>
    %cst_24 = arith.constant dense<0.000000e+00> : vector<16xf32>
    %41 = vector.multi_reduction <add>, %38, %cst_24 [1] : vector<16x32xf32> to vector<16xf32>
    %42 = vector.shape_cast %41 : vector<16xf32> to vector<16x1xf32>
    %cst_25 = arith.constant 3.200000e+01 : f32
    %43 = vector.broadcast %cst_25 : f32 to vector<16x1xf32>
    %44 = arith.divf %42, %43 : vector<16x1xf32>
    %45 = vector.broadcast %44 : vector<16x1xf32> to vector<16x32xf32>
    %46 = arith.subf %38, %45 : vector<16x32xf32>
    %47 = arith.mulf %46, %46 : vector<16x32xf32>
    %cst_26 = arith.constant dense<0.000000e+00> : vector<16xf32>
    %48 = vector.multi_reduction <add>, %47, %cst_26 [1] : vector<16x32xf32> to vector<16xf32>
    %49 = vector.shape_cast %48 : vector<16xf32> to vector<16x1xf32>
    %cst_27 = arith.constant 0.0322580636 : f32
    %50 = vector.broadcast %cst_27 : f32 to vector<16x1xf32>
    %51 = arith.mulf %49, %50 : vector<16x1xf32>
    %52 = math.sqrt %51 : vector<16x1xf32>
    %cst_28 = arith.constant 9.99999997E-7 : f32
    %53 = vector.broadcast %cst_28 : f32 to vector<16x1xf32>
    %54 = arith.addf %52, %53 : vector<16x1xf32>
    %55 = tpu.reciprocal %54 {approx = true} : vector<16x1xf32> -> vector<16x1xf32>
    %56 = vector.broadcast %39 : vector<1x32xf32> to vector<16x32xf32>
    %57 = arith.mulf %56, %46 : vector<16x32xf32>
    %58 = vector.broadcast %55 : vector<16x1xf32> to vector<16x32xf32>
    %59 = arith.mulf %57, %58 : vector<16x32xf32>
    %60 = vector.broadcast %40 : vector<1x32xf32> to vector<16x32xf32>
    %61 = arith.addf %59, %60 : vector<16x32xf32>
    %c0_29 = arith.constant 0 : index
    %c0_30 = arith.constant 0 : index
    %62 = vector.load %arg10[%c0_29, %c0_30] : memref<16x32xf32, #tpu.memory_space<vmem>>, vector<16x32xf32>
    tpu.vector_store %arg10[%c0_29, %c0_30], %61 {strides = array<i32>} : memref<16x32xf32, #tpu.memory_space<vmem>>, vector<16x32xf32>,
    return
  }
  func.func @transform_0(%arg0: i32) -> (i32, i32) {
    %c0_i32 = arith.constant 0 : i32
    %c0_i32_0 = arith.constant 0 : i32
    return %arg0, %c0_i32 : i32, i32
  }
  func.func @transform_1(%arg0: i32) -> (i32, i32) {
    %c0_i32 = arith.constant 0 : i32
    %c0_i32_0 = arith.constant 0 : i32
    %c0_i32_1 = arith.constant 0 : i32
    return %c0_i32, %c0_i32_0 : i32, i32
  }
  func.func @transform_2(%arg0: i32) -> (i32, i32) {
    %c0_i32 = arith.constant 0 : i32
    %c0_i32_0 = arith.constant 0 : i32
    %c0_i32_1 = arith.constant 0 : i32
    return %c0_i32, %c0_i32_0 : i32, i32
  }
  func.func @transform_3(%arg0: i32) -> (i32, i32) {
    %c0_i32 = arith.constant 0 : i32
    %c0_i32_0 = arith.constant 0 : i32
    %c0_i32_1 = arith.constant 0 : i32
    return %c0_i32, %c0_i32_0 : i32, i32
  }
  func.func @transform_4(%arg0: i32) -> (i32, i32) {
    %c0_i32 = arith.constant 0 : i32
    %c0_i32_0 = arith.constant 0 : i32
    %c0_i32_1 = arith.constant 0 : i32
    return %c0_i32, %c0_i32_0 : i32, i32
  }
  func.func @transform_5(%arg0: i32) -> (i32, i32) {
    %c0_i32 = arith.constant 0 : i32
    %c0_i32_0 = arith.constant 0 : i32
    %c0_i32_1 = arith.constant 0 : i32
    return %c0_i32, %c0_i32_0 : i32, i32
  }
  func.func @transform_6(%arg0: i32) -> (i32, i32) {
    %c0_i32 = arith.constant 0 : i32
    %c0_i32_0 = arith.constant 0 : i32
    %c0_i32_1 = arith.constant 0 : i32
    return %c0_i32, %c0_i32_0 : i32, i32
  }
  func.func @transform_7(%arg0: i32) -> (i32, i32) {
    %c0_i32 = arith.constant 0 : i32
    %c0_i32_0 = arith.constant 0 : i32
    %c0_i32_1 = arith.constant 0 : i32
    return %c0_i32, %c0_i32_0 : i32, i32
  }
  func.func @transform_8(%arg0: i32) -> (i32, i32) {
    %c0_i32 = arith.constant 0 : i32
    %c0_i32_0 = arith.constant 0 : i32
    %c0_i32_1 = arith.constant 0 : i32
    return %c0_i32, %c0_i32_0 : i32, i32
  }
  func.func @transform_9(%arg0: i32) -> (i32, i32) {
    %c0_i32 = arith.constant 0 : i32
    %c0_i32_0 = arith.constant 0 : i32
    return %arg0, %c0_i32 : i32, i32
  }
}

</mosaic_0001>

<llo_original>
// kernel: _lambda_.12
$region0: #{_lambda_.12}
  #allocation0 [shape = 'u32[]', space=smem, size = 0x4, offset = 0x4, fixed_abs, tag = 'smem constant byte address 0x4 - core index']
  #allocation1 [shape = 'u32[72,128]{1,0:T(1,128)}', space=vmem, size = 0x9000, scoped, tag = 'internal scratch']
  %s0 = inlined_call_operand.hbm [shape: f32[16,32], index: 0, kind: input, shape index: {}]
  %s1 = inlined_call_operand.vmem [shape: f32[1,32], index: 1, kind: input, shape index: {}]
  %s2 = inlined_call_operand.vmem [shape: f32[1,32], index: 2, kind: input, shape index: {}, may-alias: {2,6,7,8}]
  %s3 = inlined_call_operand.vmem [shape: bf16[32,32], index: 3, kind: input, shape index: {}]
  %s4 = inlined_call_operand.hbm [shape: bf16[32,32], index: 4, kind: input, shape index: {}]
  %s5 = inlined_call_operand.hbm [shape: bf16[32,32], index: 5, kind: input, shape index: {}]
  %s6 = inlined_call_operand.vmem [shape: f32[1,32], index: 6, kind: input, shape index: {}, may-alias: {2,6,7,8}]
  %s7 = inlined_call_operand.vmem [shape: f32[1,32], index: 7, kind: input, shape index: {}, may-alias: {2,6,7,8}]
  %s8 = inlined_call_operand.vmem [shape: f32[1,32], index: 8, kind: input, shape index: {}, may-alias: {2,6,7,8}]
  %s9 = inlined_call_operand.vmem [shape: bf16[16,32], index: 9, kind: output, shape index: {0}]
  %s10 = inlined_call_operand.vmem [shape: bf16[16,32], index: 10, kind: output, shape index: {1}]
  %s11 = inlined_call_operand.vmem [shape: bf16[16,32], index: 11, kind: output, shape index: {2}]
  %12 = xla_tuple %s9, %s10, %s11
  %s13 = sld [smem:[#allocation0]]
  $region74: #{_lambda_.12} parent=0
    _
  %s15 = ssub.s32 1, %s13
  %s16 = scalar_select 0, %s15, %s13
  $region1: #{_lambda_.12} parent=0
    #allocation2 [shape = 'u8[8192]{0}', space=vmem, size = 0x2000, scoped, tag = 'input window, operand 0, single buffered']
    #allocation3 [shape = 's32[1]{0}', space=sflag, size = 0x4, scoped, tag = 'scoped memory for _lambda_.12']
    #allocation4 [shape = 'u8[8192]{0}', space=vmem, size = 0x2000, scoped, tag = 'input window, operand 4, single buffered']
    #allocation5 [shape = 's32[1]{0}', space=sflag, size = 0x4, scoped, tag = 'scoped memory for _lambda_.12']
    #allocation6 [shape = 'u8[8192]{0}', space=vmem, size = 0x2000, scoped, tag = 'input window, operand 5, single buffered']
    %17 = vsyncpa [#allocation3], 0
    %18 = vsyncpa [#allocation5], 0
    // Predicated region
    $region2: #{_lambda_.12} parent=1 // pred_check
      _
    $region3: #{_lambda_.12} parent=1 // pred_check_branch
      %20 = sbr.rel (0) target = $region5
    $region4: #{_lambda_.12} parent=1 // pred_region
      %22 = vsyncadd [#allocation3], 0
      %s23 = sshll.u32 %s0, 4
      %s24 = int_to_ptr.hbm [resolvable:$true] %s23
      %s25 = sshll.u32 [#allocation2], 4
      %s26 = int_to_ptr.vmem [resolvable:$true] %s25
      %31 = dma.hbm_to_vmem [thread:$0]  %s24, 256, %s26, [#allocation3], 128, 128, 8
    $region5: #{_lambda_.12} parent=1 // pred_fallthru
      _
    // Predicated region
    $region6: #{_lambda_.12} parent=1 // pred_check
      _
    $region7: #{_lambda_.12} parent=1 // pred_check_branch
      %33 = sbr.rel (0) target = $region9
    $region8: #{_lambda_.12} parent=1 // pred_region
      _
    $region9: #{_lambda_.12} parent=1 // pred_fallthru
      _
    // Predicated region
    $region10: #{_lambda_.12} parent=1 // pred_check
      _
    $region11: #{_lambda_.12} parent=1 // pred_check_branch
      %35 = sbr.rel (0) target = $region13
    $region12: #{_lambda_.12} parent=1 // pred_region
      _
    $region13: #{_lambda_.12} parent=1 // pred_fallthru
      _
    // Predicated region
    $region14: #{_lambda_.12} parent=1 // pred_check
      _
    $region15: #{_lambda_.12} parent=1 // pred_check_branch
      %37 = sbr.rel (0) target = $region17
    $region16: #{_lambda_.12} parent=1 // pred_region
      _
    $region17: #{_lambda_.12} parent=1 // pred_fallthru
      _
    // Predicated region
    $region18: #{_lambda_.12} parent=1 // pred_check
      _
    $region19: #{_lambda_.12} parent=1 // pred_check_branch
      %39 = sbr.rel (0) target = $region21
    $region20: #{_lambda_.12} parent=1 // pred_region
      %41 = vsyncadd [#allocation5], 0
      %s42 = sshll.u32 %s4, 4
      %s43 = int_to_ptr.hbm [resolvable:$true] %s42
      %s44 = sshll.u32 [#allocation4], 4
      %s45 = int_to_ptr.vmem [resolvable:$true] %s44
      %50 = dma.hbm_to_vmem [thread:$0]  %s43, 256, %s45, [#allocation5], 64, 64, 4
    $region21: #{_lambda_.12} parent=1 // pred_fallthru
      _
    // Predicated region
    $region22: #{_lambda_.12} parent=1 // pred_check
      _
    $region23: #{_lambda_.12} parent=1 // pred_check_branch
      %52 = sbr.rel (0) target = $region25
    $region24: #{_lambda_.12} parent=1 // pred_region
      %54 = vsyncadd [#allocation5], 0
      %s55 = sshll.u32 %s5, 4
      %s56 = int_to_ptr.hbm [resolvable:$true] %s55
      %s57 = sshll.u32 [#allocation6], 4
      %s58 = int_to_ptr.vmem [resolvable:$true] %s57
      %63 = dma.hbm_to_vmem [thread:$0]  %s56, 256, %s58, [#allocation5], 64, 64, 4
    $region25: #{_lambda_.12} parent=1 // pred_fallthru
      _
    // Predicated region
    $region26: #{_lambda_.12} parent=1 // pred_check
      _
    $region27: #{_lambda_.12} parent=1 // pred_check_branch
      %65 = sbr.rel (0) target = $region29
    $region28: #{_lambda_.12} parent=1 // pred_region
      _
    $region29: #{_lambda_.12} parent=1 // pred_fallthru
      _
    // Predicated region
    $region30: #{_lambda_.12} parent=1 // pred_check
      _
    $region31: #{_lambda_.12} parent=1 // pred_check_branch
      %67 = sbr.rel (0) target = $region33
    $region32: #{_lambda_.12} parent=1 // pred_region
      _
    $region33: #{_lambda_.12} parent=1 // pred_fallthru
      _
    // Predicated region
    $region34: #{_lambda_.12} parent=1 // pred_check
      _
    $region35: #{_lambda_.12} parent=1 // pred_check_branch
      %69 = sbr.rel (0) target = $region37
    $region36: #{_lambda_.12} parent=1 // pred_region
      _
    $region37: #{_lambda_.12} parent=1 // pred_fallthru
      _
    // Predicated region
    $region38: #{_lambda_.12} parent=1 // pred_check
      _
    $region39: #{_lambda_.12} parent=1 // pred_check_branch
      %71 = sbr.rel (0) target = $region41
    $region40: #{_lambda_.12} parent=1 // pred_region
      %73 = dma.done [#allocation3], 256
    $region41: #{_lambda_.12} parent=1 // pred_fallthru
      _
    // Predicated region
    $region42: #{_lambda_.12} parent=1 // pred_check
      _
    $region43: #{_lambda_.12} parent=1 // pred_check_branch
      %75 = sbr.rel (0) target = $region45
    $region44: #{_lambda_.12} parent=1 // pred_region
      %77 = dma.done [#allocation5], 256
    $region45: #{_lambda_.12} parent=1 // pred_fallthru
      _
    // Predicated region
    $region46: #{_lambda_.12} parent=1 // pred_check
      _
    $region47: #{_lambda_.12} parent=1 // pred_check_branch
      %79 = sbr.rel (0) target = $region49
    $region48: #{_lambda_.12} parent=1 // pred_region
      %81 = dma.done [#allocation5], 256
    $region49: #{_lambda_.12} parent=1 // pred_fallthru
      _
    %v83 = vld [vmem:[#allocation2] sm:$0xff]
    %v84 = vld [vmem:[#allocation2 + $0x8] sm:$0xff]
    %v85 = vld [vmem:[%s1] sm:$0x1]
    %v86 = vld [vmem:[%s2] sm:$0x1]
    %vm87 = vcmask 261120
    %v88 = vsel %vm87, %v83, 0.0
    %89 = vadd.xlane.f32.xlu0 %v88
    %v90 = vpop.xlane.xlu0 %89
    %v91 = vsel %vm87, %v84, 0.0
    %92 = vadd.xlane.f32.xlu0 %v91
    %v93 = vpop.xlane.xlu0 %92
    %v94 = vrcp.pop 32.0
    %v95 = vmul.f32 32.0, %v94
    %v96 = vsub.f32 1.0, %v95
    %v97 = vmul.f32 %v94, %v96
    %v98 = vadd.f32 %v94, %v97
    %vm99 = vweird.f32 %v94
    %v100 = vsel %vm99, %v94, %v98
    %v101 = vmul.f32 %v90, %v100
    %v102 = vmul.f32 %v93, %v100
    %v103 = vsub.f32 %v83, %v101
    %v104 = vsub.f32 %v84, %v102
    %v105 = vmul.f32 %v103, %v103
    %v106 = vmul.f32 %v104, %v104
    %v107 = vsel %vm87, %v105, 0.0
    %108 = vadd.xlane.f32.xlu0 %v107
    %v109 = vpop.xlane.xlu0 %108
    %v110 = vsel %vm87, %v106, 0.0
    %111 = vadd.xlane.f32.xlu0 %v110
    %v112 = vpop.xlane.xlu0 %111
    %v113 = vmul.f32 %v109, 0.032258064
    %v114 = vmul.f32 %v112, 0.032258064
    %v115 = vrsqrt.pop %v113
    %v116 = vmul.f32 %v115, %v113
    %v117 = vmul.f32 %v116, %v115
    %v118 = vmul.f32 0.5, %v117
    %v119 = vsub.f32 1.5, %v118
    %v120 = vmul.f32 %v115, %v119
    %v121 = vmul.f32 %v113, %v120
    %vm122 = vcmp.eq.f32.partialorder %v113, inf
    %v123 = vsel %vm122, %v113, %v121
    %vm124 = vcmp.eq.f32.partialorder %v113, 0.0
    %v125 = vand.u32 %v113, 2147483648
    %v126 = vsel %vm124, %v125, %v123
    %v127 = vrsqrt.pop %v114
    %v128 = vmul.f32 %v127, %v114
    %v129 = vmul.f32 %v128, %v127
    %v130 = vmul.f32 0.5, %v129
    %v131 = vsub.f32 1.5, %v130
    %v132 = vmul.f32 %v127, %v131
    %v133 = vmul.f32 %v114, %v132
    %vm134 = vcmp.eq.f32.partialorder %v114, inf
    %v135 = vsel %vm134, %v114, %v133
    %vm136 = vcmp.eq.f32.partialorder %v114, 0.0
    %v137 = vand.u32 %v114, 2147483648
    %v138 = vsel %vm136, %v137, %v135
    %v139 = vadd.f32 %v126, 1e-06
    %v140 = vadd.f32 %v138, 1e-06
    %v141 = vrcp.pop %v139
    %v142 = vrcp.pop %v140
    %v144 = vperm.slane %v85, 0
    %v146 = vmul.f32 %v144, %v103
    %v147 = vmul.f32 %v144, %v104
    %v148 = vmul.f32 %v146, %v141
    %v149 = vmul.f32 %v147, %v142
    %v151 = vperm.slane %v86, 0
    %v153 = vadd.f32 %v148, %v151
    %v154 = vadd.f32 %v149, %v151
    %v155 = vpack.c.bf16 %v154, %v153
    %v156 = vld [vmem:[%s3] sm:$0xf]
    %v157 = vld [vmem:[%s3 + $0x4] sm:$0xf]
    %v158 = vld [vmem:[%s3 + $0x8] sm:$0xf]
    %v159 = vld [vmem:[%s3 + $0xc] sm:$0xf]
    %v160 = vld [vmem:[%s6] sm:$0x1]
    %v162 = vperm.slane %v160, 0
    %v168 = vunpack.c.l.b16 %v156
    %v169 = vunpack.c.l.b16 %v157
    %v170 = vunpack.c.l.b16 %v158
    %v171 = vunpack.c.l.b16 %v159
    %v172 = vpack.c.b16 %v169, %v168
    %v173 = vpack.c.b16 %v171, %v170
    %v177 = vsel %vm87, %v155, 0
    %179 = vmatpush.bf16.msra.mxu0 0
    %180 = vmatpush.bf16.msra.mxu0 0
    %181 = vmatpush.bf16.msra.mxu0 0
    %182 = vmatpush.bf16.msra.mxu0 0
    %183 = vmatpush.bf16.msra.mxu0 0
    %184 = vmatpush.bf16.msra.mxu0 0
    %185 = vmatpush.bf16.msra.mxu0 %v173
    %186 = vmatpush.bf16.msra.mxu0 %v172
    %187 = vmatmul.bf16.gmra.mxu0 %v177
    %v188 = vpop.f32.mrf.mxu0
    %v189 = vadd.f32 %v162, %v188
    %v190 = vpop.f32.mrf.mxu0
    %v191 = vadd.f32 %v162, %v190
    %192 = vdwg.mxu0
    %v193 = vpack.c.bf16 %v189, %v189
    %v194 = vpack.c.bf16 %v191, %v191
    %vm195 = vcmask 257024
    %196 = vst.msk [vmem:[%s9] sm:$0xf] %vm195, %v193
    %197 = vst.msk [vmem:[%s9 + $0x4] sm:$0xf] %vm195, %v194
    %v198 = vld [vmem:[#allocation4] sm:$0xf]
    %v199 = vld [vmem:[#allocation4 + $0x4] sm:$0xf]
    %v200 = vld [vmem:[#allocation4 + $0x8] sm:$0xf]
    %v201 = vld [vmem:[#allocation4 + $0xc] sm:$0xf]
    %v202 = vld [vmem:[%s7] sm:$0x1]
    %v204 = vperm.slane %v202, 0
    %v210 = vunpack.c.l.b16 %v198
    %v211 = vunpack.c.l.b16 %v199
    %v212 = vunpack.c.l.b16 %v200
    %v213 = vunpack.c.l.b16 %v201
    %v214 = vpack.c.b16 %v211, %v210
    %v215 = vpack.c.b16 %v213, %v212
    %218 = vmatpush.bf16.msra.mxu0 0
    %219 = vmatpush.bf16.msra.mxu0 0
    %220 = vmatpush.bf16.msra.mxu0 0
    %221 = vmatpush.bf16.msra.mxu0 0
    %222 = vmatpush.bf16.msra.mxu0 0
    %223 = vmatpush.bf16.msra.mxu0 0
    %224 = vmatpush.bf16.msra.mxu0 %v215
    %225 = vmatpush.bf16.msra.mxu0 %v214
    %226 = vmatmul.bf16.gmra.mxu0 %v177
    %v227 = vpop.f32.mrf.mxu0
    %v228 = vadd.f32 %v204, %v227
    %v229 = vpop.f32.mrf.mxu0
    %v230 = vadd.f32 %v204, %v229
    %231 = vdwg.mxu0
    %v232 = vpack.c.bf16 %v228, %v228
    %v233 = vpack.c.bf16 %v230, %v230
    %234 = vst.msk [vmem:[%s10] sm:$0xf] %vm195, %v232
    %235 = vst.msk [vmem:[%s10 + $0x4] sm:$0xf] %vm195, %v233
    %v236 = vld [vmem:[#allocation6] sm:$0xf]
    %v237 = vld [vmem:[#allocation6 + $0x4] sm:$0xf]
    %v238 = vld [vmem:[#allocation6 + $0x8] sm:$0xf]
    %v239 = vld [vmem:[#allocation6 + $0xc] sm:$0xf]
    %v240 = vld [vmem:[%s8] sm:$0x1]
    %v242 = vperm.slane %v240, 0
    %v248 = vunpack.c.l.b16 %v236
    %v249 = vunpack.c.l.b16 %v237
    %v250 = vunpack.c.l.b16 %v238
    %v251 = vunpack.c.l.b16 %v239
    %v252 = vpack.c.b16 %v249, %v248
    %v253 = vpack.c.b16 %v251, %v250
    %256 = vmatpush.bf16.msra.mxu0 0
    %257 = vmatpush.bf16.msra.mxu0 0
    %258 = vmatpush.bf16.msra.mxu0 0
    %259 = vmatpush.bf16.msra.mxu0 0
    %260 = vmatpush.bf16.msra.mxu0 0
    %261 = vmatpush.bf16.msra.mxu0 0
    %262 = vmatpush.bf16.msra.mxu0 %v253
    %263 = vmatpush.bf16.msra.mxu0 %v252
    %264 = vmatmul.bf16.gmra.mxu0 %v177
    %v265 = vpop.f32.mrf.mxu0
    %v266 = vadd.f32 %v242, %v265
    %v267 = vpop.f32.mrf.mxu0
    %v268 = vadd.f32 %v242, %v267
    %269 = vdwg.mxu0
    %v270 = vpack.c.bf16 %v266, %v266
    %v271 = vpack.c.bf16 %v268, %v268
    %272 = vst.msk [vmem:[%s11] sm:$0xf] %vm195, %v270
    %273 = vst.msk [vmem:[%s11 + $0x4] sm:$0xf] %vm195, %v271
    // Predicated region
    $region50: #{_lambda_.12} parent=1 // pred_check
      _
    $region51: #{_lambda_.12} parent=1 // pred_check_branch
      %275 = sbr.rel (0) target = $region53
    $region52: #{_lambda_.12} parent=1 // pred_region
      _
    $region53: #{_lambda_.12} parent=1 // pred_fallthru
      _
    // Predicated region
    $region54: #{_lambda_.12} parent=1 // pred_check
      _
    $region55: #{_lambda_.12} parent=1 // pred_check_branch
      %277 = sbr.rel (0) target = $region57
    $region56: #{_lambda_.12} parent=1 // pred_region
      _
    $region57: #{_lambda_.12} parent=1 // pred_fallthru
      _
    // Predicated region
    $region58: #{_lambda_.12} parent=1 // pred_check
      _
    $region59: #{_lambda_.12} parent=1 // pred_check_branch
      %279 = sbr.rel (0) target = $region61
    $region60: #{_lambda_.12} parent=1 // pred_region
      _
    $region61: #{_lambda_.12} parent=1 // pred_fallthru
      _
    // Predicated region
    $region62: #{_lambda_.12} parent=1 // pred_check
      _
    $region63: #{_lambda_.12} parent=1 // pred_check_branch
      %281 = sbr.rel (0) target = $region65
    $region64: #{_lambda_.12} parent=1 // pred_region
      _
    $region65: #{_lambda_.12} parent=1 // pred_fallthru
      _
    // Predicated region
    $region66: #{_lambda_.12} parent=1 // pred_check
      _
    $region67: #{_lambda_.12} parent=1 // pred_check_branch
      %283 = sbr.rel (0) target = $region69
    $region68: #{_lambda_.12} parent=1 // pred_region
      _
    $region69: #{_lambda_.12} parent=1 // pred_fallthru
      _
    // Predicated region
    $region70: #{_lambda_.12} parent=1 // pred_check
      _
    $region71: #{_lambda_.12} parent=1 // pred_check_branch
      %285 = sbr.rel (0) target = $region73
    $region72: #{_lambda_.12} parent=1 // pred_region
      _
    $region73: #{_lambda_.12} parent=1 // pred_fallthru
      _
    %286 = vsyncpa [#allocation3], 1
    %287 = vsyncpa [#allocation5], 1

// kernel: _lambda_.15
$region0: #{_lambda_.15}
  #allocation0 [shape = 'u32[]', space=smem, size = 0x4, offset = 0x4, fixed_abs, tag = 'smem constant byte address 0x4 - core index']
  #allocation1 [shape = 'u32[72,128]{1,0:T(1,128)}', space=vmem, size = 0x9000, scoped, tag = 'internal scratch']
  %s0 = inlined_call_operand.hbm [shape: f32[16,32], index: 0, kind: input, shape index: {}]
  %s1 = inlined_call_operand.hbm [shape: bf16[32,32], index: 1, kind: input, shape index: {}]
  %s2 = inlined_call_operand.hbm [shape: bf16[32,32], index: 2, kind: input, shape index: {}]
  %s3 = inlined_call_operand.vmem [shape: f32[1,32], index: 3, kind: input, shape index: {}, may-alias: {3,4}]
  %s4 = inlined_call_operand.vmem [shape: f32[1,32], index: 4, kind: input, shape index: {}, may-alias: {3,4}]
  %s5 = inlined_call_operand.vmem [shape: bf16[16,32], index: 5, kind: output, shape index: {0}]
  %s6 = inlined_call_operand.vmem [shape: bf16[16,32], index: 6, kind: output, shape index: {1}]
  %7 = xla_tuple %s5, %s6
  %s8 = sld [smem:[#allocation0]]
  $region50: #{_lambda_.15} parent=0
    _
  %s10 = ssub.s32 1, %s8
  %s11 = scalar_select 0, %s10, %s8
  $region1: #{_lambda_.15} parent=0
    #allocation2 [shape = 'u8[8192]{0}', space=vmem, size = 0x2000, scoped, tag = 'input window, operand 0, single buffered']
    #allocation3 [shape = 's32[1]{0}', space=sflag, size = 0x4, scoped, tag = 'scoped memory for _lambda_.15']
    #allocation4 [shape = 'u8[8192]{0}', space=vmem, size = 0x2000, scoped, tag = 'input window, operand 1, single buffered']
    #allocation5 [shape = 's32[1]{0}', space=sflag, size = 0x4, scoped, tag = 'scoped memory for _lambda_.15']
    #allocation6 [shape = 'u8[8192]{0}', space=vmem, size = 0x2000, scoped, tag = 'input window, operand 2, single buffered']
    %12 = vsyncpa [#allocation3], 0
    %13 = vsyncpa [#allocation5], 0
    // Predicated region
    $region2: #{_lambda_.15} parent=1 // pred_check
      _
    $region3: #{_lambda_.15} parent=1 // pred_check_branch
      %15 = sbr.rel (0) target = $region5
    $region4: #{_lambda_.15} parent=1 // pred_region
      %17 = vsyncadd [#allocation3], 0
      %s18 = sshll.u32 %s0, 4
      %s19 = int_to_ptr.hbm [resolvable:$true] %s18
      %s20 = sshll.u32 [#allocation2], 4
      %s21 = int_to_ptr.vmem [resolvable:$true] %s20
      %26 = dma.hbm_to_vmem [thread:$0]  %s19, 256, %s21, [#allocation3], 128, 128, 8
    $region5: #{_lambda_.15} parent=1 // pred_fallthru
      _
    // Predicated region
    $region6: #{_lambda_.15} parent=1 // pred_check
      _
    $region7: #{_lambda_.15} parent=1 // pred_check_branch
      %28 = sbr.rel (0) target = $region9
    $region8: #{_lambda_.15} parent=1 // pred_region
      %30 = vsyncadd [#allocation5], 0
      %s31 = sshll.u32 %s1, 4
      %s32 = int_to_ptr.hbm [resolvable:$true] %s31
      %s33 = sshll.u32 [#allocation4], 4
      %s34 = int_to_ptr.vmem [resolvable:$true] %s33
      %39 = dma.hbm_to_vmem [thread:$0]  %s32, 256, %s34, [#allocation5], 64, 64, 4
    $region9: #{_lambda_.15} parent=1 // pred_fallthru
      _
    // Predicated region
    $region10: #{_lambda_.15} parent=1 // pred_check
      _
    $region11: #{_lambda_.15} parent=1 // pred_check_branch
      %41 = sbr.rel (0) target = $region13
    $region12: #{_lambda_.15} parent=1 // pred_region
      %43 = vsyncadd [#allocation5], 0
      %s44 = sshll.u32 %s2, 4
      %s45 = int_to_ptr.hbm [resolvable:$true] %s44
      %s46 = sshll.u32 [#allocation6], 4
      %s47 = int_to_ptr.vmem [resolvable:$true] %s46
      %52 = dma.hbm_to_vmem [thread:$0]  %s45, 256, %s47, [#allocation5], 64, 64, 4
    $region13: #{_lambda_.15} parent=1 // pred_fallthru
      _
    // Predicated region
    $region14: #{_lambda_.15} parent=1 // pred_check
      _
    $region15: #{_lambda_.15} parent=1 // pred_check_branch
      %54 = sbr.rel (0) target = $region17
    $region16: #{_lambda_.15} parent=1 // pred_region
      _
    $region17: #{_lambda_.15} parent=1 // pred_fallthru
      _
    // Predicated region
    $region18: #{_lambda_.15} parent=1 // pred_check
      _
    $region19: #{_lambda_.15} parent=1 // pred_check_branch
      %56 = sbr.rel (0) target = $region21
    $region20: #{_lambda_.15} parent=1 // pred_region
      _
    $region21: #{_lambda_.15} parent=1 // pred_fallthru
      _
    // Predicated region
    $region22: #{_lambda_.15} parent=1 // pred_check
      _
    $region23: #{_lambda_.15} parent=1 // pred_check_branch
      %58 = sbr.rel (0) target = $region25
    $region24: #{_lambda_.15} parent=1 // pred_region
      %60 = dma.done [#allocation3], 256
    $region25: #{_lambda_.15} parent=1 // pred_fallthru
      _
    // Predicated region
    $region26: #{_lambda_.15} parent=1 // pred_check
      _
    $region27: #{_lambda_.15} parent=1 // pred_check_branch
      %62 = sbr.rel (0) target = $region29
    $region28: #{_lambda_.15} parent=1 // pred_region
      %64 = dma.done [#allocation5], 256
    $region29: #{_lambda_.15} parent=1 // pred_fallthru
      _
    // Predicated region
    $region30: #{_lambda_.15} parent=1 // pred_check
      _
    $region31: #{_lambda_.15} parent=1 // pred_check_branch
      %66 = sbr.rel (0) target = $region33
    $region32: #{_lambda_.15} parent=1 // pred_region
      %68 = dma.done [#allocation5], 256
    $region33: #{_lambda_.15} parent=1 // pred_fallthru
      _
    %v70 = vld [vmem:[#allocation2] sm:$0xff]
    %v71 = vld [vmem:[#allocation2 + $0x8] sm:$0xff]
    %v72 = vpack.c.bf16 %v71, %v70
    %v73 = vld [vmem:[#allocation4] sm:$0xf]
    %v74 = vld [vmem:[#allocation4 + $0x4] sm:$0xf]
    %v75 = vld [vmem:[#allocation4 + $0x8] sm:$0xf]
    %v76 = vld [vmem:[#allocation4 + $0xc] sm:$0xf]
    %v77 = vld [vmem:[%s3] sm:$0x1]
    %v79 = vperm.slane %v77, 0
    %v85 = vunpack.c.l.b16 %v73
    %v86 = vunpack.c.l.b16 %v74
    %v87 = vunpack.c.l.b16 %v75
    %v88 = vunpack.c.l.b16 %v76
    %v89 = vpack.c.b16 %v86, %v85
    %v90 = vpack.c.b16 %v88, %v87
    %vm93 = vcmask 261120
    %v95 = vsel %vm93, %v72, 0
    %97 = vmatpush.bf16.msra.mxu0 0
    %98 = vmatpush.bf16.msra.mxu0 0
    %99 = vmatpush.bf16.msra.mxu0 0
    %100 = vmatpush.bf16.msra.mxu0 0
    %101 = vmatpush.bf16.msra.mxu0 0
    %102 = vmatpush.bf16.msra.mxu0 0
    %103 = vmatpush.bf16.msra.mxu0 %v90
    %104 = vmatpush.bf16.msra.mxu0 %v89
    %105 = vmatmul.bf16.gmra.mxu0 %v95
    %v106 = vpop.f32.mrf.mxu0
    %v107 = vadd.f32 %v79, %v106
    %v108 = vpop.f32.mrf.mxu0
    %v109 = vadd.f32 %v79, %v108
    %110 = vdwg.mxu0
    %v111 = vpack.c.bf16 %v107, %v107
    %v112 = vpack.c.bf16 %v109, %v109
    %vm113 = vcmask 257024
    %114 = vst.msk [vmem:[%s5] sm:$0xf] %vm113, %v111
    %115 = vst.msk [vmem:[%s5 + $0x4] sm:$0xf] %vm113, %v112
    %v116 = vld [vmem:[#allocation6] sm:$0xf]
    %v117 = vld [vmem:[#allocation6 + $0x4] sm:$0xf]
    %v118 = vld [vmem:[#allocation6 + $0x8] sm:$0xf]
    %v119 = vld [vmem:[#allocation6 + $0xc] sm:$0xf]
    %v120 = vld [vmem:[%s4] sm:$0x1]
    %v122 = vperm.slane %v120, 0
    %v128 = vunpack.c.l.b16 %v116
    %v129 = vunpack.c.l.b16 %v117
    %v130 = vunpack.c.l.b16 %v118
    %v131 = vunpack.c.l.b16 %v119
    %v132 = vpack.c.b16 %v129, %v128
    %v133 = vpack.c.b16 %v131, %v130
    %136 = vmatpush.bf16.msra.mxu0 0
    %137 = vmatpush.bf16.msra.mxu0 0
    %138 = vmatpush.bf16.msra.mxu0 0
    %139 = vmatpush.bf16.msra.mxu0 0
    %140 = vmatpush.bf16.msra.mxu0 0
    %141 = vmatpush.bf16.msra.mxu0 0
    %142 = vmatpush.bf16.msra.mxu0 %v133
    %143 = vmatpush.bf16.msra.mxu0 %v132
    %144 = vmatmul.bf16.gmra.mxu0 %v95
    %v145 = vpop.f32.mrf.mxu0
    %v146 = vadd.f32 %v122, %v145
    %v147 = vpop.f32.mrf.mxu0
    %v148 = vadd.f32 %v122, %v147
    %149 = vdwg.mxu0
    %v150 = vpack.c.bf16 %v146, %v146
    %v151 = vpack.c.bf16 %v148, %v148
    %152 = vst.msk [vmem:[%s6] sm:$0xf] %vm113, %v150
    %153 = vst.msk [vmem:[%s6 + $0x4] sm:$0xf] %vm113, %v151
    // Predicated region
    $region34: #{_lambda_.15} parent=1 // pred_check
      _
    $region35: #{_lambda_.15} parent=1 // pred_check_branch
      %155 = sbr.rel (0) target = $region37
    $region36: #{_lambda_.15} parent=1 // pred_region
      _
    $region37: #{_lambda_.15} parent=1 // pred_fallthru
      _
    // Predicated region
    $region38: #{_lambda_.15} parent=1 // pred_check
      _
    $region39: #{_lambda_.15} parent=1 // pred_check_branch
      %157 = sbr.rel (0) target = $region41
    $region40: #{_lambda_.15} parent=1 // pred_region
      _
    $region41: #{_lambda_.15} parent=1 // pred_fallthru
      _
    // Predicated region
    $region42: #{_lambda_.15} parent=1 // pred_check
      _
    $region43: #{_lambda_.15} parent=1 // pred_check_branch
      %159 = sbr.rel (0) target = $region45
    $region44: #{_lambda_.15} parent=1 // pred_region
      _
    $region45: #{_lambda_.15} parent=1 // pred_fallthru
      _
    // Predicated region
    $region46: #{_lambda_.15} parent=1 // pred_check
      _
    $region47: #{_lambda_.15} parent=1 // pred_check_branch
      %161 = sbr.rel (0) target = $region49
    $region48: #{_lambda_.15} parent=1 // pred_region
      _
    $region49: #{_lambda_.15} parent=1 // pred_fallthru
      _
    %162 = vsyncpa [#allocation3], 1
    %163 = vsyncpa [#allocation5], 1

// kernel: _lambda_.13
$region0: #{_lambda_.13}
  #allocation0 [shape = 'u32[]', space=smem, size = 0x4, offset = 0x4, fixed_abs, tag = 'smem constant byte address 0x4 - core index']
  #allocation1 [shape = 'u32[72,128]{1,0:T(1,128)}', space=vmem, size = 0x9000, scoped, tag = 'internal scratch']
  #allocation2 [shape = 'f32[8,32]{1,0:T(8,128)}', space=vmem, size = 0x1000, scoped, tag = 'scratch operand']
  %s0 = inlined_call_operand.vmem [shape: bf16[2,8,32], index: 0, kind: input, shape index: {}]
  %s1 = inlined_call_operand.vmem [shape: bf16[2,8,32], index: 1, kind: input, shape index: {}]
  %s2 = inlined_call_operand.vmem [shape: bf16[2,8,32], index: 2, kind: input, shape index: {}]
  %s3 = inlined_call_operand.vmem [shape: bf16[2,8,8], index: 3, kind: input, shape index: {}]
  %s4 = inlined_call_operand.hbm [shape: f32[2,8,32], index: 4, kind: input, shape index: {}]
  %s5 = inlined_call_operand.hbm [shape: bf16[32,32], index: 5, kind: input, shape index: {}]
  %s6 = inlined_call_operand.vmem [shape: f32[1,32], index: 6, kind: input, shape index: {}]
  %s7 = inlined_call_operand.vmem [shape: f32[2,8,32], index: 7, kind: output, shape index: {}]
  %s8 = sld [smem:[#allocation0]]
  $region69: #{_lambda_.13} parent=0
    _
  %s10 = ssub.s32 1, %s8
  %s11 = scalar_select 0, %s10, %s8
  $region1: #{_lambda_.13} parent=0
    #allocation3 [shape = 'u8[8192]{0}', space=vmem, size = 0x2000, scoped, tag = 'input window, operand 4']
    #allocation4 [shape = 's32[2]{0}', space=sflag, size = 0x8, scoped, tag = 'scoped memory for _lambda_.13']
    #allocation5 [shape = 'u8[8192]{0}', space=vmem, size = 0x2000, scoped, tag = 'input window, operand 5, single buffered']
    #allocation6 [shape = 's32[1]{0}', space=sflag, size = 0x4, scoped, tag = 'scoped memory for _lambda_.13']
    %12 = vsyncpa [#allocation4], 0
    %s13 = scalar_lea.sflag [#allocation4], 1
    %14 = vsyncpa %s13, 0
    %15 = vsyncpa [#allocation6], 0
    loop: start=0, step=1, limit=4
    $region2: #{_lambda_.13} parent=1 // loop_pre_header
      _
    $region3: #{_lambda_.13} parent=1 // loop_header
      %s17 = sphi 0, %s21
      %p18 = scmp.ge.s32.totalorder %s17, 4
      %s24 = sphi 0, %s36
      %s25 = sphi 0, %s32
      %s26 = sphi 0, %s24
      %s27 = sphi 0, %s25
      %s28 = sphi 0, %s26
      %s29 = sphi 0, %s27
      %s41 = sphi 0, %s43
      %s44 = sphi 0, %s41
      %s45 = sphi 0, %s44
      %s61 = sphi 0, %s45
      %s67 = sphi 0, %s69
      %s70 = sphi 0, %s67
      %s71 = sphi 0, %s70
      %s87 = sphi 0, %s71
      %s93 = sphi 0, %s95
      %s96 = sphi 0, %s93
      %s97 = sphi 0, %s96
      %s113 = sphi 0, %s97
      %s121 = sphi 0, %s123
      %s124 = sphi 0, %s121
      %s125 = sphi 0, %s124
      %s141 = sphi 0, %s125
      %s149 = sphi 0, %s151
      %s152 = sphi 0, %s149
      %s153 = sphi 0, %s152
      %s169 = sphi 0, %s153
      %s173 = sphi 0, %s173
      %s175 = sphi 0, %s173
      %s176 = sphi 0, %s175
      %s190 = sphi 0, %s176
      %s194 = sphi 0, %s194
      %s196 = sphi 0, %s194
      %s197 = sphi 0, %s196
      %s211 = sphi 0, %s197
      %s219 = sphi 0, %s221
      %s222 = sphi 0, %s219
      %s223 = sphi 0, %s222
      %s239 = sphi 0, %s223
    $region4: #{_lambda_.13} parent=1 // loop_header_branch
      %20 = sbr.rel (%p18) target = $region8
    $region5: #{_lambda_.13} parent=1 // loop_body
      %s22 = ssub.s32 %s17, 1
      %s23 = ssub.s32 %s17, 2
      %s30 = sadd.s32 1, %s25
      %p31 = scmp.ge.s32.totalorder %s30, 1
      %s32 = scalar_select %p31, 0, %s30
      %s33 = sadd.s32 1, %s24
      %s34 = scalar_select %p31, %s33, %s24
      %p35 = scmp.ge.s32.totalorder %s34, 2
      %s36 = scalar_select %p35, 0, %s34
      %s37 = ssub.s32 %s24, %s36
      %s38 = ssub.s32 %s25, %s32
      %s39 = sor.u32 %s37, %s38
      %p40 = scmp.eq.s32.totalorder %s39, 0
      %s42 = sadd.s32 %s41, 1
      %s43 = scalar_select %p40, %s41, %s42
      %p46 = pneg %p40
      %p47 = scmp.eq.s32.totalorder %s17, 1
      %p48 = por %p46, %p47
      %p49 = scmp.ne.s32.totalorder %s41, %s44
      %p50 = scmp.eq.s32.totalorder %s17, 0
      %p51 = por %p49, %p50
      %p52 = scmp.ne.s32.totalorder %s41, %s44
      %p53 = scmp.eq.s32.totalorder %s22, 1
      %p54 = por %p52, %p53
      %p55 = scmp.ne.s32.totalorder %s44, %s45
      %p56 = scmp.eq.s32.totalorder %s22, 0
      %p57 = por %p55, %p56
      %p58 = scmp.ne.s32.totalorder %s44, %s45
      %p59 = scmp.eq.s32.totalorder %s23, 1
      %p60 = por %p58, %p59
      %p62 = scmp.ne.s32.totalorder %s45, %s61
      %p63 = scmp.eq.s32.totalorder %s23, 0
      %p64 = por %p62, %p63
      %s65 = ssub.s32 %s24, %s36
      %p66 = scmp.eq.s32.totalorder %s65, 0
      %s68 = sadd.s32 %s67, 1
      %s69 = scalar_select %p66, %s67, %s68
      %p72 = pneg %p66
      %p73 = scmp.eq.s32.totalorder %s17, 1
      %p74 = por %p72, %p73
      %p75 = scmp.ne.s32.totalorder %s67, %s70
      %p76 = scmp.eq.s32.totalorder %s17, 0
      %p77 = por %p75, %p76
      %p78 = scmp.ne.s32.totalorder %s67, %s70
      %p79 = scmp.eq.s32.totalorder %s22, 1
      %p80 = por %p78, %p79
      %p81 = scmp.ne.s32.totalorder %s70, %s71
      %p82 = scmp.eq.s32.totalorder %s22, 0
      %p83 = por %p81, %p82
      %p84 = scmp.ne.s32.totalorder %s70, %s71
      %p85 = scmp.eq.s32.totalorder %s23, 1
      %p86 = por %p84, %p85
      %p88 = scmp.ne.s32.totalorder %s71, %s87
      %p89 = scmp.eq.s32.totalorder %s23, 0
      %p90 = por %p88, %p89
      %s91 = ssub.s32 %s24, %s36
      %p92 = scmp.eq.s32.totalorder %s91, 0
      %s94 = sadd.s32 %s93, 1
      %s95 = scalar_select %p92, %s93, %s94
      %p98 = pneg %p92
      %p99 = scmp.eq.s32.totalorder %s17, 1
      %p100 = por %p98, %p99
      %p101 = scmp.ne.s32.totalorder %s93, %s96
      %p102 = scmp.eq.s32.totalorder %s17, 0
      %p103 = por %p101, %p102
      %p104 = scmp.ne.s32.totalorder %s93, %s96
      %p105 = scmp.eq.s32.totalorder %s22, 1
      %p106 = por %p104, %p105
      %p107 = scmp.ne.s32.totalorder %s96, %s97
      %p108 = scmp.eq.s32.totalorder %s22, 0
      %p109 = por %p107, %p108
      %p110 = scmp.ne.s32.totalorder %s96, %s97
      %p111 = scmp.eq.s32.totalorder %s23, 1
      %p112 = por %p110, %p111
      %p114 = scmp.ne.s32.totalorder %s97, %s113
      %p115 = scmp.eq.s32.totalorder %s23, 0
      %p116 = por %p114, %p115
      %s117 = ssub.s32 %s24, %s36
      %s118 = ssub.s32 %s25, %s32
      %s119 = sor.u32 %s117, %s118
      %p120 = scmp.eq.s32.totalorder %s119, 0
      %s122 = sadd.s32 %s121, 1
      %s123 = scalar_select %p120, %s121, %s122
      %p126 = pneg %p120
      %p127 = scmp.eq.s32.totalorder %s17, 1
      %p128 = por %p126, %p127
      %p129 = scmp.ne.s32.totalorder %s121, %s124
      %p130 = scmp.eq.s32.totalorder %s17, 0
      %p131 = por %p129, %p130
      %p132 = scmp.ne.s32.totalorder %s121, %s124
      %p133 = scmp.eq.s32.totalorder %s22, 1
      %p134 = por %p132, %p133
      %p135 = scmp.ne.s32.totalorder %s124, %s125
      %p136 = scmp.eq.s32.totalorder %s22, 0
      %p137 = por %p135, %p136
      %p138 = scmp.ne.s32.totalorder %s124, %s125
      %p139 = scmp.eq.s32.totalorder %s23, 1
      %p140 = por %p138, %p139
      %p142 = scmp.ne.s32.totalorder %s125, %s141
      %p143 = scmp.eq.s32.totalorder %s23, 0
      %p144 = por %p142, %p143
      %s145 = ssub.s32 %s24, %s36
      %s146 = ssub.s32 %s25, %s32
      %s147 = sor.u32 %s145, %s146
      %p148 = scmp.eq.s32.totalorder %s147, 0
      %s150 = sadd.s32 %s149, 1
      %s151 = scalar_select %p148, %s149, %s150
      %p154 = pneg %p148
      %p155 = scmp.eq.s32.totalorder %s17, 1
      %p156 = por %p154, %p155
      %p157 = scmp.ne.s32.totalorder %s149, %s152
      %p158 = scmp.eq.s32.totalorder %s17, 0
      %p159 = por %p157, %p158
      %p160 = scmp.ne.s32.totalorder %s149, %s152
      %p161 = scmp.eq.s32.totalorder %s22, 1
      %p162 = por %p160, %p161
      %p163 = scmp.ne.s32.totalorder %s152, %s153
      %p164 = scmp.eq.s32.totalorder %s22, 0
      %p165 = por %p163, %p164
      %p166 = scmp.ne.s32.totalorder %s152, %s153
      %p167 = scmp.eq.s32.totalorder %s23, 1
      %p168 = por %p166, %p167
      %p170 = scmp.ne.s32.totalorder %s153, %s169
      %p171 = scmp.eq.s32.totalorder %s23, 0
      %p172 = por %p170, %p171
      %s174 = sadd.s32 %s173, 1
      %p177 = scmp.eq.s32.totalorder %s17, 1
      %p178 = scmp.ne.s32.totalorder %s173, %s175
      %p179 = scmp.eq.s32.totalorder %s17, 0
      %p180 = por %p178, %p179
      %p181 = scmp.ne.s32.totalorder %s173, %s175
      %p182 = scmp.eq.s32.totalorder %s22, 1
      %p183 = por %p181, %p182
      %p184 = scmp.ne.s32.totalorder %s175, %s176
      %p185 = scmp.eq.s32.totalorder %s22, 0
      %p186 = por %p184, %p185
      %p187 = scmp.ne.s32.totalorder %s175, %s176
      %p188 = scmp.eq.s32.totalorder %s23, 1
      %p189 = por %p187, %p188
      %p191 = scmp.ne.s32.totalorder %s176, %s190
      %p192 = scmp.eq.s32.totalorder %s23, 0
      %p193 = por %p191, %p192
      %s195 = sadd.s32 %s194, 1
      %p198 = scmp.eq.s32.totalorder %s17, 1
      %p199 = scmp.ne.s32.totalorder %s194, %s196
      %p200 = scmp.eq.s32.totalorder %s17, 0
      %p201 = por %p199, %p200
      %p202 = scmp.ne.s32.totalorder %s194, %s196
      %p203 = scmp.eq.s32.totalorder %s22, 1
      %p204 = por %p202, %p203
      %p205 = scmp.ne.s32.totalorder %s196, %s197
      %p206 = scmp.eq.s32.totalorder %s22, 0
      %p207 = por %p205, %p206
      %p208 = scmp.ne.s32.totalorder %s196, %s197
      %p209 = scmp.eq.s32.totalorder %s23, 1
      %p210 = por %p208, %p209
      %p212 = scmp.ne.s32.totalorder %s197, %s211
      %p213 = scmp.eq.s32.totalorder %s23, 0
      %p214 = por %p212, %p213
      %s215 = ssub.s32 %s24, %s36
      %s216 = ssub.s32 %s25, %s32
      %s217 = sor.u32 %s215, %s216
      %p218 = scmp.eq.s32.totalorder %s217, 0
      %s220 = sadd.s32 %s219, 1
      %s221 = scalar_select %p218, %s219, %s220
      %p224 = pneg %p218
      %p225 = scmp.eq.s32.totalorder %s17, 1
      %p226 = por %p224, %p225
      %p227 = scmp.ne.s32.totalorder %s219, %s222
      %p228 = scmp.eq.s32.totalorder %s17, 0
      %p229 = por %p227, %p228
      %p230 = scmp.ne.s32.totalorder %s219, %s222
      %p231 = scmp.eq.s32.totalorder %s22, 1
      %p232 = por %p230, %p231
      %p233 = scmp.ne.s32.totalorder %s222, %s223
      %p234 = scmp.eq.s32.totalorder %s22, 0
      %p235 = por %p233, %p234
      %p236 = scmp.ne.s32.totalorder %s222, %s223
      %p237 = scmp.eq.s32.totalorder %s23, 1
      %p238 = por %p236, %p237
      %p240 = scmp.ne.s32.totalorder %s223, %s239
      %p241 = scmp.eq.s32.totalorder %s23, 0
      %p242 = por %p240, %p241
      %p243 = scmp.le.s32.totalorder 1, %s17
      %p244 = scmp.lt.s32.totalorder %s17, 3
      %p245 = pnand %p243, %p244
      %p246 = pneg %p245
      // Predicated region
      $region9: #{_lambda_.13} parent=5 // pred_check
        _
      $region10: #{_lambda_.13} parent=5 // pred_check_branch
        %248 = sbr.rel (%p245) target = $region12
      $region11: #{_lambda_.13} parent=5 // pred_region
        %s249 = ssub.s32 %s17, 1
        // Predicated region
        $region13: #{_lambda_.13} parent=11 // pred_check
          %p250 = pneg %p186
        $region14: #{_lambda_.13} parent=11 // pred_check_branch
          %252 = sbr.rel (%p250) target = $region16
        $region15: #{_lambda_.13} parent=11 // pred_region
          %254 = vsyncadd [#allocation6], 0
          %s255 = sshll.u32 %s5, 4
          %s256 = int_to_ptr.hbm [resolvable:$true] %s255
          %s257 = sshll.u32 [#allocation5], 4
          %s258 = int_to_ptr.vmem [resolvable:$true] %s257
          %263 = dma.hbm_to_vmem [thread:$0]  %s256, 256, %s258, [#allocation6], 64, 64, 4
        $region16: #{_lambda_.13} parent=11 // pred_fallthru
          _
        // Predicated region
        $region17: #{_lambda_.13} parent=11 // pred_check
          %p264 = pneg %p207
        $region18: #{_lambda_.13} parent=11 // pred_check_branch
          %266 = sbr.rel (%p264) target = $region20
        $region19: #{_lambda_.13} parent=11 // pred_region
          _
        $region20: #{_lambda_.13} parent=11 // pred_fallthru
          _
      $region12: #{_lambda_.13} parent=5 // pred_fallthru
        _
      %p267 = scmp.lt.s32.totalorder %s17, 2
      // Predicated region
      $region21: #{_lambda_.13} parent=5 // pred_check
        %p268 = pneg %p267
      $region22: #{_lambda_.13} parent=5 // pred_check_branch
        %270 = sbr.rel (%p268) target = $region24
      $region23: #{_lambda_.13} parent=5 // pred_region
        // Predicated region
        $region25: #{_lambda_.13} parent=23 // pred_check
          %p271 = pneg %p51
        $region26: #{_lambda_.13} parent=23 // pred_check_branch
          %273 = sbr.rel (%p271) target = $region28
        $region27: #{_lambda_.13} parent=23 // pred_region
          %p274 = scmp.lt.s32.totalorder %s24, 1
          %s275 = scalar_select %p274, %s24, 1
          %p276 = scmp.lt.s32.totalorder %s25, 0
          %s277 = scalar_select %p276, %s25, 0
          %s278 = sadd.s32 %s277, %s275
          %s279 = smul.addr %s278, 4
          %s280 = scalar_lea.vmem %s0, %s279
        $region28: #{_lambda_.13} parent=23 // pred_fallthru
          _
        // Predicated region
        $region29: #{_lambda_.13} parent=23 // pred_check
          %p281 = pneg %p77
        $region30: #{_lambda_.13} parent=23 // pred_check_branch
          %283 = sbr.rel (%p281) target = $region32
        $region31: #{_lambda_.13} parent=23 // pred_region
          %p284 = scmp.lt.s32.totalorder %s24, 1
          %s285 = scalar_select %p284, %s24, 1
          %s286 = smul.addr %s285, 4
          %s287 = scalar_lea.vmem %s1, %s286
        $region32: #{_lambda_.13} parent=23 // pred_fallthru
          _
        // Predicated region
        $region33: #{_lambda_.13} parent=23 // pred_check
          %p288 = pneg %p103
        $region34: #{_lambda_.13} parent=23 // pred_check_branch
          %290 = sbr.rel (%p288) target = $region36
        $region35: #{_lambda_.13} parent=23 // pred_region
          %p291 = scmp.lt.s32.totalorder %s24, 1
          %s292 = scalar_select %p291, %s24, 1
          %s293 = smul.addr %s292, 4
          %s294 = scalar_lea.vmem %s2, %s293
        $region36: #{_lambda_.13} parent=23 // pred_fallthru
          _
        // Predicated region
        $region37: #{_lambda_.13} parent=23 // pred_check
          %p295 = pneg %p131
        $region38: #{_lambda_.13} parent=23 // pred_check_branch
          %297 = sbr.rel (%p295) target = $region40
        $region39: #{_lambda_.13} parent=23 // pred_region
          %p298 = scmp.lt.s32.totalorder %s24, 1
          %s299 = scalar_select %p298, %s24, 1
          %p300 = scmp.lt.s32.totalorder %s25, 0
          %s301 = scalar_select %p300, %s25, 0
          %s302 = sadd.s32 %s301, %s299
          %s303 = smul.addr %s302, 4
          %s304 = scalar_lea.vmem %s3, %s303
        $region40: #{_lambda_.13} parent=23 // pred_fallthru
          _
        // Predicated region
        $region41: #{_lambda_.13} parent=23 // pred_check
          %p305 = pneg %p159
        $region42: #{_lambda_.13} parent=23 // pred_check_branch
          %307 = sbr.rel (%p305) target = $region44
        $region43: #{_lambda_.13} parent=23 // pred_region
          %s308 = sand.u32 %s149, 1
          %s309 = scalar_lea.sflag [#allocation4], %s308
          %s310 = sand.u32 %s149, 1
          %s311 = smul.addr %s310, 8
          %s312 = scalar_lea.vmem [#allocation3], %s311
          %314 = vsyncadd %s309, 0
          %s315 = sadd.s32 %s25, %s24
          %s316 = smul.addr %s315, 8
          %s317 = scalar_lea.hbm %s4, %s316
          %s319 = sshll.u32 %s317, 4
          %s320 = int_to_ptr.hbm [resolvable:$true] %s319
          %s321 = sshll.u32 %s312, 4
          %s322 = int_to_ptr.vmem [resolvable:$true] %s321
          %324 = dma.hbm_to_vmem [thread:$0]  %s320, 128, %s322, %s309
        $region44: #{_lambda_.13} parent=23 // pred_fallthru
          _
      $region24: #{_lambda_.13} parent=5 // pred_fallthru
        _
      %p325 = scmp.le.s32.totalorder 1, %s17
      %p326 = scmp.lt.s32.totalorder %s17, 3
      %p327 = pnand %p325, %p326
      %p328 = pneg %p327
      // Predicated region
      $region45: #{_lambda_.13} parent=5 // pred_check
        _
      $region46: #{_lambda_.13} parent=5 // pred_check_branch
        %330 = sbr.rel (%p327) target = $region48
      $region47: #{_lambda_.13} parent=5 // pred_region
        %s331 = ssub.s32 %s17, 1
        %s332 = sand.u32 %s152, 1
        %s333 = scalar_lea.sflag [#allocation4], %s332
        %s334 = sand.u32 %s152, 1
        %s335 = smul.addr %s334, 8
        %s336 = scalar_lea.vmem [#allocation3], %s335
        // Predicated region
        $region49: #{_lambda_.13} parent=47 // pred_check
          %p337 = pneg %p165
        $region50: #{_lambda_.13} parent=47 // pred_check_branch
          %339 = sbr.rel (%p337) target = $region52
        $region51: #{_lambda_.13} parent=47 // pred_region
          %341 = dma.done %s333, 128
        $region52: #{_lambda_.13} parent=47 // pred_fallthru
          _
        // Predicated region
        $region53: #{_lambda_.13} parent=47 // pred_check
          %p342 = pneg %p186
        $region54: #{_lambda_.13} parent=47 // pred_check_branch
          %344 = sbr.rel (%p342) target = $region56
        $region55: #{_lambda_.13} parent=47 // pred_region
          %346 = dma.done [#allocation6], 256
        $region56: #{_lambda_.13} parent=47 // pred_fallthru
          _
        %p347 = scmp.lt.s32.totalorder %s26, 1
        %s348 = scalar_select %p347, %s26, 1
        %p349 = scmp.lt.s32.totalorder %s27, 0
        %s350 = scalar_select %p349, %s27, 0
        %s351 = sadd.s32 %s350, %s348
        %s352 = smul.addr %s351, 4
        %s353 = scalar_lea.vmem %s0, %s352
        %p354 = pneg %p57
        %p355 = pneg %p54
        %p356 = scmp.lt.s32.totalorder %s26, 1
        %s357 = scalar_select %p356, %s26, 1
        %s358 = smul.addr %s357, 4
        %s359 = scalar_lea.vmem %s1, %s358
        %p360 = pneg %p83
        %p361 = pneg %p80
        %p362 = scmp.lt.s32.totalorder %s26, 1
        %s363 = scalar_select %p362, %s26, 1
        %s364 = smul.addr %s363, 4
        %s365 = scalar_lea.vmem %s2, %s364
        %p366 = pneg %p109
        %p367 = pneg %p106
        %p368 = scmp.lt.s32.totalorder %s26, 1
        %s369 = scalar_select %p368, %s26, 1
        %p370 = scmp.lt.s32.totalorder %s27, 0
        %s371 = scalar_select %p370, %s27, 0
        %s372 = sadd.s32 %s371, %s369
        %s373 = smul.addr %s372, 4
        %s374 = scalar_lea.vmem %s3, %s373
        %p375 = pneg %p137
        %p376 = pneg %p134
        %s377 = sand.u32 %s152, 1
        %s378 = scalar_lea.sflag [#allocation4], %s377
        %s379 = sand.u32 %s152, 1
        %s380 = smul.addr %s379, 8
        %s381 = scalar_lea.vmem [#allocation3], %s380
        %p382 = pneg %p165
        %p383 = pneg %p162
        %p384 = pneg %p186
        %p385 = pneg %p183
        %p386 = pneg %p207
        %p387 = pneg %p204
        %p388 = pneg %p235
        %p389 = pneg %p232
        %p390 = scmp.lt.s32.totalorder %s26, 1
        %s391 = scalar_select %p390, %s26, 1
        %p392 = scmp.lt.s32.totalorder %s27, 0
        %s393 = scalar_select %p392, %s27, 0
        %s394 = sadd.s32 %s393, %s391
        %s395 = smul.addr %s394, 8
        %s396 = scalar_lea.vmem %s7, %s395
        %p397 = scmp.lt.s32.totalorder %s26, 1
        %s398 = scalar_select %p397, %s26, 1
        %p399 = scmp.lt.s32.totalorder %s27, 0
        %s400 = scalar_select %p399, %s27, 0
        %s401 = sadd.s32 %s400, %s398
        %s402 = smul.addr %s401, 4
        %s403 = scalar_lea.vmem %s0, %s402
        %p404 = scmp.lt.s32.totalorder %s26, 1
        %s405 = scalar_select %p404, %s26, 1
        %s406 = smul.addr %s405, 4
        %s407 = scalar_lea.vmem %s1, %s406
        %p408 = scmp.lt.s32.totalorder %s26, 1
        %s409 = scalar_select %p408, %s26, 1
        %s410 = smul.addr %s409, 4
        %s411 = scalar_lea.vmem %s2, %s410
        %p412 = scmp.lt.s32.totalorder %s26, 1
        %s413 = scalar_select %p412, %s26, 1
        %p414 = scmp.lt.s32.totalorder %s27, 0
        %s415 = scalar_select %p414, %s27, 0
        %s416 = sadd.s32 %s415, %s413
        %s417 = smul.addr %s416, 4
        %s418 = scalar_lea.vmem %s3, %s417
        %p419 = scmp.lt.s32.totalorder %s26, 1
        %s420 = scalar_select %p419, %s26, 1
        %p421 = scmp.lt.s32.totalorder %s27, 0
        %s422 = scalar_select %p421, %s27, 0
        %s423 = sadd.s32 %s422, %s420
        %s424 = smul.addr %s423, 8
        %s425 = scalar_lea.vmem %s7, %s424
        %v427 = vld [vmem:[%s403] sm:$0xf]
        %v428 = vld [vmem:[%s407] sm:$0xf]
        %v429 = vld [vmem:[%s411] sm:$0xf]
        %v430 = vld [vmem:[%s418] sm:$0xf]
        %v431 = vunpack.c.l.bf16 %v430
        %v432 = vsub.f32 %v431, 1.0
        %v433 = vmul.f32 %v432, 1e+09
        %vm434 = vcmask 130048
        %v436 = vsel %vm434, %v427, 0
        %v439 = vsel %vm434, %v428, 0
        %441 = vmatpush.bf16.xpose.msra.mxu0 0
        %442 = vmatpush.bf16.xpose.msra.mxu0 0
        %443 = vmatpush.bf16.xpose.msra.mxu0 0
        %444 = vmatpush.bf16.xpose.msra.mxu0 0
        %445 = vmatpush.bf16.xpose.msra.mxu0 0
        %446 = vmatpush.bf16.xpose.msra.mxu0 0
        %447 = vmatpush.bf16.xpose.msra.mxu0 0
        %448 = vmatpush.bf16.xpose.msra.mxu0 %v439
        %449 = vmatmul.bf16.gmra.mxu0 %v436
        %v450 = vpop.f32.mrf.mxu0
        %v451 = vadd.f32 0.0, %v450
        %v452 = vpop.f32.mrf.mxu0
        %453 = vdwg.mxu0
        %v454 = vmul.f32 %v451, 0.25
        %v455 = vadd.f32 %v454, %v433
        %vm456 = vcmask 64512
        %v457 = vsel %vm456, %v455, -inf
        %458 = vmax.xlane.f32.xlu0 %v457
        %v459 = vpop.xlane.xlu0 %458
        %v460 = vsub.f32 %v455, %v459
        %v461 = vmul.f32 %v460, 1.442695
        %v462 = vpow.pop %v461
        %v463 = vsel %vm456, %v462, 0.0
        %464 = vadd.xlane.f32.xlu0 %v463
        %v465 = vpop.xlane.xlu0 %464
        %v466 = vrcp.pop %v465
        %v467 = vmul.f32 %v462, %v466
        %v468 = vpack.c.bf16 %v467, %v467
        %v470 = vsel %vm456, %v468, 0
        %vm472 = vcmask 1043456
        %v474 = vsel %vm472, %v429, 0
        %476 = vmatpush.bf16.msra.mxu0 0
        %477 = vmatpush.bf16.msra.mxu0 0
        %478 = vmatpush.bf16.msra.mxu0 0
        %479 = vmatpush.bf16.msra.mxu0 0
        %480 = vmatpush.bf16.msra.mxu0 0
        %481 = vmatpush.bf16.msra.mxu0 0
        %482 = vmatpush.bf16.msra.mxu0 0
        %483 = vmatpush.bf16.msra.mxu0 %v474
        %484 = vmatmul.bf16.gmra.mxu0 %v470
        %v485 = vpop.f32.mrf.mxu0
        %v486 = vadd.f32 0.0, %v485
        %v487 = vpop.f32.mrf.mxu0
        %488 = vdwg.mxu0
        %489 = vst.msk [vmem:[#allocation2] sm:$0xff] %vm434, %v486
        %v491 = vunpack.c.l.b16 %v427
        %v492 = vpack.c.b16 %v491, %v491
        %493 = vrot.lane.b32.xlu0 %v492, 112
        %v494 = vpop.permute.xlu0 %493
        %v496 = vunpack.c.l.b16 %v428
        %v497 = vpack.c.b16 %v496, %v496
        %498 = vrot.lane.b32.xlu0 %v497, 112
        %v499 = vpop.permute.xlu0 %498
        %v501 = vsel %vm434, %v494, 0
        %v504 = vsel %vm434, %v499, 0
        %506 = vmatpush.bf16.xpose.msra.mxu0 0
        %507 = vmatpush.bf16.xpose.msra.mxu0 0
        %508 = vmatpush.bf16.xpose.msra.mxu0 0
        %509 = vmatpush.bf16.xpose.msra.mxu0 0
        %510 = vmatpush.bf16.xpose.msra.mxu0 0
        %511 = vmatpush.bf16.xpose.msra.mxu0 0
        %512 = vmatpush.bf16.xpose.msra.mxu0 0
        %513 = vmatpush.bf16.xpose.msra.mxu0 %v504
        %514 = vmatmul.bf16.gmra.mxu0 %v501
        %v515 = vpop.f32.mrf.mxu0
        %v516 = vadd.f32 0.0, %v515
        %v517 = vpop.f32.mrf.mxu0
        %518 = vdwg.mxu0
        %v519 = vmul.f32 %v516, 0.25
        %v520 = vadd.f32 %v519, %v433
        %v521 = vsel %vm456, %v520, -inf
        %522 = vmax.xlane.f32.xlu0 %v521
        %v523 = vpop.xlane.xlu0 %522
        %v524 = vsub.f32 %v520, %v523
        %v525 = vmul.f32 %v524, 1.442695
        %v526 = vpow.pop %v525
        %v527 = vsel %vm456, %v526, 0.0
        %528 = vadd.xlane.f32.xlu0 %v527
        %v529 = vpop.xlane.xlu0 %528
        %v530 = vrcp.pop %v529
        %v531 = vmul.f32 %v526, %v530
        %v532 = vpack.c.bf16 %v531, %v531
        %v534 = vunpack.c.l.b16 %v429
        %v535 = vpack.c.b16 %v534, %v534
        %536 = vrot.lane.b32.xlu0 %v535, 112
        %v537 = vpop.permute.xlu0 %536
        %v539 = vsel %vm456, %v532, 0
        %v542 = vsel %vm472, %v537, 0
        %544 = vmatpush.bf16.msra.mxu0 0
        %545 = vmatpush.bf16.msra.mxu0 0
        %546 = vmatpush.bf16.msra.mxu0 0
        %547 = vmatpush.bf16.msra.mxu0 0
        %548 = vmatpush.bf16.msra.mxu0 0
        %549 = vmatpush.bf16.msra.mxu0 0
        %550 = vmatpush.bf16.msra.mxu0 0
        %551 = vmatpush.bf16.msra.mxu0 %v542
        %552 = vmatmul.bf16.gmra.mxu0 %v539
        %v553 = vpop.f32.mrf.mxu0
        %v554 = vadd.f32 0.0, %v553
        %v555 = vpop.f32.mrf.mxu0
        %556 = vdwg.mxu0
        %558 = vrot.lane.b32.xlu0 %v554, 16
        %v559 = vpop.permute.xlu0 %558
        %vm561 = vcmask 261248
        %562 = vst.msk [vmem:[#allocation2] sm:$0xff] %vm561, %v559
        %v563 = vld [vmem:[%s336] sm:$0xff]
        %v564 = vld [vmem:[%s6] sm:$0x1]
        %v566 = vperm.slane %v564, 0
        %v568 = vadd.f32 %v563, %v566
        %v569 = vld [vmem:[#allocation2] sm:$0xff]
        %v570 = vpack.c.bf16 %v569, %v569
        %v571 = vld [vmem:[#allocation5] sm:$0xf]
        %v572 = vld [vmem:[#allocation5 + $0x4] sm:$0xf]
        %v573 = vld [vmem:[#allocation5 + $0x8] sm:$0xf]
        %v574 = vld [vmem:[#allocation5 + $0xc] sm:$0xf]
        %v579 = vunpack.c.l.b16 %v571
        %v580 = vunpack.c.l.b16 %v572
        %v581 = vunpack.c.l.b16 %v573
        %v582 = vunpack.c.l.b16 %v574
        %v583 = vpack.c.b16 %v580, %v579
        %v584 = vpack.c.b16 %v582, %v581
        %vm587 = vcmask 261120
        %v589 = vsel %vm587, %v570, 0
        %591 = vmatpush.bf16.msra.mxu0 0
        %592 = vmatpush.bf16.msra.mxu0 0
        %593 = vmatpush.bf16.msra.mxu0 0
        %594 = vmatpush.bf16.msra.mxu0 0
        %595 = vmatpush.bf16.msra.mxu0 0
        %596 = vmatpush.bf16.msra.mxu0 0
        %597 = vmatpush.bf16.msra.mxu0 %v584
        %598 = vmatpush.bf16.msra.mxu0 %v583
        %599 = vmatmul.bf16.gmra.mxu0 %v589
        %v600 = vpop.f32.mrf.mxu0
        %v601 = vadd.f32 0.0, %v600
        %v602 = vpop.f32.mrf.mxu0
        %603 = vdwg.mxu0
        %v604 = vadd.f32 %v568, %v601
        %605 = vst.msk [vmem:[%s425] sm:$0xff] %vm587, %v604
        %p606 = scmp.lt.s32.totalorder %s26, 1
        %s607 = scalar_select %p606, %s26, 1
        %p608 = scmp.lt.s32.totalorder %s27, 0
        %s609 = scalar_select %p608, %s27, 0
        %s610 = sadd.s32 %s609, %s607
        %s611 = smul.addr %s610, 8
        %s612 = scalar_lea.vmem %s7, %s611
        // Predicated region
        $region57: #{_lambda_.13} parent=47 // pred_check
          %p613 = pneg %p232
        $region58: #{_lambda_.13} parent=47 // pred_check_branch
          %615 = sbr.rel (%p613) target = $region60
        $region59: #{_lambda_.13} parent=47 // pred_region
          _
        $region60: #{_lambda_.13} parent=47 // pred_fallthru
          _
      $region48: #{_lambda_.13} parent=5 // pred_fallthru
        _
      %p616 = scmp.le.s32.totalorder 2, %s17
      // Predicated region
      $region61: #{_lambda_.13} parent=5 // pred_check
        %p617 = pneg %p616
      $region62: #{_lambda_.13} parent=5 // pred_check_branch
        %619 = sbr.rel (%p617) target = $region64
      $region63: #{_lambda_.13} parent=5 // pred_region
        %s620 = ssub.s32 %s17, 2
        // Predicated region
        $region65: #{_lambda_.13} parent=63 // pred_check
          %p621 = pneg %p238
        $region66: #{_lambda_.13} parent=63 // pred_check_branch
          %623 = sbr.rel (%p621) target = $region68
        $region67: #{_lambda_.13} parent=63 // pred_region
          %p624 = scmp.lt.s32.totalorder %s28, 1
          %s625 = scalar_select %p624, %s28, 1
          %p626 = scmp.lt.s32.totalorder %s29, 0
          %s627 = scalar_select %p626, %s29, 0
          %s628 = sadd.s32 %s627, %s625
          %s629 = smul.addr %s628, 8
          %s630 = scalar_lea.vmem %s7, %s629
        $region68: #{_lambda_.13} parent=63 // pred_fallthru
          _
      $region64: #{_lambda_.13} parent=5 // pred_fallthru
        _
    $region6: #{_lambda_.13} parent=1 // loop_footer
      %s21 = sadd.s32 1, %s17
    $region7: #{_lambda_.13} parent=1 // loop_footer_branch
      %16 = sbr.rel target = $region3
    $region8: #{_lambda_.13} parent=1 // loop_exit
      _
    %631 = vsyncpa [#allocation4], 1
    %s632 = scalar_lea.sflag [#allocation4], 1
    %633 = vsyncpa %s632, 1
    %634 = vsyncpa [#allocation6], 1

// kernel: _lambda_.14
$region0: #{_lambda_.14}
  #allocation0 [shape = 'u32[]', space=smem, size = 0x4, offset = 0x4, fixed_abs, tag = 'smem constant byte address 0x4 - core index']
  #allocation1 [shape = 'u32[72,128]{1,0:T(1,128)}', space=vmem, size = 0x9000, scoped, tag = 'internal scratch']
  %s0 = inlined_call_operand.vmem [shape: f32[16,32], index: 0, kind: input, shape index: {}]
  %s1 = inlined_call_operand.vmem [shape: f32[1,32], index: 1, kind: input, shape index: {}]
  %s2 = inlined_call_operand.vmem [shape: f32[1,32], index: 2, kind: input, shape index: {}, may-alias: {2,4}]
  %s3 = inlined_call_operand.hbm [shape: bf16[32,32], index: 3, kind: input, shape index: {}]
  %s4 = inlined_call_operand.vmem [shape: f32[1,32], index: 4, kind: input, shape index: {}, may-alias: {2,4}]
  %s5 = inlined_call_operand.vmem [shape: bf16[16,32], index: 5, kind: output, shape index: {}]
  %s6 = sld [smem:[#allocation0]]
  $region34: #{_lambda_.14} parent=0
    _
  %s8 = ssub.s32 1, %s6
  %s9 = scalar_select 0, %s8, %s6
  $region1: #{_lambda_.14} parent=0
    #allocation2 [shape = 'u8[8192]{0}', space=vmem, size = 0x2000, scoped, tag = 'input window, operand 3, single buffered']
    #allocation3 [shape = 's32[1]{0}', space=sflag, size = 0x4, scoped, tag = 'scoped memory for _lambda_.14']
    %10 = vsyncpa [#allocation3], 0
    // Predicated region
    $region2: #{_lambda_.14} parent=1 // pred_check
      _
    $region3: #{_lambda_.14} parent=1 // pred_check_branch
      %12 = sbr.rel (0) target = $region5
    $region4: #{_lambda_.14} parent=1 // pred_region
      _
    $region5: #{_lambda_.14} parent=1 // pred_fallthru
      _
    // Predicated region
    $region6: #{_lambda_.14} parent=1 // pred_check
      _
    $region7: #{_lambda_.14} parent=1 // pred_check_branch
      %14 = sbr.rel (0) target = $region9
    $region8: #{_lambda_.14} parent=1 // pred_region
      _
    $region9: #{_lambda_.14} parent=1 // pred_fallthru
      _
    // Predicated region
    $region10: #{_lambda_.14} parent=1 // pred_check
      _
    $region11: #{_lambda_.14} parent=1 // pred_check_branch
      %16 = sbr.rel (0) target = $region13
    $region12: #{_lambda_.14} parent=1 // pred_region
      _
    $region13: #{_lambda_.14} parent=1 // pred_fallthru
      _
    // Predicated region
    $region14: #{_lambda_.14} parent=1 // pred_check
      _
    $region15: #{_lambda_.14} parent=1 // pred_check_branch
      %18 = sbr.rel (0) target = $region17
    $region16: #{_lambda_.14} parent=1 // pred_region
      %20 = vsyncadd [#allocation3], 0
      %s21 = sshll.u32 %s3, 4
      %s22 = int_to_ptr.hbm [resolvable:$true] %s21
      %s23 = sshll.u32 [#allocation2], 4
      %s24 = int_to_ptr.vmem [resolvable:$true] %s23
      %29 = dma.hbm_to_vmem [thread:$0]  %s22, 256, %s24, [#allocation3], 64, 64, 4
    $region17: #{_lambda_.14} parent=1 // pred_fallthru
      _
    // Predicated region
    $region18: #{_lambda_.14} parent=1 // pred_check
      _
    $region19: #{_lambda_.14} parent=1 // pred_check_branch
      %31 = sbr.rel (0) target = $region21
    $region20: #{_lambda_.14} parent=1 // pred_region
      _
    $region21: #{_lambda_.14} parent=1 // pred_fallthru
      _
    // Predicated region
    $region22: #{_lambda_.14} parent=1 // pred_check
      _
    $region23: #{_lambda_.14} parent=1 // pred_check_branch
      %33 = sbr.rel (0) target = $region25
    $region24: #{_lambda_.14} parent=1 // pred_region
      %35 = dma.done [#allocation3], 256
    $region25: #{_lambda_.14} parent=1 // pred_fallthru
      _
    %v37 = vld [vmem:[%s0] sm:$0xff]
    %v38 = vld [vmem:[%s0 + $0x8] sm:$0xff]
    %v39 = vld [vmem:[%s1] sm:$0x1]
    %v40 = vld [vmem:[%s2] sm:$0x1]
    %vm41 = vcmask 261120
    %v42 = vsel %vm41, %v37, 0.0
    %43 = vadd.xlane.f32.xlu0 %v42
    %v44 = vpop.xlane.xlu0 %43
    %v45 = vsel %vm41, %v38, 0.0
    %46 = vadd.xlane.f32.xlu0 %v45
    %v47 = vpop.xlane.xlu0 %46
    %v48 = vrcp.pop 32.0
    %v49 = vmul.f32 32.0, %v48
    %v50 = vsub.f32 1.0, %v49
    %v51 = vmul.f32 %v48, %v50
    %v52 = vadd.f32 %v48, %v51
    %vm53 = vweird.f32 %v48
    %v54 = vsel %vm53, %v48, %v52
    %v55 = vmul.f32 %v44, %v54
    %v56 = vmul.f32 %v47, %v54
    %v57 = vsub.f32 %v37, %v55
    %v58 = vsub.f32 %v38, %v56
    %v59 = vmul.f32 %v57, %v57
    %v60 = vmul.f32 %v58, %v58
    %v61 = vsel %vm41, %v59, 0.0
    %62 = vadd.xlane.f32.xlu0 %v61
    %v63 = vpop.xlane.xlu0 %62
    %v64 = vsel %vm41, %v60, 0.0
    %65 = vadd.xlane.f32.xlu0 %v64
    %v66 = vpop.xlane.xlu0 %65
    %v67 = vmul.f32 %v63, 0.032258064
    %v68 = vmul.f32 %v66, 0.032258064
    %v69 = vrsqrt.pop %v67
    %v70 = vmul.f32 %v69, %v67
    %v71 = vmul.f32 %v70, %v69
    %v72 = vmul.f32 0.5, %v71
    %v73 = vsub.f32 1.5, %v72
    %v74 = vmul.f32 %v69, %v73
    %v75 = vmul.f32 %v67, %v74
    %vm76 = vcmp.eq.f32.partialorder %v67, inf
    %v77 = vsel %vm76, %v67, %v75
    %vm78 = vcmp.eq.f32.partialorder %v67, 0.0
    %v79 = vand.u32 %v67, 2147483648
    %v80 = vsel %vm78, %v79, %v77
    %v81 = vrsqrt.pop %v68
    %v82 = vmul.f32 %v81, %v68
    %v83 = vmul.f32 %v82, %v81
    %v84 = vmul.f32 0.5, %v83
    %v85 = vsub.f32 1.5, %v84
    %v86 = vmul.f32 %v81, %v85
    %v87 = vmul.f32 %v68, %v86
    %vm88 = vcmp.eq.f32.partialorder %v68, inf
    %v89 = vsel %vm88, %v68, %v87
    %vm90 = vcmp.eq.f32.partialorder %v68, 0.0
    %v91 = vand.u32 %v68, 2147483648
    %v92 = vsel %vm90, %v91, %v89
    %v93 = vadd.f32 %v80, 1e-06
    %v94 = vadd.f32 %v92, 1e-06
    %v95 = vrcp.pop %v93
    %v96 = vrcp.pop %v94
    %v98 = vperm.slane %v39, 0
    %v100 = vmul.f32 %v98, %v57
    %v101 = vmul.f32 %v98, %v58
    %v102 = vmul.f32 %v100, %v95
    %v103 = vmul.f32 %v101, %v96
    %v105 = vperm.slane %v40, 0
    %v107 = vadd.f32 %v102, %v105
    %v108 = vadd.f32 %v103, %v105
    %v109 = vpack.c.bf16 %v108, %v107
    %v110 = vld [vmem:[#allocation2] sm:$0xf]
    %v111 = vld [vmem:[#allocation2 + $0x4] sm:$0xf]
    %v112 = vld [vmem:[#allocation2 + $0x8] sm:$0xf]
    %v113 = vld [vmem:[#allocation2 + $0xc] sm:$0xf]
    %v114 = vld [vmem:[%s4] sm:$0x1]
    %v116 = vperm.slane %v114, 0
    %v122 = vunpack.c.l.b16 %v110
    %v123 = vunpack.c.l.b16 %v111
    %v124 = vunpack.c.l.b16 %v112
    %v125 = vunpack.c.l.b16 %v113
    %v126 = vpack.c.b16 %v123, %v122
    %v127 = vpack.c.b16 %v125, %v124
    %v131 = vsel %vm41, %v109, 0
    %133 = vmatpush.bf16.msra.mxu0 0
    %134 = vmatpush.bf16.msra.mxu0 0
    %135 = vmatpush.bf16.msra.mxu0 0
    %136 = vmatpush.bf16.msra.mxu0 0
    %137 = vmatpush.bf16.msra.mxu0 0
    %138 = vmatpush.bf16.msra.mxu0 0
    %139 = vmatpush.bf16.msra.mxu0 %v127
    %140 = vmatpush.bf16.msra.mxu0 %v126
    %141 = vmatmul.bf16.gmra.mxu0 %v131
    %v142 = vpop.f32.mrf.mxu0
    %v143 = vadd.f32 %v116, %v142
    %v144 = vpop.f32.mrf.mxu0
    %v145 = vadd.f32 %v116, %v144
    %146 = vdwg.mxu0
    %v147 = vpack.c.bf16 %v143, %v143
    %v148 = vpack.c.bf16 %v145, %v145
    %vm149 = vcmask 257024
    %150 = vst.msk [vmem:[%s5] sm:$0xf] %vm149, %v147
    %151 = vst.msk [vmem:[%s5 + $0x4] sm:$0xf] %vm149, %v148
    // Predicated region
    $region26: #{_lambda_.14} parent=1 // pred_check
      _
    $region27: #{_lambda_.14} parent=1 // pred_check_branch
      %153 = sbr.rel (0) target = $region29
    $region28: #{_lambda_.14} parent=1 // pred_region
      _
    $region29: #{_lambda_.14} parent=1 // pred_fallthru
      _
    // Predicated region
    $region30: #{_lambda_.14} parent=1 // pred_check
      _
    $region31: #{_lambda_.14} parent=1 // pred_check_branch
      %155 = sbr.rel (0) target = $region33
    $region32: #{_lambda_.14} parent=1 // pred_region
      _
    $region33: #{_lambda_.14} parent=1 // pred_fallthru
      _
    %156 = vsyncpa [#allocation3], 1

// kernel: _lambda_.16
$region0: #{_lambda_.16}
  #allocation0 [shape = 'u32[]', space=smem, size = 0x4, offset = 0x4, fixed_abs, tag = 'smem constant byte address 0x4 - core index']
  #allocation1 [shape = 'u32[72,128]{1,0:T(1,128)}', space=vmem, size = 0x9000, scoped, tag = 'internal scratch']
  #allocation2 [shape = 'f32[8,32]{1,0:T(8,128)}', space=vmem, size = 0x1000, scoped, tag = 'scratch operand']
  %s0 = inlined_call_operand.vmem [shape: bf16[2,8,32], index: 0, kind: input, shape index: {}]
  %s1 = inlined_call_operand.vmem [shape: bf16[2,8,32], index: 1, kind: input, shape index: {}]
  %s2 = inlined_call_operand.vmem [shape: bf16[2,8,32], index: 2, kind: input, shape index: {}]
  %s3 = inlined_call_operand.vmem [shape: bf16[2,8,8], index: 3, kind: input, shape index: {}]
  %s4 = inlined_call_operand.vmem [shape: f32[2,8,32], index: 4, kind: input, shape index: {}]
  %s5 = inlined_call_operand.hbm [shape: bf16[32,32], index: 5, kind: input, shape index: {}]
  %s6 = inlined_call_operand.vmem [shape: f32[1,32], index: 6, kind: input, shape index: {}]
  %s7 = inlined_call_operand.vmem [shape: f32[2,8,32], index: 7, kind: output, shape index: {}]
  %s8 = sld [smem:[#allocation0]]
  $region65: #{_lambda_.16} parent=0
    _
  %s10 = ssub.s32 1, %s8
  %s11 = scalar_select 0, %s10, %s8
  $region1: #{_lambda_.16} parent=0
    #allocation3 [shape = 'u8[8192]{0}', space=vmem, size = 0x2000, scoped, tag = 'input window, operand 5, single buffered']
    #allocation4 [shape = 's32[2]{0}', space=sflag, size = 0x8, scoped, tag = 'scoped memory for _lambda_.16']
    %12 = vsyncpa [#allocation4], 0
    loop: start=0, step=1, limit=4
    $region2: #{_lambda_.16} parent=1 // loop_pre_header
      _
    $region3: #{_lambda_.16} parent=1 // loop_header
      %s14 = sphi 0, %s18
      %p15 = scmp.ge.s32.totalorder %s14, 4
      %s21 = sphi 0, %s33
      %s22 = sphi 0, %s29
      %s23 = sphi 0, %s21
      %s24 = sphi 0, %s22
      %s25 = sphi 0, %s23
      %s26 = sphi 0, %s24
      %s38 = sphi 0, %s40
      %s41 = sphi 0, %s38
      %s42 = sphi 0, %s41
      %s58 = sphi 0, %s42
      %s64 = sphi 0, %s66
      %s67 = sphi 0, %s64
      %s68 = sphi 0, %s67
      %s84 = sphi 0, %s68
      %s90 = sphi 0, %s92
      %s93 = sphi 0, %s90
      %s94 = sphi 0, %s93
      %s110 = sphi 0, %s94
      %s118 = sphi 0, %s120
      %s121 = sphi 0, %s118
      %s122 = sphi 0, %s121
      %s138 = sphi 0, %s122
      %s146 = sphi 0, %s148
      %s149 = sphi 0, %s146
      %s150 = sphi 0, %s149
      %s166 = sphi 0, %s150
      %s170 = sphi 0, %s170
      %s172 = sphi 0, %s170
      %s173 = sphi 0, %s172
      %s187 = sphi 0, %s173
      %s191 = sphi 0, %s191
      %s193 = sphi 0, %s191
      %s194 = sphi 0, %s193
      %s208 = sphi 0, %s194
      %s216 = sphi 0, %s218
      %s219 = sphi 0, %s216
      %s220 = sphi 0, %s219
      %s236 = sphi 0, %s220
    $region4: #{_lambda_.16} parent=1 // loop_header_branch
      %17 = sbr.rel (%p15) target = $region8
    $region5: #{_lambda_.16} parent=1 // loop_body
      %s19 = ssub.s32 %s14, 1
      %s20 = ssub.s32 %s14, 2
      %s27 = sadd.s32 1, %s22
      %p28 = scmp.ge.s32.totalorder %s27, 1
      %s29 = scalar_select %p28, 0, %s27
      %s30 = sadd.s32 1, %s21
      %s31 = scalar_select %p28, %s30, %s21
      %p32 = scmp.ge.s32.totalorder %s31, 2
      %s33 = scalar_select %p32, 0, %s31
      %s34 = ssub.s32 %s21, %s33
      %s35 = ssub.s32 %s22, %s29
      %s36 = sor.u32 %s34, %s35
      %p37 = scmp.eq.s32.totalorder %s36, 0
      %s39 = sadd.s32 %s38, 1
      %s40 = scalar_select %p37, %s38, %s39
      %p43 = pneg %p37
      %p44 = scmp.eq.s32.totalorder %s14, 1
      %p45 = por %p43, %p44
      %p46 = scmp.ne.s32.totalorder %s38, %s41
      %p47 = scmp.eq.s32.totalorder %s14, 0
      %p48 = por %p46, %p47
      %p49 = scmp.ne.s32.totalorder %s38, %s41
      %p50 = scmp.eq.s32.totalorder %s19, 1
      %p51 = por %p49, %p50
      %p52 = scmp.ne.s32.totalorder %s41, %s42
      %p53 = scmp.eq.s32.totalorder %s19, 0
      %p54 = por %p52, %p53
      %p55 = scmp.ne.s32.totalorder %s41, %s42
      %p56 = scmp.eq.s32.totalorder %s20, 1
      %p57 = por %p55, %p56
      %p59 = scmp.ne.s32.totalorder %s42, %s58
      %p60 = scmp.eq.s32.totalorder %s20, 0
      %p61 = por %p59, %p60
      %s62 = ssub.s32 %s21, %s33
      %p63 = scmp.eq.s32.totalorder %s62, 0
      %s65 = sadd.s32 %s64, 1
      %s66 = scalar_select %p63, %s64, %s65
      %p69 = pneg %p63
      %p70 = scmp.eq.s32.totalorder %s14, 1
      %p71 = por %p69, %p70
      %p72 = scmp.ne.s32.totalorder %s64, %s67
      %p73 = scmp.eq.s32.totalorder %s14, 0
      %p74 = por %p72, %p73
      %p75 = scmp.ne.s32.totalorder %s64, %s67
      %p76 = scmp.eq.s32.totalorder %s19, 1
      %p77 = por %p75, %p76
      %p78 = scmp.ne.s32.totalorder %s67, %s68
      %p79 = scmp.eq.s32.totalorder %s19, 0
      %p80 = por %p78, %p79
      %p81 = scmp.ne.s32.totalorder %s67, %s68
      %p82 = scmp.eq.s32.totalorder %s20, 1
      %p83 = por %p81, %p82
      %p85 = scmp.ne.s32.totalorder %s68, %s84
      %p86 = scmp.eq.s32.totalorder %s20, 0
      %p87 = por %p85, %p86
      %s88 = ssub.s32 %s21, %s33
      %p89 = scmp.eq.s32.totalorder %s88, 0
      %s91 = sadd.s32 %s90, 1
      %s92 = scalar_select %p89, %s90, %s91
      %p95 = pneg %p89
      %p96 = scmp.eq.s32.totalorder %s14, 1
      %p97 = por %p95, %p96
      %p98 = scmp.ne.s32.totalorder %s90, %s93
      %p99 = scmp.eq.s32.totalorder %s14, 0
      %p100 = por %p98, %p99
      %p101 = scmp.ne.s32.totalorder %s90, %s93
      %p102 = scmp.eq.s32.totalorder %s19, 1
      %p103 = por %p101, %p102
      %p104 = scmp.ne.s32.totalorder %s93, %s94
      %p105 = scmp.eq.s32.totalorder %s19, 0
      %p106 = por %p104, %p105
      %p107 = scmp.ne.s32.totalorder %s93, %s94
      %p108 = scmp.eq.s32.totalorder %s20, 1
      %p109 = por %p107, %p108
      %p111 = scmp.ne.s32.totalorder %s94, %s110
      %p112 = scmp.eq.s32.totalorder %s20, 0
      %p113 = por %p111, %p112
      %s114 = ssub.s32 %s21, %s33
      %s115 = ssub.s32 %s22, %s29
      %s116 = sor.u32 %s114, %s115
      %p117 = scmp.eq.s32.totalorder %s116, 0
      %s119 = sadd.s32 %s118, 1
      %s120 = scalar_select %p117, %s118, %s119
      %p123 = pneg %p117
      %p124 = scmp.eq.s32.totalorder %s14, 1
      %p125 = por %p123, %p124
      %p126 = scmp.ne.s32.totalorder %s118, %s121
      %p127 = scmp.eq.s32.totalorder %s14, 0
      %p128 = por %p126, %p127
      %p129 = scmp.ne.s32.totalorder %s118, %s121
      %p130 = scmp.eq.s32.totalorder %s19, 1
      %p131 = por %p129, %p130
      %p132 = scmp.ne.s32.totalorder %s121, %s122
      %p133 = scmp.eq.s32.totalorder %s19, 0
      %p134 = por %p132, %p133
      %p135 = scmp.ne.s32.totalorder %s121, %s122
      %p136 = scmp.eq.s32.totalorder %s20, 1
      %p137 = por %p135, %p136
      %p139 = scmp.ne.s32.totalorder %s122, %s138
      %p140 = scmp.eq.s32.totalorder %s20, 0
      %p141 = por %p139, %p140
      %s142 = ssub.s32 %s21, %s33
      %s143 = ssub.s32 %s22, %s29
      %s144 = sor.u32 %s142, %s143
      %p145 = scmp.eq.s32.totalorder %s144, 0
      %s147 = sadd.s32 %s146, 1
      %s148 = scalar_select %p145, %s146, %s147
      %p151 = pneg %p145
      %p152 = scmp.eq.s32.totalorder %s14, 1
      %p153 = por %p151, %p152
      %p154 = scmp.ne.s32.totalorder %s146, %s149
      %p155 = scmp.eq.s32.totalorder %s14, 0
      %p156 = por %p154, %p155
      %p157 = scmp.ne.s32.totalorder %s146, %s149
      %p158 = scmp.eq.s32.totalorder %s19, 1
      %p159 = por %p157, %p158
      %p160 = scmp.ne.s32.totalorder %s149, %s150
      %p161 = scmp.eq.s32.totalorder %s19, 0
      %p162 = por %p160, %p161
      %p163 = scmp.ne.s32.totalorder %s149, %s150
      %p164 = scmp.eq.s32.totalorder %s20, 1
      %p165 = por %p163, %p164
      %p167 = scmp.ne.s32.totalorder %s150, %s166
      %p168 = scmp.eq.s32.totalorder %s20, 0
      %p169 = por %p167, %p168
      %s171 = sadd.s32 %s170, 1
      %p174 = scmp.eq.s32.totalorder %s14, 1
      %p175 = scmp.ne.s32.totalorder %s170, %s172
      %p176 = scmp.eq.s32.totalorder %s14, 0
      %p177 = por %p175, %p176
      %p178 = scmp.ne.s32.totalorder %s170, %s172
      %p179 = scmp.eq.s32.totalorder %s19, 1
      %p180 = por %p178, %p179
      %p181 = scmp.ne.s32.totalorder %s172, %s173
      %p182 = scmp.eq.s32.totalorder %s19, 0
      %p183 = por %p181, %p182
      %p184 = scmp.ne.s32.totalorder %s172, %s173
      %p185 = scmp.eq.s32.totalorder %s20, 1
      %p186 = por %p184, %p185
      %p188 = scmp.ne.s32.totalorder %s173, %s187
      %p189 = scmp.eq.s32.totalorder %s20, 0
      %p190 = por %p188, %p189
      %s192 = sadd.s32 %s191, 1
      %p195 = scmp.eq.s32.totalorder %s14, 1
      %p196 = scmp.ne.s32.totalorder %s191, %s193
      %p197 = scmp.eq.s32.totalorder %s14, 0
      %p198 = por %p196, %p197
      %p199 = scmp.ne.s32.totalorder %s191, %s193
      %p200 = scmp.eq.s32.totalorder %s19, 1
      %p201 = por %p199, %p200
      %p202 = scmp.ne.s32.totalorder %s193, %s194
      %p203 = scmp.eq.s32.totalorder %s19, 0
      %p204 = por %p202, %p203
      %p205 = scmp.ne.s32.totalorder %s193, %s194
      %p206 = scmp.eq.s32.totalorder %s20, 1
      %p207 = por %p205, %p206
      %p209 = scmp.ne.s32.totalorder %s194, %s208
      %p210 = scmp.eq.s32.totalorder %s20, 0
      %p211 = por %p209, %p210
      %s212 = ssub.s32 %s21, %s33
      %s213 = ssub.s32 %s22, %s29
      %s214 = sor.u32 %s212, %s213
      %p215 = scmp.eq.s32.totalorder %s214, 0
      %s217 = sadd.s32 %s216, 1
      %s218 = scalar_select %p215, %s216, %s217
      %p221 = pneg %p215
      %p222 = scmp.eq.s32.totalorder %s14, 1
      %p223 = por %p221, %p222
      %p224 = scmp.ne.s32.totalorder %s216, %s219
      %p225 = scmp.eq.s32.totalorder %s14, 0
      %p226 = por %p224, %p225
      %p227 = scmp.ne.s32.totalorder %s216, %s219
      %p228 = scmp.eq.s32.totalorder %s19, 1
      %p229 = por %p227, %p228
      %p230 = scmp.ne.s32.totalorder %s219, %s220
      %p231 = scmp.eq.s32.totalorder %s19, 0
      %p232 = por %p230, %p231
      %p233 = scmp.ne.s32.totalorder %s219, %s220
      %p234 = scmp.eq.s32.totalorder %s20, 1
      %p235 = por %p233, %p234
      %p237 = scmp.ne.s32.totalorder %s220, %s236
      %p238 = scmp.eq.s32.totalorder %s20, 0
      %p239 = por %p237, %p238
      %p240 = scmp.le.s32.totalorder 1, %s14
      %p241 = scmp.lt.s32.totalorder %s14, 3
      %p242 = pnand %p240, %p241
      %p243 = pneg %p242
      // Predicated region
      $region9: #{_lambda_.16} parent=5 // pred_check
        _
      $region10: #{_lambda_.16} parent=5 // pred_check_branch
        %245 = sbr.rel (%p242) target = $region12
      $region11: #{_lambda_.16} parent=5 // pred_region
        %s246 = ssub.s32 %s14, 1
        // Predicated region
        $region13: #{_lambda_.16} parent=11 // pred_check
          %p247 = pneg %p183
        $region14: #{_lambda_.16} parent=11 // pred_check_branch
          %249 = sbr.rel (%p247) target = $region16
        $region15: #{_lambda_.16} parent=11 // pred_region
          %251 = vsyncadd [#allocation4], 0
          %s252 = sshll.u32 %s5, 4
          %s253 = int_to_ptr.hbm [resolvable:$true] %s252
          %s254 = sshll.u32 [#allocation3], 4
          %s255 = int_to_ptr.vmem [resolvable:$true] %s254
          %260 = dma.hbm_to_vmem [thread:$0]  %s253, 256, %s255, [#allocation4], 64, 64, 4
        $region16: #{_lambda_.16} parent=11 // pred_fallthru
          _
        // Predicated region
        $region17: #{_lambda_.16} parent=11 // pred_check
          %p261 = pneg %p204
        $region18: #{_lambda_.16} parent=11 // pred_check_branch
          %263 = sbr.rel (%p261) target = $region20
        $region19: #{_lambda_.16} parent=11 // pred_region
          _
        $region20: #{_lambda_.16} parent=11 // pred_fallthru
          _
      $region12: #{_lambda_.16} parent=5 // pred_fallthru
        _
      %p264 = scmp.lt.s32.totalorder %s14, 2
      // Predicated region
      $region21: #{_lambda_.16} parent=5 // pred_check
        %p265 = pneg %p264
      $region22: #{_lambda_.16} parent=5 // pred_check_branch
        %267 = sbr.rel (%p265) target = $region24
      $region23: #{_lambda_.16} parent=5 // pred_region
        // Predicated region
        $region25: #{_lambda_.16} parent=23 // pred_check
          %p268 = pneg %p48
        $region26: #{_lambda_.16} parent=23 // pred_check_branch
          %270 = sbr.rel (%p268) target = $region28
        $region27: #{_lambda_.16} parent=23 // pred_region
          %p271 = scmp.lt.s32.totalorder %s21, 1
          %s272 = scalar_select %p271, %s21, 1
          %p273 = scmp.lt.s32.totalorder %s22, 0
          %s274 = scalar_select %p273, %s22, 0
          %s275 = sadd.s32 %s274, %s272
          %s276 = smul.addr %s275, 4
          %s277 = scalar_lea.vmem %s0, %s276
        $region28: #{_lambda_.16} parent=23 // pred_fallthru
          _
        // Predicated region
        $region29: #{_lambda_.16} parent=23 // pred_check
          %p278 = pneg %p74
        $region30: #{_lambda_.16} parent=23 // pred_check_branch
          %280 = sbr.rel (%p278) target = $region32
        $region31: #{_lambda_.16} parent=23 // pred_region
          %p281 = scmp.lt.s32.totalorder %s21, 1
          %s282 = scalar_select %p281, %s21, 1
          %s283 = smul.addr %s282, 4
          %s284 = scalar_lea.vmem %s1, %s283
        $region32: #{_lambda_.16} parent=23 // pred_fallthru
          _
        // Predicated region
        $region33: #{_lambda_.16} parent=23 // pred_check
          %p285 = pneg %p100
        $region34: #{_lambda_.16} parent=23 // pred_check_branch
          %287 = sbr.rel (%p285) target = $region36
        $region35: #{_lambda_.16} parent=23 // pred_region
          %p288 = scmp.lt.s32.totalorder %s21, 1
          %s289 = scalar_select %p288, %s21, 1
          %s290 = smul.addr %s289, 4
          %s291 = scalar_lea.vmem %s2, %s290
        $region36: #{_lambda_.16} parent=23 // pred_fallthru
          _
        // Predicated region
        $region37: #{_lambda_.16} parent=23 // pred_check
          %p292 = pneg %p128
        $region38: #{_lambda_.16} parent=23 // pred_check_branch
          %294 = sbr.rel (%p292) target = $region40
        $region39: #{_lambda_.16} parent=23 // pred_region
          %p295 = scmp.lt.s32.totalorder %s21, 1
          %s296 = scalar_select %p295, %s21, 1
          %p297 = scmp.lt.s32.totalorder %s22, 0
          %s298 = scalar_select %p297, %s22, 0
          %s299 = sadd.s32 %s298, %s296
          %s300 = smul.addr %s299, 4
          %s301 = scalar_lea.vmem %s3, %s300
        $region40: #{_lambda_.16} parent=23 // pred_fallthru
          _
        // Predicated region
        $region41: #{_lambda_.16} parent=23 // pred_check
          %p302 = pneg %p156
        $region42: #{_lambda_.16} parent=23 // pred_check_branch
          %304 = sbr.rel (%p302) target = $region44
        $region43: #{_lambda_.16} parent=23 // pred_region
          %p305 = scmp.lt.s32.totalorder %s21, 1
          %s306 = scalar_select %p305, %s21, 1
          %p307 = scmp.lt.s32.totalorder %s22, 0
          %s308 = scalar_select %p307, %s22, 0
          %s309 = sadd.s32 %s308, %s306
          %s310 = smul.addr %s309, 8
          %s311 = scalar_lea.vmem %s4, %s310
        $region44: #{_lambda_.16} parent=23 // pred_fallthru
          _
      $region24: #{_lambda_.16} parent=5 // pred_fallthru
        _
      %p312 = scmp.le.s32.totalorder 1, %s14
      %p313 = scmp.lt.s32.totalorder %s14, 3
      %p314 = pnand %p312, %p313
      %p315 = pneg %p314
      // Predicated region
      $region45: #{_lambda_.16} parent=5 // pred_check
        _
      $region46: #{_lambda_.16} parent=5 // pred_check_branch
        %317 = sbr.rel (%p314) target = $region48
      $region47: #{_lambda_.16} parent=5 // pred_region
        %s318 = ssub.s32 %s14, 1
        // Predicated region
        $region49: #{_lambda_.16} parent=47 // pred_check
          %p319 = pneg %p183
        $region50: #{_lambda_.16} parent=47 // pred_check_branch
          %321 = sbr.rel (%p319) target = $region52
        $region51: #{_lambda_.16} parent=47 // pred_region
          %323 = dma.done [#allocation4], 256
        $region52: #{_lambda_.16} parent=47 // pred_fallthru
          _
        %p324 = scmp.lt.s32.totalorder %s23, 1
        %s325 = scalar_select %p324, %s23, 1
        %p326 = scmp.lt.s32.totalorder %s24, 0
        %s327 = scalar_select %p326, %s24, 0
        %s328 = sadd.s32 %s327, %s325
        %s329 = smul.addr %s328, 4
        %s330 = scalar_lea.vmem %s0, %s329
        %p331 = pneg %p54
        %p332 = pneg %p51
        %p333 = scmp.lt.s32.totalorder %s23, 1
        %s334 = scalar_select %p333, %s23, 1
        %s335 = smul.addr %s334, 4
        %s336 = scalar_lea.vmem %s1, %s335
        %p337 = pneg %p80
        %p338 = pneg %p77
        %p339 = scmp.lt.s32.totalorder %s23, 1
        %s340 = scalar_select %p339, %s23, 1
        %s341 = smul.addr %s340, 4
        %s342 = scalar_lea.vmem %s2, %s341
        %p343 = pneg %p106
        %p344 = pneg %p103
        %p345 = scmp.lt.s32.totalorder %s23, 1
        %s346 = scalar_select %p345, %s23, 1
        %p347 = scmp.lt.s32.totalorder %s24, 0
        %s348 = scalar_select %p347, %s24, 0
        %s349 = sadd.s32 %s348, %s346
        %s350 = smul.addr %s349, 4
        %s351 = scalar_lea.vmem %s3, %s350
        %p352 = pneg %p134
        %p353 = pneg %p131
        %p354 = scmp.lt.s32.totalorder %s23, 1
        %s355 = scalar_select %p354, %s23, 1
        %p356 = scmp.lt.s32.totalorder %s24, 0
        %s357 = scalar_select %p356, %s24, 0
        %s358 = sadd.s32 %s357, %s355
        %s359 = smul.addr %s358, 8
        %s360 = scalar_lea.vmem %s4, %s359
        %p361 = pneg %p162
        %p362 = pneg %p159
        %p363 = pneg %p183
        %p364 = pneg %p180
        %p365 = pneg %p204
        %p366 = pneg %p201
        %p367 = pneg %p232
        %p368 = pneg %p229
        %p369 = scmp.lt.s32.totalorder %s23, 1
        %s370 = scalar_select %p369, %s23, 1
        %p371 = scmp.lt.s32.totalorder %s24, 0
        %s372 = scalar_select %p371, %s24, 0
        %s373 = sadd.s32 %s372, %s370
        %s374 = smul.addr %s373, 8
        %s375 = scalar_lea.vmem %s7, %s374
        %p376 = scmp.lt.s32.totalorder %s23, 1
        %s377 = scalar_select %p376, %s23, 1
        %p378 = scmp.lt.s32.totalorder %s24, 0
        %s379 = scalar_select %p378, %s24, 0
        %s380 = sadd.s32 %s379, %s377
        %s381 = smul.addr %s380, 4
        %s382 = scalar_lea.vmem %s0, %s381
        %p383 = scmp.lt.s32.totalorder %s23, 1
        %s384 = scalar_select %p383, %s23, 1
        %s385 = smul.addr %s384, 4
        %s386 = scalar_lea.vmem %s1, %s385
        %p387 = scmp.lt.s32.totalorder %s23, 1
        %s388 = scalar_select %p387, %s23, 1
        %s389 = smul.addr %s388, 4
        %s390 = scalar_lea.vmem %s2, %s389
        %p391 = scmp.lt.s32.totalorder %s23, 1
        %s392 = scalar_select %p391, %s23, 1
        %p393 = scmp.lt.s32.totalorder %s24, 0
        %s394 = scalar_select %p393, %s24, 0
        %s395 = sadd.s32 %s394, %s392
        %s396 = smul.addr %s395, 4
        %s397 = scalar_lea.vmem %s3, %s396
        %p398 = scmp.lt.s32.totalorder %s23, 1
        %s399 = scalar_select %p398, %s23, 1
        %p400 = scmp.lt.s32.totalorder %s24, 0
        %s401 = scalar_select %p400, %s24, 0
        %s402 = sadd.s32 %s401, %s399
        %s403 = smul.addr %s402, 8
        %s404 = scalar_lea.vmem %s4, %s403
        %p405 = scmp.lt.s32.totalorder %s23, 1
        %s406 = scalar_select %p405, %s23, 1
        %p407 = scmp.lt.s32.totalorder %s24, 0
        %s408 = scalar_select %p407, %s24, 0
        %s409 = sadd.s32 %s408, %s406
        %s410 = smul.addr %s409, 8
        %s411 = scalar_lea.vmem %s7, %s410
        %v413 = vld [vmem:[%s382] sm:$0xf]
        %v414 = vld [vmem:[%s386] sm:$0xf]
        %v415 = vld [vmem:[%s390] sm:$0xf]
        %v416 = vld [vmem:[%s397] sm:$0xf]
        %v417 = vunpack.c.l.bf16 %v416
        %v418 = vsub.f32 %v417, 1.0
        %v419 = vmul.f32 %v418, 1e+09
        %vm420 = vcmask 130048
        %v422 = vsel %vm420, %v413, 0
        %v425 = vsel %vm420, %v414, 0
        %427 = vmatpush.bf16.xpose.msra.mxu0 0
        %428 = vmatpush.bf16.xpose.msra.mxu0 0
        %429 = vmatpush.bf16.xpose.msra.mxu0 0
        %430 = vmatpush.bf16.xpose.msra.mxu0 0
        %431 = vmatpush.bf16.xpose.msra.mxu0 0
        %432 = vmatpush.bf16.xpose.msra.mxu0 0
        %433 = vmatpush.bf16.xpose.msra.mxu0 0
        %434 = vmatpush.bf16.xpose.msra.mxu0 %v425
        %435 = vmatmul.bf16.gmra.mxu0 %v422
        %v436 = vpop.f32.mrf.mxu0
        %v437 = vadd.f32 0.0, %v436
        %v438 = vpop.f32.mrf.mxu0
        %439 = vdwg.mxu0
        %v440 = vmul.f32 %v437, 0.25
        %v441 = vadd.f32 %v440, %v419
        %vm442 = vcmask 64512
        %v443 = vsel %vm442, %v441, -inf
        %444 = vmax.xlane.f32.xlu0 %v443
        %v445 = vpop.xlane.xlu0 %444
        %v446 = vsub.f32 %v441, %v445
        %v447 = vmul.f32 %v446, 1.442695
        %v448 = vpow.pop %v447
        %v449 = vsel %vm442, %v448, 0.0
        %450 = vadd.xlane.f32.xlu0 %v449
        %v451 = vpop.xlane.xlu0 %450
        %v452 = vrcp.pop %v451
        %v453 = vmul.f32 %v448, %v452
        %v454 = vpack.c.bf16 %v453, %v453
        %v456 = vsel %vm442, %v454, 0
        %vm458 = vcmask 1043456
        %v460 = vsel %vm458, %v415, 0
        %462 = vmatpush.bf16.msra.mxu0 0
        %463 = vmatpush.bf16.msra.mxu0 0
        %464 = vmatpush.bf16.msra.mxu0 0
        %465 = vmatpush.bf16.msra.mxu0 0
        %466 = vmatpush.bf16.msra.mxu0 0
        %467 = vmatpush.bf16.msra.mxu0 0
        %468 = vmatpush.bf16.msra.mxu0 0
        %469 = vmatpush.bf16.msra.mxu0 %v460
        %470 = vmatmul.bf16.gmra.mxu0 %v456
        %v471 = vpop.f32.mrf.mxu0
        %v472 = vadd.f32 0.0, %v471
        %v473 = vpop.f32.mrf.mxu0
        %474 = vdwg.mxu0
        %475 = vst.msk [vmem:[#allocation2] sm:$0xff] %vm420, %v472
        %v477 = vunpack.c.l.b16 %v413
        %v478 = vpack.c.b16 %v477, %v477
        %479 = vrot.lane.b32.xlu0 %v478, 112
        %v480 = vpop.permute.xlu0 %479
        %v482 = vunpack.c.l.b16 %v414
        %v483 = vpack.c.b16 %v482, %v482
        %484 = vrot.lane.b32.xlu0 %v483, 112
        %v485 = vpop.permute.xlu0 %484
        %v487 = vsel %vm420, %v480, 0
        %v490 = vsel %vm420, %v485, 0
        %492 = vmatpush.bf16.xpose.msra.mxu0 0
        %493 = vmatpush.bf16.xpose.msra.mxu0 0
        %494 = vmatpush.bf16.xpose.msra.mxu0 0
        %495 = vmatpush.bf16.xpose.msra.mxu0 0
        %496 = vmatpush.bf16.xpose.msra.mxu0 0
        %497 = vmatpush.bf16.xpose.msra.mxu0 0
        %498 = vmatpush.bf16.xpose.msra.mxu0 0
        %499 = vmatpush.bf16.xpose.msra.mxu0 %v490
        %500 = vmatmul.bf16.gmra.mxu0 %v487
        %v501 = vpop.f32.mrf.mxu0
        %v502 = vadd.f32 0.0, %v501
        %v503 = vpop.f32.mrf.mxu0
        %504 = vdwg.mxu0
        %v505 = vmul.f32 %v502, 0.25
        %v506 = vadd.f32 %v505, %v419
        %v507 = vsel %vm442, %v506, -inf
        %508 = vmax.xlane.f32.xlu0 %v507
        %v509 = vpop.xlane.xlu0 %508
        %v510 = vsub.f32 %v506, %v509
        %v511 = vmul.f32 %v510, 1.442695
        %v512 = vpow.pop %v511
        %v513 = vsel %vm442, %v512, 0.0
        %514 = vadd.xlane.f32.xlu0 %v513
        %v515 = vpop.xlane.xlu0 %514
        %v516 = vrcp.pop %v515
        %v517 = vmul.f32 %v512, %v516
        %v518 = vpack.c.bf16 %v517, %v517
        %v520 = vunpack.c.l.b16 %v415
        %v521 = vpack.c.b16 %v520, %v520
        %522 = vrot.lane.b32.xlu0 %v521, 112
        %v523 = vpop.permute.xlu0 %522
        %v525 = vsel %vm442, %v518, 0
        %v528 = vsel %vm458, %v523, 0
        %530 = vmatpush.bf16.msra.mxu0 0
        %531 = vmatpush.bf16.msra.mxu0 0
        %532 = vmatpush.bf16.msra.mxu0 0
        %533 = vmatpush.bf16.msra.mxu0 0
        %534 = vmatpush.bf16.msra.mxu0 0
        %535 = vmatpush.bf16.msra.mxu0 0
        %536 = vmatpush.bf16.msra.mxu0 0
        %537 = vmatpush.bf16.msra.mxu0 %v528
        %538 = vmatmul.bf16.gmra.mxu0 %v525
        %v539 = vpop.f32.mrf.mxu0
        %v540 = vadd.f32 0.0, %v539
        %v541 = vpop.f32.mrf.mxu0
        %542 = vdwg.mxu0
        %544 = vrot.lane.b32.xlu0 %v540, 16
        %v545 = vpop.permute.xlu0 %544
        %vm547 = vcmask 261248
        %548 = vst.msk [vmem:[#allocation2] sm:$0xff] %vm547, %v545
        %v549 = vld [vmem:[%s404] sm:$0xff]
        %v550 = vld [vmem:[%s6] sm:$0x1]
        %v552 = vperm.slane %v550, 0
        %v554 = vadd.f32 %v549, %v552
        %v555 = vld [vmem:[#allocation2] sm:$0xff]
        %v556 = vpack.c.bf16 %v555, %v555
        %v557 = vld [vmem:[#allocation3] sm:$0xf]
        %v558 = vld [vmem:[#allocation3 + $0x4] sm:$0xf]
        %v559 = vld [vmem:[#allocation3 + $0x8] sm:$0xf]
        %v560 = vld [vmem:[#allocation3 + $0xc] sm:$0xf]
        %v565 = vunpack.c.l.b16 %v557
        %v566 = vunpack.c.l.b16 %v558
        %v567 = vunpack.c.l.b16 %v559
        %v568 = vunpack.c.l.b16 %v560
        %v569 = vpack.c.b16 %v566, %v565
        %v570 = vpack.c.b16 %v568, %v567
        %vm573 = vcmask 261120
        %v575 = vsel %vm573, %v556, 0
        %577 = vmatpush.bf16.msra.mxu0 0
        %578 = vmatpush.bf16.msra.mxu0 0
        %579 = vmatpush.bf16.msra.mxu0 0
        %580 = vmatpush.bf16.msra.mxu0 0
        %581 = vmatpush.bf16.msra.mxu0 0
        %582 = vmatpush.bf16.msra.mxu0 0
        %583 = vmatpush.bf16.msra.mxu0 %v570
        %584 = vmatpush.bf16.msra.mxu0 %v569
        %585 = vmatmul.bf16.gmra.mxu0 %v575
        %v586 = vpop.f32.mrf.mxu0
        %v587 = vadd.f32 0.0, %v586
        %v588 = vpop.f32.mrf.mxu0
        %589 = vdwg.mxu0
        %v590 = vadd.f32 %v554, %v587
        %591 = vst.msk [vmem:[%s411] sm:$0xff] %vm573, %v590
        %p592 = scmp.lt.s32.totalorder %s23, 1
        %s593 = scalar_select %p592, %s23, 1
        %p594 = scmp.lt.s32.totalorder %s24, 0
        %s595 = scalar_select %p594, %s24, 0
        %s596 = sadd.s32 %s595, %s593
        %s597 = smul.addr %s596, 8
        %s598 = scalar_lea.vmem %s7, %s597
        // Predicated region
        $region53: #{_lambda_.16} parent=47 // pred_check
          %p599 = pneg %p229
        $region54: #{_lambda_.16} parent=47 // pred_check_branch
          %601 = sbr.rel (%p599) target = $region56
        $region55: #{_lambda_.16} parent=47 // pred_region
          _
        $region56: #{_lambda_.16} parent=47 // pred_fallthru
          _
      $region48: #{_lambda_.16} parent=5 // pred_fallthru
        _
      %p602 = scmp.le.s32.totalorder 2, %s14
      // Predicated region
      $region57: #{_lambda_.16} parent=5 // pred_check
        %p603 = pneg %p602
      $region58: #{_lambda_.16} parent=5 // pred_check_branch
        %605 = sbr.rel (%p603) target = $region60
      $region59: #{_lambda_.16} parent=5 // pred_region
        %s606 = ssub.s32 %s14, 2
        // Predicated region
        $region61: #{_lambda_.16} parent=59 // pred_check
          %p607 = pneg %p235
        $region62: #{_lambda_.16} parent=59 // pred_check_branch
          %609 = sbr.rel (%p607) target = $region64
        $region63: #{_lambda_.16} parent=59 // pred_region
          %p610 = scmp.lt.s32.totalorder %s25, 1
          %s611 = scalar_select %p610, %s25, 1
          %p612 = scmp.lt.s32.totalorder %s26, 0
          %s613 = scalar_select %p612, %s26, 0
          %s614 = sadd.s32 %s613, %s611
          %s615 = smul.addr %s614, 8
          %s616 = scalar_lea.vmem %s7, %s615
        $region64: #{_lambda_.16} parent=59 // pred_fallthru
          _
      $region60: #{_lambda_.16} parent=5 // pred_fallthru
        _
    $region6: #{_lambda_.16} parent=1 // loop_footer
      %s18 = sadd.s32 1, %s14
    $region7: #{_lambda_.16} parent=1 // loop_footer_branch
      %13 = sbr.rel target = $region3
    $region8: #{_lambda_.16} parent=1 // loop_exit
      _
    %617 = vsyncpa [#allocation4], 1
    %s618 = scalar_lea.sflag [#allocation4], 1
    %619 = vsyncpa %s618, 1

// kernel: _lambda_.17
$region0: #{_lambda_.17}
  #allocation0 [shape = 'u32[]', space=smem, size = 0x4, offset = 0x4, fixed_abs, tag = 'smem constant byte address 0x4 - core index']
  #allocation1 [shape = 'u32[72,128]{1,0:T(1,128)}', space=vmem, size = 0x9000, scoped, tag = 'internal scratch']
  %s0 = inlined_call_operand.vmem [shape: f32[16,32], index: 0, kind: input, shape index: {}]
  %s1 = inlined_call_operand.vmem [shape: f32[1,32], index: 1, kind: input, shape index: {}]
  %s2 = inlined_call_operand.vmem [shape: f32[1,32], index: 2, kind: input, shape index: {}, may-alias: {2,6}]
  %s3 = inlined_call_operand.hbm [shape: bf16[32,64], index: 3, kind: input, shape index: {}]
  %s4 = inlined_call_operand.vmem [shape: f32[1,64], index: 4, kind: input, shape index: {}]
  %s5 = inlined_call_operand.vmem [shape: bf16[64,32], index: 5, kind: input, shape index: {}]
  %s6 = inlined_call_operand.vmem [shape: f32[1,32], index: 6, kind: input, shape index: {}, may-alias: {2,6}]
  %s7 = inlined_call_operand.vmem [shape: f32[16,32], index: 7, kind: output, shape index: {}]
  %s8 = sld [smem:[#allocation0]]
  $region42: #{_lambda_.17} parent=0
    _
  %s10 = ssub.s32 1, %s8
  %s11 = scalar_select 0, %s10, %s8
  $region1: #{_lambda_.17} parent=0
    #allocation2 [shape = 'u8[8192]{0}', space=vmem, size = 0x2000, scoped, tag = 'input window, operand 3, single buffered']
    #allocation3 [shape = 's32[1]{0}', space=sflag, size = 0x4, scoped, tag = 'scoped memory for _lambda_.17']
    %12 = vsyncpa [#allocation3], 0
    // Predicated region
    $region2: #{_lambda_.17} parent=1 // pred_check
      _
    $region3: #{_lambda_.17} parent=1 // pred_check_branch
      %14 = sbr.rel (0) target = $region5
    $region4: #{_lambda_.17} parent=1 // pred_region
      _
    $region5: #{_lambda_.17} parent=1 // pred_fallthru
      _
    // Predicated region
    $region6: #{_lambda_.17} parent=1 // pred_check
      _
    $region7: #{_lambda_.17} parent=1 // pred_check_branch
      %16 = sbr.rel (0) target = $region9
    $region8: #{_lambda_.17} parent=1 // pred_region
      _
    $region9: #{_lambda_.17} parent=1 // pred_fallthru
      _
    // Predicated region
    $region10: #{_lambda_.17} parent=1 // pred_check
      _
    $region11: #{_lambda_.17} parent=1 // pred_check_branch
      %18 = sbr.rel (0) target = $region13
    $region12: #{_lambda_.17} parent=1 // pred_region
      _
    $region13: #{_lambda_.17} parent=1 // pred_fallthru
      _
    // Predicated region
    $region14: #{_lambda_.17} parent=1 // pred_check
      _
    $region15: #{_lambda_.17} parent=1 // pred_check_branch
      %20 = sbr.rel (0) target = $region17
    $region16: #{_lambda_.17} parent=1 // pred_region
      %22 = vsyncadd [#allocation3], 0
      %s23 = sshll.u32 %s3, 4
      %s24 = int_to_ptr.hbm [resolvable:$true] %s23
      %s25 = sshll.u32 [#allocation2], 4
      %s26 = int_to_ptr.vmem [resolvable:$true] %s25
      %31 = dma.hbm_to_vmem [thread:$0]  %s24, 256, %s26, [#allocation3], 64, 64, 4
    $region17: #{_lambda_.17} parent=1 // pred_fallthru
      _
    // Predicated region
    $region18: #{_lambda_.17} parent=1 // pred_check
      _
    $region19: #{_lambda_.17} parent=1 // pred_check_branch
      %33 = sbr.rel (0) target = $region21
    $region20: #{_lambda_.17} parent=1 // pred_region
      _
    $region21: #{_lambda_.17} parent=1 // pred_fallthru
      _
    // Predicated region
    $region22: #{_lambda_.17} parent=1 // pred_check
      _
    $region23: #{_lambda_.17} parent=1 // pred_check_branch
      %35 = sbr.rel (0) target = $region25
    $region24: #{_lambda_.17} parent=1 // pred_region
      _
    $region25: #{_lambda_.17} parent=1 // pred_fallthru
      _
    // Predicated region
    $region26: #{_lambda_.17} parent=1 // pred_check
      _
    $region27: #{_lambda_.17} parent=1 // pred_check_branch
      %37 = sbr.rel (0) target = $region29
    $region28: #{_lambda_.17} parent=1 // pred_region
      _
    $region29: #{_lambda_.17} parent=1 // pred_fallthru
      _
    // Predicated region
    $region30: #{_lambda_.17} parent=1 // pred_check
      _
    $region31: #{_lambda_.17} parent=1 // pred_check_branch
      %39 = sbr.rel (0) target = $region33
    $region32: #{_lambda_.17} parent=1 // pred_region
      %41 = dma.done [#allocation3], 256
    $region33: #{_lambda_.17} parent=1 // pred_fallthru
      _
    %v43 = vld [vmem:[%s0] sm:$0xff]
    %v44 = vld [vmem:[%s0 + $0x8] sm:$0xff]
    %v45 = vld [vmem:[%s1] sm:$0x1]
    %v46 = vld [vmem:[%s2] sm:$0x1]
    %vm47 = vcmask 261120
    %v48 = vsel %vm47, %v43, 0.0
    %49 = vadd.xlane.f32.xlu0 %v48
    %v50 = vpop.xlane.xlu0 %49
    %v51 = vsel %vm47, %v44, 0.0
    %52 = vadd.xlane.f32.xlu0 %v51
    %v53 = vpop.xlane.xlu0 %52
    %v54 = vrcp.pop 32.0
    %v55 = vmul.f32 32.0, %v54
    %v56 = vsub.f32 1.0, %v55
    %v57 = vmul.f32 %v54, %v56
    %v58 = vadd.f32 %v54, %v57
    %vm59 = vweird.f32 %v54
    %v60 = vsel %vm59, %v54, %v58
    %v61 = vmul.f32 %v50, %v60
    %v62 = vmul.f32 %v53, %v60
    %v63 = vsub.f32 %v43, %v61
    %v64 = vsub.f32 %v44, %v62
    %v65 = vmul.f32 %v63, %v63
    %v66 = vmul.f32 %v64, %v64
    %v67 = vsel %vm47, %v65, 0.0
    %68 = vadd.xlane.f32.xlu0 %v67
    %v69 = vpop.xlane.xlu0 %68
    %v70 = vsel %vm47, %v66, 0.0
    %71 = vadd.xlane.f32.xlu0 %v70
    %v72 = vpop.xlane.xlu0 %71
    %v73 = vmul.f32 %v69, 0.032258064
    %v74 = vmul.f32 %v72, 0.032258064
    %v75 = vrsqrt.pop %v73
    %v76 = vmul.f32 %v75, %v73
    %v77 = vmul.f32 %v76, %v75
    %v78 = vmul.f32 0.5, %v77
    %v79 = vsub.f32 1.5, %v78
    %v80 = vmul.f32 %v75, %v79
    %v81 = vmul.f32 %v73, %v80
    %vm82 = vcmp.eq.f32.partialorder %v73, inf
    %v83 = vsel %vm82, %v73, %v81
    %vm84 = vcmp.eq.f32.partialorder %v73, 0.0
    %v85 = vand.u32 %v73, 2147483648
    %v86 = vsel %vm84, %v85, %v83
    %v87 = vrsqrt.pop %v74
    %v88 = vmul.f32 %v87, %v74
    %v89 = vmul.f32 %v88, %v87
    %v90 = vmul.f32 0.5, %v89
    %v91 = vsub.f32 1.5, %v90
    %v92 = vmul.f32 %v87, %v91
    %v93 = vmul.f32 %v74, %v92
    %vm94 = vcmp.eq.f32.partialorder %v74, inf
    %v95 = vsel %vm94, %v74, %v93
    %vm96 = vcmp.eq.f32.partialorder %v74, 0.0
    %v97 = vand.u32 %v74, 2147483648
    %v98 = vsel %vm96, %v97, %v95
    %v99 = vadd.f32 %v86, 1e-06
    %v100 = vadd.f32 %v98, 1e-06
    %v101 = vrcp.pop %v99
    %v102 = vrcp.pop %v100
    %v104 = vperm.slane %v45, 0
    %v106 = vmul.f32 %v104, %v63
    %v107 = vmul.f32 %v104, %v64
    %v108 = vmul.f32 %v106, %v101
    %v109 = vmul.f32 %v107, %v102
    %v111 = vperm.slane %v46, 0
    %v113 = vadd.f32 %v108, %v111
    %v114 = vadd.f32 %v109, %v111
    %v115 = vpack.c.bf16 %v114, %v113
    %v116 = vld [vmem:[#allocation2] sm:$0xf]
    %v117 = vld [vmem:[#allocation2 + $0x4] sm:$0xf]
    %v118 = vld [vmem:[#allocation2 + $0x8] sm:$0xf]
    %v119 = vld [vmem:[#allocation2 + $0xc] sm:$0xf]
    %v120 = vld [vmem:[%s4] sm:$0x1]
    %v122 = vperm.slane %v120, 0
    %v128 = vunpack.c.l.b16 %v116
    %v129 = vunpack.c.l.b16 %v117
    %v130 = vunpack.c.l.b16 %v118
    %v131 = vunpack.c.l.b16 %v119
    %v132 = vpack.c.b16 %v129, %v128
    %v133 = vpack.c.b16 %v131, %v130
    %v137 = vsel %vm47, %v115, 0
    %139 = vmatpush.bf16.msra.mxu0 0
    %140 = vmatpush.bf16.msra.mxu0 0
    %141 = vmatpush.bf16.msra.mxu0 0
    %142 = vmatpush.bf16.msra.mxu0 0
    %143 = vmatpush.bf16.msra.mxu0 0
    %144 = vmatpush.bf16.msra.mxu0 0
    %145 = vmatpush.bf16.msra.mxu0 %v133
    %146 = vmatpush.bf16.msra.mxu0 %v132
    %147 = vmatmul.bf16.gmra.mxu0 %v137
    %v148 = vpop.f32.mrf.mxu0
    %v149 = vadd.f32 %v122, %v148
    %v150 = vpop.f32.mrf.mxu0
    %v151 = vadd.f32 %v122, %v150
    %152 = vdwg.mxu0
    %v153 = vmax.f32 %v149, 0.0
    %v154 = vmax.f32 %v151, 0.0
    %v155 = vpack.c.bf16 %v154, %v153
    %v156 = vld [vmem:[%s5] sm:$0xf]
    %v157 = vld [vmem:[%s5 + $0x4] sm:$0xf]
    %v158 = vld [vmem:[%s5 + $0x8] sm:$0xf]
    %v159 = vld [vmem:[%s5 + $0xc] sm:$0xf]
    %v160 = vld [vmem:[%s5 + $0x10] sm:$0xf]
    %v161 = vld [vmem:[%s5 + $0x14] sm:$0xf]
    %v162 = vld [vmem:[%s5 + $0x18] sm:$0xf]
    %v163 = vld [vmem:[%s5 + $0x1c] sm:$0xf]
    %v164 = vld [vmem:[%s6] sm:$0x1]
    %v166 = vperm.slane %v164, 0
    %v176 = vunpack.c.l.b16 %v156
    %v177 = vunpack.c.l.b16 %v157
    %v178 = vunpack.c.l.b16 %v158
    %v179 = vunpack.c.l.b16 %v159
    %v180 = vunpack.c.l.b16 %v160
    %v181 = vunpack.c.l.b16 %v161
    %v182 = vunpack.c.l.b16 %v162
    %v183 = vunpack.c.l.b16 %v163
    %v184 = vpack.c.b16 %v177, %v176
    %v185 = vpack.c.b16 %v179, %v178
    %v186 = vpack.c.b16 %v181, %v180
    %v187 = vpack.c.b16 %v183, %v182
    %vm192 = vcmask 523264
    %v194 = vsel %vm192, %v155, 0
    %196 = vmatpush.bf16.msra.mxu0 0
    %197 = vmatpush.bf16.msra.mxu0 0
    %198 = vmatpush.bf16.msra.mxu0 0
    %199 = vmatpush.bf16.msra.mxu0 0
    %200 = vmatpush.bf16.msra.mxu0 %v187
    %201 = vmatpush.bf16.msra.mxu0 %v186
    %202 = vmatpush.bf16.msra.mxu0 %v185
    %203 = vmatpush.bf16.msra.mxu0 %v184
    %204 = vmatmul.bf16.gmra.mxu0 %v194
    %v205 = vpop.f32.mrf.mxu0
    %v206 = vadd.f32 %v166, %v205
    %v207 = vpop.f32.mrf.mxu0
    %v208 = vadd.f32 %v166, %v207
    %209 = vdwg.mxu0
    %v210 = vadd.f32 %v43, %v206
    %v211 = vadd.f32 %v44, %v208
    %212 = vst.msk [vmem:[%s7] sm:$0xff] %vm47, %v210
    %213 = vst.msk [vmem:[%s7 + $0x8] sm:$0xff] %vm47, %v211
    // Predicated region
    $region34: #{_lambda_.17} parent=1 // pred_check
      _
    $region35: #{_lambda_.17} parent=1 // pred_check_branch
      %215 = sbr.rel (0) target = $region37
    $region36: #{_lambda_.17} parent=1 // pred_region
      _
    $region37: #{_lambda_.17} parent=1 // pred_fallthru
      _
    // Predicated region
    $region38: #{_lambda_.17} parent=1 // pred_check
      _
    $region39: #{_lambda_.17} parent=1 // pred_check_branch
      %217 = sbr.rel (0) target = $region41
    $region40: #{_lambda_.17} parent=1 // pred_region
      _
    $region41: #{_lambda_.17} parent=1 // pred_fallthru
      _
    %218 = vsyncpa [#allocation3], 1

// kernel: _lambda_.18
$region0: #{_lambda_.18}
  #allocation0 [shape = 'u32[]', space=smem, size = 0x4, offset = 0x4, fixed_abs, tag = 'smem constant byte address 0x4 - core index']
  #allocation1 [shape = 'u32[72,128]{1,0:T(1,128)}', space=vmem, size = 0x9000, scoped, tag = 'internal scratch']
  %s0 = inlined_call_operand.vmem [shape: f32[16,32], index: 0, kind: input, shape index: {}]
  %s1 = inlined_call_operand.vmem [shape: f32[1,32], index: 1, kind: input, shape index: {}]
  %s2 = inlined_call_operand.vmem [shape: f32[1,32], index: 2, kind: input, shape index: {}, may-alias: {2,6,7,8}]
  %s3 = inlined_call_operand.hbm [shape: bf16[32,32], index: 3, kind: input, shape index: {}]
  %s4 = inlined_call_operand.hbm [shape: bf16[32,32], index: 4, kind: input, shape index: {}]
  %s5 = inlined_call_operand.hbm [shape: bf16[32,32], index: 5, kind: input, shape index: {}]
  %s6 = inlined_call_operand.vmem [shape: f32[1,32], index: 6, kind: input, shape index: {}, may-alias: {2,6,7,8}]
  %s7 = inlined_call_operand.vmem [shape: f32[1,32], index: 7, kind: input, shape index: {}, may-alias: {2,6,7,8}]
  %s8 = inlined_call_operand.vmem [shape: f32[1,32], index: 8, kind: input, shape index: {}, may-alias: {2,6,7,8}]
  %s9 = inlined_call_operand.vmem [shape: bf16[16,32], index: 9, kind: output, shape index: {0}]
  %s10 = inlined_call_operand.vmem [shape: bf16[16,32], index: 10, kind: output, shape index: {1}]
  %s11 = inlined_call_operand.vmem [shape: bf16[16,32], index: 11, kind: output, shape index: {2}]
  %12 = xla_tuple %s9, %s10, %s11
  %s13 = sld [smem:[#allocation0]]
  $region74: #{_lambda_.18} parent=0
    _
  %s15 = ssub.s32 1, %s13
  %s16 = scalar_select 0, %s15, %s13
  $region1: #{_lambda_.18} parent=0
    #allocation2 [shape = 'u8[8192]{0}', space=vmem, size = 0x2000, scoped, tag = 'input window, operand 3, single buffered']
    #allocation3 [shape = 's32[1]{0}', space=sflag, size = 0x4, scoped, tag = 'scoped memory for _lambda_.18']
    #allocation4 [shape = 'u8[8192]{0}', space=vmem, size = 0x2000, scoped, tag = 'input window, operand 4, single buffered']
    #allocation5 [shape = 's32[1]{0}', space=sflag, size = 0x4, scoped, tag = 'scoped memory for _lambda_.18']
    #allocation6 [shape = 'u8[8192]{0}', space=vmem, size = 0x2000, scoped, tag = 'input window, operand 5, single buffered']
    %17 = vsyncpa [#allocation3], 0
    %18 = vsyncpa [#allocation5], 0
    // Predicated region
    $region2: #{_lambda_.18} parent=1 // pred_check
      _
    $region3: #{_lambda_.18} parent=1 // pred_check_branch
      %20 = sbr.rel (0) target = $region5
    $region4: #{_lambda_.18} parent=1 // pred_region
      _
    $region5: #{_lambda_.18} parent=1 // pred_fallthru
      _
    // Predicated region
    $region6: #{_lambda_.18} parent=1 // pred_check
      _
    $region7: #{_lambda_.18} parent=1 // pred_check_branch
      %22 = sbr.rel (0) target = $region9
    $region8: #{_lambda_.18} parent=1 // pred_region
      _
    $region9: #{_lambda_.18} parent=1 // pred_fallthru
      _
    // Predicated region
    $region10: #{_lambda_.18} parent=1 // pred_check
      _
    $region11: #{_lambda_.18} parent=1 // pred_check_branch
      %24 = sbr.rel (0) target = $region13
    $region12: #{_lambda_.18} parent=1 // pred_region
      _
    $region13: #{_lambda_.18} parent=1 // pred_fallthru
      _
    // Predicated region
    $region14: #{_lambda_.18} parent=1 // pred_check
      _
    $region15: #{_lambda_.18} parent=1 // pred_check_branch
      %26 = sbr.rel (0) target = $region17
    $region16: #{_lambda_.18} parent=1 // pred_region
      %28 = vsyncadd [#allocation3], 0
      %s29 = sshll.u32 %s3, 4
      %s30 = int_to_ptr.hbm [resolvable:$true] %s29
      %s31 = sshll.u32 [#allocation2], 4
      %s32 = int_to_ptr.vmem [resolvable:$true] %s31
      %37 = dma.hbm_to_vmem [thread:$0]  %s30, 256, %s32, [#allocation3], 64, 64, 4
    $region17: #{_lambda_.18} parent=1 // pred_fallthru
      _
    // Predicated region
    $region18: #{_lambda_.18} parent=1 // pred_check
      _
    $region19: #{_lambda_.18} parent=1 // pred_check_branch
      %39 = sbr.rel (0) target = $region21
    $region20: #{_lambda_.18} parent=1 // pred_region
      %41 = vsyncadd [#allocation5], 0
      %s42 = sshll.u32 %s4, 4
      %s43 = int_to_ptr.hbm [resolvable:$true] %s42
      %s44 = sshll.u32 [#allocation4], 4
      %s45 = int_to_ptr.vmem [resolvable:$true] %s44
      %50 = dma.hbm_to_vmem [thread:$0]  %s43, 256, %s45, [#allocation5], 64, 64, 4
    $region21: #{_lambda_.18} parent=1 // pred_fallthru
      _
    // Predicated region
    $region22: #{_lambda_.18} parent=1 // pred_check
      _
    $region23: #{_lambda_.18} parent=1 // pred_check_branch
      %52 = sbr.rel (0) target = $region25
    $region24: #{_lambda_.18} parent=1 // pred_region
      %54 = vsyncadd [#allocation5], 0
      %s55 = sshll.u32 %s5, 4
      %s56 = int_to_ptr.hbm [resolvable:$true] %s55
      %s57 = sshll.u32 [#allocation6], 4
      %s58 = int_to_ptr.vmem [resolvable:$true] %s57
      %63 = dma.hbm_to_vmem [thread:$0]  %s56, 256, %s58, [#allocation5], 64, 64, 4
    $region25: #{_lambda_.18} parent=1 // pred_fallthru
      _
    // Predicated region
    $region26: #{_lambda_.18} parent=1 // pred_check
      _
    $region27: #{_lambda_.18} parent=1 // pred_check_branch
      %65 = sbr.rel (0) target = $region29
    $region28: #{_lambda_.18} parent=1 // pred_region
      _
    $region29: #{_lambda_.18} parent=1 // pred_fallthru
      _
    // Predicated region
    $region30: #{_lambda_.18} parent=1 // pred_check
      _
    $region31: #{_lambda_.18} parent=1 // pred_check_branch
      %67 = sbr.rel (0) target = $region33
    $region32: #{_lambda_.18} parent=1 // pred_region
      _
    $region33: #{_lambda_.18} parent=1 // pred_fallthru
      _
    // Predicated region
    $region34: #{_lambda_.18} parent=1 // pred_check
      _
    $region35: #{_lambda_.18} parent=1 // pred_check_branch
      %69 = sbr.rel (0) target = $region37
    $region36: #{_lambda_.18} parent=1 // pred_region
      _
    $region37: #{_lambda_.18} parent=1 // pred_fallthru
      _
    // Predicated region
    $region38: #{_lambda_.18} parent=1 // pred_check
      _
    $region39: #{_lambda_.18} parent=1 // pred_check_branch
      %71 = sbr.rel (0) target = $region41
    $region40: #{_lambda_.18} parent=1 // pred_region
      %73 = dma.done [#allocation3], 256
    $region41: #{_lambda_.18} parent=1 // pred_fallthru
      _
    // Predicated region
    $region42: #{_lambda_.18} parent=1 // pred_check
      _
    $region43: #{_lambda_.18} parent=1 // pred_check_branch
      %75 = sbr.rel (0) target = $region45
    $region44: #{_lambda_.18} parent=1 // pred_region
      %77 = dma.done [#allocation5], 256
    $region45: #{_lambda_.18} parent=1 // pred_fallthru
      _
    // Predicated region
    $region46: #{_lambda_.18} parent=1 // pred_check
      _
    $region47: #{_lambda_.18} parent=1 // pred_check_branch
      %79 = sbr.rel (0) target = $region49
    $region48: #{_lambda_.18} parent=1 // pred_region
      %81 = dma.done [#allocation5], 256
    $region49: #{_lambda_.18} parent=1 // pred_fallthru
      _
    %v83 = vld [vmem:[%s0] sm:$0xff]
    %v84 = vld [vmem:[%s0 + $0x8] sm:$0xff]
    %v85 = vld [vmem:[%s1] sm:$0x1]
    %v86 = vld [vmem:[%s2] sm:$0x1]
    %vm87 = vcmask 261120
    %v88 = vsel %vm87, %v83, 0.0
    %89 = vadd.xlane.f32.xlu0 %v88
    %v90 = vpop.xlane.xlu0 %89
    %v91 = vsel %vm87, %v84, 0.0
    %92 = vadd.xlane.f32.xlu0 %v91
    %v93 = vpop.xlane.xlu0 %92
    %v94 = vrcp.pop 32.0
    %v95 = vmul.f32 32.0, %v94
    %v96 = vsub.f32 1.0, %v95
    %v97 = vmul.f32 %v94, %v96
    %v98 = vadd.f32 %v94, %v97
    %vm99 = vweird.f32 %v94
    %v100 = vsel %vm99, %v94, %v98
    %v101 = vmul.f32 %v90, %v100
    %v102 = vmul.f32 %v93, %v100
    %v103 = vsub.f32 %v83, %v101
    %v104 = vsub.f32 %v84, %v102
    %v105 = vmul.f32 %v103, %v103
    %v106 = vmul.f32 %v104, %v104
    %v107 = vsel %vm87, %v105, 0.0
    %108 = vadd.xlane.f32.xlu0 %v107
    %v109 = vpop.xlane.xlu0 %108
    %v110 = vsel %vm87, %v106, 0.0
    %111 = vadd.xlane.f32.xlu0 %v110
    %v112 = vpop.xlane.xlu0 %111
    %v113 = vmul.f32 %v109, 0.032258064
    %v114 = vmul.f32 %v112, 0.032258064
    %v115 = vrsqrt.pop %v113
    %v116 = vmul.f32 %v115, %v113
    %v117 = vmul.f32 %v116, %v115
    %v118 = vmul.f32 0.5, %v117
    %v119 = vsub.f32 1.5, %v118
    %v120 = vmul.f32 %v115, %v119
    %v121 = vmul.f32 %v113, %v120
    %vm122 = vcmp.eq.f32.partialorder %v113, inf
    %v123 = vsel %vm122, %v113, %v121
    %vm124 = vcmp.eq.f32.partialorder %v113, 0.0
    %v125 = vand.u32 %v113, 2147483648
    %v126 = vsel %vm124, %v125, %v123
    %v127 = vrsqrt.pop %v114
    %v128 = vmul.f32 %v127, %v114
    %v129 = vmul.f32 %v128, %v127
    %v130 = vmul.f32 0.5, %v129
    %v131 = vsub.f32 1.5, %v130
    %v132 = vmul.f32 %v127, %v131
    %v133 = vmul.f32 %v114, %v132
    %vm134 = vcmp.eq.f32.partialorder %v114, inf
    %v135 = vsel %vm134, %v114, %v133
    %vm136 = vcmp.eq.f32.partialorder %v114, 0.0
    %v137 = vand.u32 %v114, 2147483648
    %v138 = vsel %vm136, %v137, %v135
    %v139 = vadd.f32 %v126, 1e-06
    %v140 = vadd.f32 %v138, 1e-06
    %v141 = vrcp.pop %v139
    %v142 = vrcp.pop %v140
    %v144 = vperm.slane %v85, 0
    %v146 = vmul.f32 %v144, %v103
    %v147 = vmul.f32 %v144, %v104
    %v148 = vmul.f32 %v146, %v141
    %v149 = vmul.f32 %v147, %v142
    %v151 = vperm.slane %v86, 0
    %v153 = vadd.f32 %v148, %v151
    %v154 = vadd.f32 %v149, %v151
    %v155 = vpack.c.bf16 %v154, %v153
    %v156 = vld [vmem:[#allocation2] sm:$0xf]
    %v157 = vld [vmem:[#allocation2 + $0x4] sm:$0xf]
    %v158 = vld [vmem:[#allocation2 + $0x8] sm:$0xf]
    %v159 = vld [vmem:[#allocation2 + $0xc] sm:$0xf]
    %v160 = vld [vmem:[%s6] sm:$0x1]
    %v162 = vperm.slane %v160, 0
    %v168 = vunpack.c.l.b16 %v156
    %v169 = vunpack.c.l.b16 %v157
    %v170 = vunpack.c.l.b16 %v158
    %v171 = vunpack.c.l.b16 %v159
    %v172 = vpack.c.b16 %v169, %v168
    %v173 = vpack.c.b16 %v171, %v170
    %v177 = vsel %vm87, %v155, 0
    %179 = vmatpush.bf16.msra.mxu0 0
    %180 = vmatpush.bf16.msra.mxu0 0
    %181 = vmatpush.bf16.msra.mxu0 0
    %182 = vmatpush.bf16.msra.mxu0 0
    %183 = vmatpush.bf16.msra.mxu0 0
    %184 = vmatpush.bf16.msra.mxu0 0
    %185 = vmatpush.bf16.msra.mxu0 %v173
    %186 = vmatpush.bf16.msra.mxu0 %v172
    %187 = vmatmul.bf16.gmra.mxu0 %v177
    %v188 = vpop.f32.mrf.mxu0
    %v189 = vadd.f32 %v162, %v188
    %v190 = vpop.f32.mrf.mxu0
    %v191 = vadd.f32 %v162, %v190
    %192 = vdwg.mxu0
    %v193 = vpack.c.bf16 %v189, %v189
    %v194 = vpack.c.bf16 %v191, %v191
    %vm195 = vcmask 257024
    %196 = vst.msk [vmem:[%s9] sm:$0xf] %vm195, %v193
    %197 = vst.msk [vmem:[%s9 + $0x4] sm:$0xf] %vm195, %v194
    %v198 = vld [vmem:[#allocation4] sm:$0xf]
    %v199 = vld [vmem:[#allocation4 + $0x4] sm:$0xf]
    %v200 = vld [vmem:[#allocation4 + $0x8] sm:$0xf]
    %v201 = vld [vmem:[#allocation4 + $0xc] sm:$0xf]
    %v202 = vld [vmem:[%s7] sm:$0x1]
    %v204 = vperm.slane %v202, 0
    %v210 = vunpack.c.l.b16 %v198
    %v211 = vunpack.c.l.b16 %v199
    %v212 = vunpack.c.l.b16 %v200
    %v213 = vunpack.c.l.b16 %v201
    %v214 = vpack.c.b16 %v211, %v210
    %v215 = vpack.c.b16 %v213, %v212
    %218 = vmatpush.bf16.msra.mxu0 0
    %219 = vmatpush.bf16.msra.mxu0 0
    %220 = vmatpush.bf16.msra.mxu0 0
    %221 = vmatpush.bf16.msra.mxu0 0
    %222 = vmatpush.bf16.msra.mxu0 0
    %223 = vmatpush.bf16.msra.mxu0 0
    %224 = vmatpush.bf16.msra.mxu0 %v215
    %225 = vmatpush.bf16.msra.mxu0 %v214
    %226 = vmatmul.bf16.gmra.mxu0 %v177
    %v227 = vpop.f32.mrf.mxu0
    %v228 = vadd.f32 %v204, %v227
    %v229 = vpop.f32.mrf.mxu0
    %v230 = vadd.f32 %v204, %v229
    %231 = vdwg.mxu0
    %v232 = vpack.c.bf16 %v228, %v228
    %v233 = vpack.c.bf16 %v230, %v230
    %234 = vst.msk [vmem:[%s10] sm:$0xf] %vm195, %v232
    %235 = vst.msk [vmem:[%s10 + $0x4] sm:$0xf] %vm195, %v233
    %v236 = vld [vmem:[#allocation6] sm:$0xf]
    %v237 = vld [vmem:[#allocation6 + $0x4] sm:$0xf]
    %v238 = vld [vmem:[#allocation6 + $0x8] sm:$0xf]
    %v239 = vld [vmem:[#allocation6 + $0xc] sm:$0xf]
    %v240 = vld [vmem:[%s8] sm:$0x1]
    %v242 = vperm.slane %v240, 0
    %v248 = vunpack.c.l.b16 %v236
    %v249 = vunpack.c.l.b16 %v237
    %v250 = vunpack.c.l.b16 %v238
    %v251 = vunpack.c.l.b16 %v239
    %v252 = vpack.c.b16 %v249, %v248
    %v253 = vpack.c.b16 %v251, %v250
    %256 = vmatpush.bf16.msra.mxu0 0
    %257 = vmatpush.bf16.msra.mxu0 0
    %258 = vmatpush.bf16.msra.mxu0 0
    %259 = vmatpush.bf16.msra.mxu0 0
    %260 = vmatpush.bf16.msra.mxu0 0
    %261 = vmatpush.bf16.msra.mxu0 0
    %262 = vmatpush.bf16.msra.mxu0 %v253
    %263 = vmatpush.bf16.msra.mxu0 %v252
    %264 = vmatmul.bf16.gmra.mxu0 %v177
    %v265 = vpop.f32.mrf.mxu0
    %v266 = vadd.f32 %v242, %v265
    %v267 = vpop.f32.mrf.mxu0
    %v268 = vadd.f32 %v242, %v267
    %269 = vdwg.mxu0
    %v270 = vpack.c.bf16 %v266, %v266
    %v271 = vpack.c.bf16 %v268, %v268
    %272 = vst.msk [vmem:[%s11] sm:$0xf] %vm195, %v270
    %273 = vst.msk [vmem:[%s11 + $0x4] sm:$0xf] %vm195, %v271
    // Predicated region
    $region50: #{_lambda_.18} parent=1 // pred_check
      _
    $region51: #{_lambda_.18} parent=1 // pred_check_branch
      %275 = sbr.rel (0) target = $region53
    $region52: #{_lambda_.18} parent=1 // pred_region
      _
    $region53: #{_lambda_.18} parent=1 // pred_fallthru
      _
    // Predicated region
    $region54: #{_lambda_.18} parent=1 // pred_check
      _
    $region55: #{_lambda_.18} parent=1 // pred_check_branch
      %277 = sbr.rel (0) target = $region57
    $region56: #{_lambda_.18} parent=1 // pred_region
      _
    $region57: #{_lambda_.18} parent=1 // pred_fallthru
      _
    // Predicated region
    $region58: #{_lambda_.18} parent=1 // pred_check
      _
    $region59: #{_lambda_.18} parent=1 // pred_check_branch
      %279 = sbr.rel (0) target = $region61
    $region60: #{_lambda_.18} parent=1 // pred_region
      _
    $region61: #{_lambda_.18} parent=1 // pred_fallthru
      _
    // Predicated region
    $region62: #{_lambda_.18} parent=1 // pred_check
      _
    $region63: #{_lambda_.18} parent=1 // pred_check_branch
      %281 = sbr.rel (0) target = $region65
    $region64: #{_lambda_.18} parent=1 // pred_region
      _
    $region65: #{_lambda_.18} parent=1 // pred_fallthru
      _
    // Predicated region
    $region66: #{_lambda_.18} parent=1 // pred_check
      _
    $region67: #{_lambda_.18} parent=1 // pred_check_branch
      %283 = sbr.rel (0) target = $region69
    $region68: #{_lambda_.18} parent=1 // pred_region
      _
    $region69: #{_lambda_.18} parent=1 // pred_fallthru
      _
    // Predicated region
    $region70: #{_lambda_.18} parent=1 // pred_check
      _
    $region71: #{_lambda_.18} parent=1 // pred_check_branch
      %285 = sbr.rel (0) target = $region73
    $region72: #{_lambda_.18} parent=1 // pred_region
      _
    $region73: #{_lambda_.18} parent=1 // pred_fallthru
      _
    %286 = vsyncpa [#allocation3], 1
    %287 = vsyncpa [#allocation5], 1

// kernel: _lambda_.23
$region0: #{_lambda_.23}
  #allocation0 [shape = 'u32[]', space=smem, size = 0x4, offset = 0x4, fixed_abs, tag = 'smem constant byte address 0x4 - core index']
  #allocation1 [shape = 'u32[72,128]{1,0:T(1,128)}', space=vmem, size = 0x9000, scoped, tag = 'internal scratch']
  %s0 = inlined_call_operand.vmem [shape: f32[16,32], index: 0, kind: input, shape index: {}]
  %s1 = inlined_call_operand.vmem [shape: f32[1,32], index: 1, kind: input, shape index: {}, may-alias: {1,7}]
  %s2 = inlined_call_operand.vmem [shape: f32[1,32], index: 2, kind: input, shape index: {}, may-alias: {2,6,8}]
  %s3 = inlined_call_operand.vmem [shape: bf16[32,64], index: 3, kind: input, shape index: {}]
  %s4 = inlined_call_operand.vmem [shape: f32[1,64], index: 4, kind: input, shape index: {}]
  %s5 = inlined_call_operand.vmem [shape: bf16[64,32], index: 5, kind: input, shape index: {}]
  %s6 = inlined_call_operand.vmem [shape: f32[1,32], index: 6, kind: input, shape index: {}, may-alias: {2,6,8}]
  %s7 = inlined_call_operand.vmem [shape: f32[1,32], index: 7, kind: input, shape index: {}, may-alias: {1,7}]
  %s8 = inlined_call_operand.vmem [shape: f32[1,32], index: 8, kind: input, shape index: {}, may-alias: {2,6,8}]
  %s9 = inlined_call_operand.hbm [shape: f32[16,32], index: 9, kind: output, shape index: {}]
  %s10 = sld [smem:[#allocation0]]
  $region46: #{_lambda_.23} parent=0
    _
  %s12 = ssub.s32 1, %s10
  %s13 = scalar_select 0, %s12, %s10
  $region1: #{_lambda_.23} parent=0
    #allocation2 [shape = 'u8[8192]{0}', space=vmem, size = 0x2000, scoped, tag = 'output window, operand 0, single buffered']
    #allocation3 [shape = 's32[1]{0}', space=sflag, size = 0x4, scoped, tag = 'scoped memory for _lambda_.23']
    %14 = vsyncpa [#allocation3], 0
    // Predicated region
    $region2: #{_lambda_.23} parent=1 // pred_check
      _
    $region3: #{_lambda_.23} parent=1 // pred_check_branch
      %16 = sbr.rel (0) target = $region5
    $region4: #{_lambda_.23} parent=1 // pred_region
      _
    $region5: #{_lambda_.23} parent=1 // pred_fallthru
      _
    // Predicated region
    $region6: #{_lambda_.23} parent=1 // pred_check
      _
    $region7: #{_lambda_.23} parent=1 // pred_check_branch
      %18 = sbr.rel (0) target = $region9
    $region8: #{_lambda_.23} parent=1 // pred_region
      _
    $region9: #{_lambda_.23} parent=1 // pred_fallthru
      _
    // Predicated region
    $region10: #{_lambda_.23} parent=1 // pred_check
      _
    $region11: #{_lambda_.23} parent=1 // pred_check_branch
      %20 = sbr.rel (0) target = $region13
    $region12: #{_lambda_.23} parent=1 // pred_region
      _
    $region13: #{_lambda_.23} parent=1 // pred_fallthru
      _
    // Predicated region
    $region14: #{_lambda_.23} parent=1 // pred_check
      _
    $region15: #{_lambda_.23} parent=1 // pred_check_branch
      %22 = sbr.rel (0) target = $region17
    $region16: #{_lambda_.23} parent=1 // pred_region
      _
    $region17: #{_lambda_.23} parent=1 // pred_fallthru
      _
    // Predicated region
    $region18: #{_lambda_.23} parent=1 // pred_check
      _
    $region19: #{_lambda_.23} parent=1 // pred_check_branch
      %24 = sbr.rel (0) target = $region21
    $region20: #{_lambda_.23} parent=1 // pred_region
      _
    $region21: #{_lambda_.23} parent=1 // pred_fallthru
      _
    // Predicated region
    $region22: #{_lambda_.23} parent=1 // pred_check
      _
    $region23: #{_lambda_.23} parent=1 // pred_check_branch
      %26 = sbr.rel (0) target = $region25
    $region24: #{_lambda_.23} parent=1 // pred_region
      _
    $region25: #{_lambda_.23} parent=1 // pred_fallthru
      _
    // Predicated region
    $region26: #{_lambda_.23} parent=1 // pred_check
      _
    $region27: #{_lambda_.23} parent=1 // pred_check_branch
      %28 = sbr.rel (0) target = $region29
    $region28: #{_lambda_.23} parent=1 // pred_region
      _
    $region29: #{_lambda_.23} parent=1 // pred_fallthru
      _
    // Predicated region
    $region30: #{_lambda_.23} parent=1 // pred_check
      _
    $region31: #{_lambda_.23} parent=1 // pred_check_branch
      %30 = sbr.rel (0) target = $region33
    $region32: #{_lambda_.23} parent=1 // pred_region
      _
    $region33: #{_lambda_.23} parent=1 // pred_fallthru
      _
    // Predicated region
    $region34: #{_lambda_.23} parent=1 // pred_check
      _
    $region35: #{_lambda_.23} parent=1 // pred_check_branch
      %32 = sbr.rel (0) target = $region37
    $region36: #{_lambda_.23} parent=1 // pred_region
      _
    $region37: #{_lambda_.23} parent=1 // pred_fallthru
      _
    %v34 = vld [vmem:[%s0] sm:$0xff]
    %v35 = vld [vmem:[%s0 + $0x8] sm:$0xff]
    %v36 = vld [vmem:[%s1] sm:$0x1]
    %v37 = vld [vmem:[%s2] sm:$0x1]
    %vm38 = vcmask 261120
    %v39 = vsel %vm38, %v34, 0.0
    %40 = vadd.xlane.f32.xlu0 %v39
    %v41 = vpop.xlane.xlu0 %40
    %v42 = vsel %vm38, %v35, 0.0
    %43 = vadd.xlane.f32.xlu0 %v42
    %v44 = vpop.xlane.xlu0 %43
    %v45 = vrcp.pop 32.0
    %v46 = vmul.f32 32.0, %v45
    %v47 = vsub.f32 1.0, %v46
    %v48 = vmul.f32 %v45, %v47
    %v49 = vadd.f32 %v45, %v48
    %vm50 = vweird.f32 %v45
    %v51 = vsel %vm50, %v45, %v49
    %v52 = vmul.f32 %v41, %v51
    %v53 = vmul.f32 %v44, %v51
    %v54 = vsub.f32 %v34, %v52
    %v55 = vsub.f32 %v35, %v53
    %v56 = vmul.f32 %v54, %v54
    %v57 = vmul.f32 %v55, %v55
    %v58 = vsel %vm38, %v56, 0.0
    %59 = vadd.xlane.f32.xlu0 %v58
    %v60 = vpop.xlane.xlu0 %59
    %v61 = vsel %vm38, %v57, 0.0
    %62 = vadd.xlane.f32.xlu0 %v61
    %v63 = vpop.xlane.xlu0 %62
    %v64 = vmul.f32 %v60, 0.032258064
    %v65 = vmul.f32 %v63, 0.032258064
    %v66 = vrsqrt.pop %v64
    %v67 = vmul.f32 %v66, %v64
    %v68 = vmul.f32 %v67, %v66
    %v69 = vmul.f32 0.5, %v68
    %v70 = vsub.f32 1.5, %v69
    %v71 = vmul.f32 %v66, %v70
    %v72 = vmul.f32 %v64, %v71
    %vm73 = vcmp.eq.f32.partialorder %v64, inf
    %v74 = vsel %vm73, %v64, %v72
    %vm75 = vcmp.eq.f32.partialorder %v64, 0.0
    %v76 = vand.u32 %v64, 2147483648
    %v77 = vsel %vm75, %v76, %v74
    %v78 = vrsqrt.pop %v65
    %v79 = vmul.f32 %v78, %v65
    %v80 = vmul.f32 %v79, %v78
    %v81 = vmul.f32 0.5, %v80
    %v82 = vsub.f32 1.5, %v81
    %v83 = vmul.f32 %v78, %v82
    %v84 = vmul.f32 %v65, %v83
    %vm85 = vcmp.eq.f32.partialorder %v65, inf
    %v86 = vsel %vm85, %v65, %v84
    %vm87 = vcmp.eq.f32.partialorder %v65, 0.0
    %v88 = vand.u32 %v65, 2147483648
    %v89 = vsel %vm87, %v88, %v86
    %v90 = vadd.f32 %v77, 1e-06
    %v91 = vadd.f32 %v89, 1e-06
    %v92 = vrcp.pop %v90
    %v93 = vrcp.pop %v91
    %v95 = vperm.slane %v36, 0
    %v97 = vmul.f32 %v95, %v54
    %v98 = vmul.f32 %v95, %v55
    %v99 = vmul.f32 %v97, %v92
    %v100 = vmul.f32 %v98, %v93
    %v102 = vperm.slane %v37, 0
    %v104 = vadd.f32 %v99, %v102
    %v105 = vadd.f32 %v100, %v102
    %v106 = vpack.c.bf16 %v105, %v104
    %v107 = vld [vmem:[%s3] sm:$0xf]
    %v108 = vld [vmem:[%s3 + $0x4] sm:$0xf]
    %v109 = vld [vmem:[%s3 + $0x8] sm:$0xf]
    %v110 = vld [vmem:[%s3 + $0xc] sm:$0xf]
    %v111 = vld [vmem:[%s4] sm:$0x1]
    %v113 = vperm.slane %v111, 0
    %v119 = vunpack.c.l.b16 %v107
    %v120 = vunpack.c.l.b16 %v108
    %v121 = vunpack.c.l.b16 %v109
    %v122 = vunpack.c.l.b16 %v110
    %v123 = vpack.c.b16 %v120, %v119
    %v124 = vpack.c.b16 %v122, %v121
    %v128 = vsel %vm38, %v106, 0
    %130 = vmatpush.bf16.msra.mxu0 0
    %131 = vmatpush.bf16.msra.mxu0 0
    %132 = vmatpush.bf16.msra.mxu0 0
    %133 = vmatpush.bf16.msra.mxu0 0
    %134 = vmatpush.bf16.msra.mxu0 0
    %135 = vmatpush.bf16.msra.mxu0 0
    %136 = vmatpush.bf16.msra.mxu0 %v124
    %137 = vmatpush.bf16.msra.mxu0 %v123
    %138 = vmatmul.bf16.gmra.mxu0 %v128
    %v139 = vpop.f32.mrf.mxu0
    %v140 = vadd.f32 %v113, %v139
    %v141 = vpop.f32.mrf.mxu0
    %v142 = vadd.f32 %v113, %v141
    %143 = vdwg.mxu0
    %v144 = vmax.f32 %v140, 0.0
    %v145 = vmax.f32 %v142, 0.0
    %v146 = vpack.c.bf16 %v145, %v144
    %v147 = vld [vmem:[%s5] sm:$0xf]
    %v148 = vld [vmem:[%s5 + $0x4] sm:$0xf]
    %v149 = vld [vmem:[%s5 + $0x8] sm:$0xf]
    %v150 = vld [vmem:[%s5 + $0xc] sm:$0xf]
    %v151 = vld [vmem:[%s5 + $0x10] sm:$0xf]
    %v152 = vld [vmem:[%s5 + $0x14] sm:$0xf]
    %v153 = vld [vmem:[%s5 + $0x18] sm:$0xf]
    %v154 = vld [vmem:[%s5 + $0x1c] sm:$0xf]
    %v155 = vld [vmem:[%s6] sm:$0x1]
    %v157 = vperm.slane %v155, 0
    %v167 = vunpack.c.l.b16 %v147
    %v168 = vunpack.c.l.b16 %v148
    %v169 = vunpack.c.l.b16 %v149
    %v170 = vunpack.c.l.b16 %v150
    %v171 = vunpack.c.l.b16 %v151
    %v172 = vunpack.c.l.b16 %v152
    %v173 = vunpack.c.l.b16 %v153
    %v174 = vunpack.c.l.b16 %v154
    %v175 = vpack.c.b16 %v168, %v167
    %v176 = vpack.c.b16 %v170, %v169
    %v177 = vpack.c.b16 %v172, %v171
    %v178 = vpack.c.b16 %v174, %v173
    %vm183 = vcmask 523264
    %v185 = vsel %vm183, %v146, 0
    %187 = vmatpush.bf16.msra.mxu0 0
    %188 = vmatpush.bf16.msra.mxu0 0
    %189 = vmatpush.bf16.msra.mxu0 0
    %190 = vmatpush.bf16.msra.mxu0 0
    %191 = vmatpush.bf16.msra.mxu0 %v178
    %192 = vmatpush.bf16.msra.mxu0 %v177
    %193 = vmatpush.bf16.msra.mxu0 %v176
    %194 = vmatpush.bf16.msra.mxu0 %v175
    %195 = vmatmul.bf16.gmra.mxu0 %v185
    %v196 = vpop.f32.mrf.mxu0
    %v197 = vadd.f32 %v157, %v196
    %v198 = vpop.f32.mrf.mxu0
    %v199 = vadd.f32 %v157, %v198
    %200 = vdwg.mxu0
    %v201 = vadd.f32 %v34, %v197
    %v202 = vadd.f32 %v35, %v199
    %v203 = vld [vmem:[%s7] sm:$0x1]
    %v204 = vld [vmem:[%s8] sm:$0x1]
    %v205 = vsel %vm38, %v201, 0.0
    %206 = vadd.xlane.f32.xlu0 %v205
    %v207 = vpop.xlane.xlu0 %206
    %v208 = vsel %vm38, %v202, 0.0
    %209 = vadd.xlane.f32.xlu0 %v208
    %v210 = vpop.xlane.xlu0 %209
    %v211 = vmul.f32 %v207, %v51
    %v212 = vmul.f32 %v210, %v51
    %v213 = vsub.f32 %v201, %v211
    %v214 = vsub.f32 %v202, %v212
    %v215 = vmul.f32 %v213, %v213
    %v216 = vmul.f32 %v214, %v214
    %v217 = vsel %vm38, %v215, 0.0
    %218 = vadd.xlane.f32.xlu0 %v217
    %v219 = vpop.xlane.xlu0 %218
    %v220 = vsel %vm38, %v216, 0.0
    %221 = vadd.xlane.f32.xlu0 %v220
    %v222 = vpop.xlane.xlu0 %221
    %v223 = vmul.f32 %v219, 0.032258064
    %v224 = vmul.f32 %v222, 0.032258064
    %v225 = vrsqrt.pop %v223
    %v226 = vmul.f32 %v225, %v223
    %v227 = vmul.f32 %v226, %v225
    %v228 = vmul.f32 0.5, %v227
    %v229 = vsub.f32 1.5, %v228
    %v230 = vmul.f32 %v225, %v229
    %v231 = vmul.f32 %v223, %v230
    %vm232 = vcmp.eq.f32.partialorder %v223, inf
    %v233 = vsel %vm232, %v223, %v231
    %vm234 = vcmp.eq.f32.partialorder %v223, 0.0
    %v235 = vand.u32 %v223, 2147483648
    %v236 = vsel %vm234, %v235, %v233
    %v237 = vrsqrt.pop %v224
    %v238 = vmul.f32 %v237, %v224
    %v239 = vmul.f32 %v238, %v237
    %v240 = vmul.f32 0.5, %v239
    %v241 = vsub.f32 1.5, %v240
    %v242 = vmul.f32 %v237, %v241
    %v243 = vmul.f32 %v224, %v242
    %vm244 = vcmp.eq.f32.partialorder %v224, inf
    %v245 = vsel %vm244, %v224, %v243
    %vm246 = vcmp.eq.f32.partialorder %v224, 0.0
    %v247 = vand.u32 %v224, 2147483648
    %v248 = vsel %vm246, %v247, %v245
    %v249 = vadd.f32 %v236, 1e-06
    %v250 = vadd.f32 %v248, 1e-06
    %v251 = vrcp.pop %v249
    %v252 = vrcp.pop %v250
    %v254 = vperm.slane %v203, 0
    %v256 = vmul.f32 %v254, %v213
    %v257 = vmul.f32 %v254, %v214
    %v258 = vmul.f32 %v256, %v251
    %v259 = vmul.f32 %v257, %v252
    %v261 = vperm.slane %v204, 0
    %v263 = vadd.f32 %v258, %v261
    %v264 = vadd.f32 %v259, %v261
    %265 = vst.msk [vmem:[#allocation2] sm:$0xff] %vm38, %v263
    %266 = vst.msk [vmem:[#allocation2 + $0x8] sm:$0xff] %vm38, %v264
    // Predicated region
    $region38: #{_lambda_.23} parent=1 // pred_check
      _
    $region39: #{_lambda_.23} parent=1 // pred_check_branch
      %268 = sbr.rel (0) target = $region41
    $region40: #{_lambda_.23} parent=1 // pred_region
      %270 = vsyncadd [#allocation3], 0
      %s271 = sshll.u32 [#allocation2], 4
      %s272 = int_to_ptr.vmem [resolvable:$true] %s271
      %s273 = sshll.u32 %s9, 4
      %s274 = int_to_ptr.hbm [resolvable:$true] %s273
      %279 = dma.vmem_to_hbm [thread:$0]  %s272, 256, %s274, [#allocation3], 128, 128, 8
    $region41: #{_lambda_.23} parent=1 // pred_fallthru
      _
    // Predicated region
    $region42: #{_lambda_.23} parent=1 // pred_check
      _
    $region43: #{_lambda_.23} parent=1 // pred_check_branch
      %281 = sbr.rel (0) target = $region45
    $region44: #{_lambda_.23} parent=1 // pred_region
      %283 = dma.done [#allocation3], 256
    $region45: #{_lambda_.23} parent=1 // pred_fallthru
      _
    %284 = vsyncpa [#allocation3], 1

</llo_original>
